<compile_context>
chip_gen: v7x
topology: tpu7x:2x2x1
jax: 0.10.0
libtpu: 0.0.40
codegen_flags: <defaults>
</compile_context>

<pallas_src>
import functools

import jax
import jax.numpy as jnp
from jax.experimental import pallas as pl
from jax.experimental.pallas import tpu as pltpu


def _vmem():
    # Whole-array block resident in VMEM (all shapes here are tiny).
    return pl.BlockSpec(memory_space=pltpu.MemorySpace.VMEM)


# ---------------------------------------------------------------------------
# Fully fused encoder kernel.
#   x_ref     : (T*B, I)        time-major flattened input (bf16, B already padded)
#   emb_w_ref : (I, H)          nn.Linear weight, transposed (bf16)
#   emb_b_ref : (1, H)          f32
#   h0_ref    : (2*n_layers, B, H)
#   c0_ref    : (2*n_layers, B, H)
#   rest      : [wih_cat, whh_cat, b_cat] * n_layers        (inputs)
#               out_ref (T*B, out_lanes), hN_ref, cN_ref    (outputs)
#   wih_cat = [wih_fwd | wih_bwd]  (d_in, 8H)  bf16
#   whh_cat = [whh_fwd | whh_bwd]  (H, 8H)     f32
#   b_cat   = [b_fwd   | b_bwd]    (1, 8H)     f32   (b = b_ih + b_hh)
# ---------------------------------------------------------------------------
def encoder_kernel(x_ref, emb_w_ref, emb_b_ref, h0_ref, c0_ref, *rest,
                   T, B, H, n_layers, out_lanes):
    G = 4 * H
    w_refs = rest[:3 * n_layers]
    out_ref, hN_ref, cN_ref = rest[3 * n_layers:3 * n_layers + 3]

    # ---- embedding (nn.Linear): one big MXU matmul over all T*B rows ----
    inp = (jnp.dot(x_ref[...], emb_w_ref[...],
                   preferred_element_type=jnp.float32) + emb_b_ref[...])   # (T*B, H) f32
    # TODO(synk): nn.Dropout(0.5) is identity in eval mode; training-mode
    # dropout would need pltpu.prng_seed + pltpu.prng_random_bits here.

    for layer in range(n_layers):
        wih_c, whh_c, b_c = w_refs[3 * layer:3 * layer + 3]

        # Hoisted, fused (both directions) input projection for ALL timesteps:
        # one 256-lane-wide MXU matmul; bias folded in.  Lane-aligned split.
        gx = (jnp.dot(inp.astype(jnp.bfloat16), wih_c[...],
                      preferred_element_type=jnp.float32) + b_c[...])      # (T*B, 8H)
        gx_f = gx[:, 0:G]          # (T*B, 4H)  fwd direction
        gx_b = gx[:, G:2 * G]      # (T*B, 4H)  bwd direction

        whh_v = whh_c[...]         # (H, 8H) f32 (recurrence kept in f32)

        # Stacked fwd/bwd state: rows 0:B = fwd, rows B:2B = bwd.
        h_fb = jnp.concatenate([h0_ref[2 * layer], h0_ref[2 * layer + 1]], axis=0)
        c_fb = jnp.concatenate([c0_ref[2 * layer], c0_ref[2 * layer + 1]], axis=0)

        hs_f = [None] * T
        hs_b = [None] * T

        # Fully-unrolled serial recurrence (fine at T=8; for larger T switch to
        # lax.fori_loop with a small unroll and VMEM-carried state).
        for i in range(T):
            tf = i
            tb = T - 1 - i
            # One fused MXU push for both directions' recurrent projections.
            hh = jnp.dot(h_fb, whh_v, preferred_element_type=jnp.float32)  # (2B, 8H)
            gates_f = hh[0:B, 0:G] + gx_f[tf * B:(tf + 1) * B]
            gates_b = hh[B:2 * B, G:2 * G] + gx_b[tb * B:(tb + 1) * B]
            gates = jnp.concatenate([gates_f, gates_b], axis=0)            # (2B, 4H)

            # Full-width nonlinearities (one sigmoid + one tanh over the whole
            # 128-lane gate tile), then lane slices for i/f/g/o.
            sig = jax.nn.sigmoid(gates)
            th = jnp.tanh(gates)
            i_g = sig[:, 0 * H:1 * H]
            f_g = sig[:, 1 * H:2 * H]
            g_g = th[:, 2 * H:3 * H]
            o_g = sig[:, 3 * H:4 * H]

            c_fb = f_g * c_fb + i_g * g_g
            h_fb = o_g * jnp.tanh(c_fb)

            hs_f[tf] = h_fb[0:B]
            hs_b[tb] = h_fb[B:2 * B]

        hN_ref[2 * layer] = h_fb[0:B]
        hN_ref[2 * layer + 1] = h_fb[B:2 * B]
        cN_ref[2 * layer] = c_fb[0:B]
        cN_ref[2 * layer + 1] = c_fb[B:2 * B]

        # Bidirectional layer output built once as a value (no VMEM round-trip
        # between layers); next layer consumes it directly.
        inp = jnp.concatenate(
            [jnp.concatenate(hs_f, axis=0),      # (T*B, H) fwd
             jnp.concatenate(hs_b, axis=0)],     # (T*B, H) bwd
            axis=1)                              # (T*B, 2H)

    # One dense, lane-padded store of the final layer output.
    pad = out_lanes - 2 * H
    if pad > 0:
        out_ref[...] = jnp.concatenate(
            [inp, jnp.zeros((T * B, pad), jnp.float32)], axis=1)
    else:
        out_ref[...] = inp


# ---------------------------------------------------------------------------
# Parameter construction (deterministic; matches nn.Module shapes; weights
# stored already transposed: wih (d_in, 4H), whh (H, 4H), gate order i,f,g,o;
# biases pre-summed b = b_ih + b_hh).
# ---------------------------------------------------------------------------
def init_params(key, input_size, hidden_size, n_layers=2):
    H = hidden_size
    keys = iter(jax.random.split(key, 2 + n_layers * 2 * 4))
    scale = 0.1
    params = {
        "emb_w": scale * jax.random.normal(next(keys), (input_size, H), jnp.float32),
        "emb_b": scale * jax.random.normal(next(keys), (H,), jnp.float32),
        "lstm": [],
    }
    for layer in range(n_layers):
        d_in = H if layer == 0 else 2 * H
        layer_p = {}
        for dirname in ("fwd", "bwd"):
            wih = scale * jax.random.normal(next(keys), (d_in, 4 * H), jnp.float32)
            whh = scale * jax.random.normal(next(keys), (H, 4 * H), jnp.float32)
            b_ih = scale * jax.random.normal(next(keys), (4 * H,), jnp.float32)
            b_hh = scale * jax.random.normal(next(keys), (4 * H,), jnp.float32)
            layer_p[dirname] = {"wih": wih, "whh": whh, "b": b_ih + b_hh}
        params["lstm"].append(layer_p)
    return params


# ---------------------------------------------------------------------------
# Encoder.forward(inputs, hidden) -> (output, (h_n, c_n))
#   inputs : (B, T, input_size)
#   hidden : (h0, c0) each (n_layers*2, B, H)
#   output : (B, T, 2H)
# ---------------------------------------------------------------------------
def encoder_forward(params, inputs, hidden):
    h0, c0 = hidden
    B, T, I = inputs.shape
    H = params["emb_w"].shape[1]
    n_layers = len(params["lstm"])

    Bp = ((B + 7) // 8) * 8            # pad batch to sublane granularity
    out_lanes = max(128, 2 * H)        # lane-dense output, sliced back below

    # Time-major, batch-padded, flattened: row block t*Bp:(t+1)*Bp == step t.
    x_tm = jnp.transpose(inputs, (1, 0, 2))                        # (T, B, I)
    x_tm = jnp.pad(x_tm, ((0, 0), (0, Bp - B), (0, 0)))
    x_tm = x_tm.reshape(T * Bp, I).astype(jnp.bfloat16)

    h0p = jnp.pad(h0, ((0, 0), (0, Bp - B), (0, 0)))
    c0p = jnp.pad(c0, ((0, 0), (0, Bp - B), (0, 0)))

    flat_w = []
    for layer_p in params["lstm"]:
        wih_c = jnp.concatenate(
            [layer_p["fwd"]["wih"], layer_p["bwd"]["wih"]], axis=1).astype(jnp.bfloat16)
        whh_c = jnp.concatenate(
            [layer_p["fwd"]["whh"], layer_p["bwd"]["whh"]], axis=1)          # f32
        b_c = jnp.concatenate(
            [layer_p["fwd"]["b"], layer_p["bwd"]["b"]]).reshape(1, 8 * H)    # f32
        flat_w += [wih_c, whh_c, b_c]

    kern = functools.partial(encoder_kernel, T=T, B=Bp, H=H,
                             n_layers=n_layers, out_lanes=out_lanes)
    n_in = 5 + len(flat_w)

    out2d, h_n, c_n = pl.pallas_call(
        kern,
        out_shape=(jax.ShapeDtypeStruct((T * Bp, out_lanes), jnp.float32),
                   jax.ShapeDtypeStruct((n_layers * 2, Bp, H), jnp.float32),
                   jax.ShapeDtypeStruct((n_layers * 2, Bp, H), jnp.float32)),
        in_specs=[_vmem()] * n_in,
        out_specs=(_vmem(), _vmem(), _vmem()),
        compiler_params=pltpu.CompilerParams(vmem_limit_bytes=32 * 1024 * 1024),
    )(x_tm, params["emb_w"].astype(jnp.bfloat16),
      params["emb_b"].reshape(1, H), h0p, c0p, *flat_w)

    output = out2d.reshape(T, Bp, out_lanes)[:, :B, :2 * H]        # (T, B, 2H)
    output = jnp.transpose(output, (1, 0, 2))                      # (B, T, 2H)
    return output, (h_n[:, :B, :], c_n[:, :B, :])


def init_hidden(batch_size, hidden_size, n_layers=2):
    shape = (n_layers * 2, batch_size, hidden_size)
    return (jnp.zeros(shape, jnp.float32), jnp.zeros(shape, jnp.float32))


if __name__ == "__main__":
    B, T, INPUT, HIDDEN, NLAYERS = 2, 8, 16, 32, 2

    key = jax.random.PRNGKey(0)
    k_param, k_x = jax.random.split(key)
    params = init_params(k_param, INPUT, HIDDEN, NLAYERS)

    x = jax.random.normal(k_x, (B, T, INPUT), jnp.float32)
    hidden = init_hidden(B, HIDDEN, NLAYERS)

    fwd = jax.jit(encoder_forward)
    output, (h_n, c_n) = fwd(params, x, hidden)
    jax.block_until_ready((output, h_n, c_n))

    assert output.shape == (B, T, 2 * HIDDEN)
    assert h_n.shape == (NLAYERS * 2, B, HIDDEN)
    assert c_n.shape == (NLAYERS * 2, B, HIDDEN)
    print("KERNEL_OK")
</pallas_src>

<mosaic_0001>
module attributes {stable_mosaic.version = 11 : i64} {
  func.func @encoder_kernel(%arg0: memref<64x16xbf16, #tpu.memory_space<vmem>>, %arg1: memref<16x32xbf16, #tpu.memory_space<vmem>>, %arg2: memref<1x32xf32, #tpu.memory_space<vmem>>, %arg3: memref<4x8x32xf32, #tpu.memory_space<vmem>>, %arg4: memref<4x8x32xf32, #tpu.memory_space<vmem>>, %arg5: memref<32x256xbf16, #tpu.memory_space<vmem>>, %arg6: memref<32x256xf32, #tpu.memory_space<vmem>>, %arg7: memref<1x256xf32, #tpu.memory_space<vmem>>, %arg8: memref<64x256xbf16, #tpu.memory_space<vmem>>, %arg9: memref<32x256xf32, #tpu.memory_space<vmem>>, %arg10: memref<1x256xf32, #tpu.memory_space<vmem>>, %arg11: memref<64x128xf32, #tpu.memory_space<vmem>>, %arg12: memref<4x8x32xf32, #tpu.memory_space<vmem>>, %arg13: memref<4x8x32xf32, #tpu.memory_space<vmem>>) attributes {dimension_semantics = [], scalar_prefetch = 0 : i64, scratch_operands = 0 : i64, tpu.core_type = #tpu.core_type<tc>} {
    %c0 = arith.constant 0 : index
    %c0_0 = arith.constant 0 : index
    %0 = vector.load %arg0[%c0, %c0_0] : memref<64x16xbf16, #tpu.memory_space<vmem>>, vector<64x16xbf16>
    %c0_1 = arith.constant 0 : index
    %c0_2 = arith.constant 0 : index
    %1 = vector.load %arg1[%c0_1, %c0_2] : memref<16x32xbf16, #tpu.memory_space<vmem>>, vector<16x32xbf16>
    %cst = arith.constant dense<0.000000e+00> : vector<64x32xf32>
    %2 = tpu.matmul %0, %1, %cst {dimension_numbers = #tpu.dot_dimension_numbers<[1], [0], [0], [1], [0, 0, 1, 1], [], []>} : vector<64x16xbf16>, vector<16x32xbf16>, vector<64x32xf32> -> vector<64x32xf32>
    %c0_3 = arith.constant 0 : index
    %c0_4 = arith.constant 0 : index
    %3 = vector.load %arg2[%c0_3, %c0_4] : memref<1x32xf32, #tpu.memory_space<vmem>>, vector<1x32xf32>
    %4 = vector.broadcast %3 : vector<1x32xf32> to vector<64x32xf32>
    %5 = arith.addf %2, %4 : vector<64x32xf32>
    %6 = arith.truncf %5 : vector<64x32xf32> to vector<64x32xbf16>
    %c0_5 = arith.constant 0 : index
    %c0_6 = arith.constant 0 : index
    %7 = vector.load %arg5[%c0_5, %c0_6] : memref<32x256xbf16, #tpu.memory_space<vmem>>, vector<32x256xbf16>
    %cst_7 = arith.constant dense<0.000000e+00> : vector<64x256xf32>
    %8 = tpu.matmul %6, %7, %cst_7 {dimension_numbers = #tpu.dot_dimension_numbers<[1], [0], [0], [1], [0, 0, 1, 1], [], []>} : vector<64x32xbf16>, vector<32x256xbf16>, vector<64x256xf32> -> vector<64x256xf32>
    %c0_8 = arith.constant 0 : index
    %c0_9 = arith.constant 0 : index
    %9 = vector.load %arg7[%c0_8, %c0_9] : memref<1x256xf32, #tpu.memory_space<vmem>>, vector<1x256xf32>
    %10 = vector.broadcast %9 : vector<1x256xf32> to vector<64x256xf32>
    %11 = arith.addf %8, %10 : vector<64x256xf32>
    %12 = vector.extract_strided_slice %11 {offsets = [0, 0], sizes = [64, 128], strides = [1, 1]} : vector<64x256xf32> to vector<64x128xf32>
    %13 = vector.extract_strided_slice %11 {offsets = [0, 128], sizes = [64, 128], strides = [1, 1]} : vector<64x256xf32> to vector<64x128xf32>
    %c0_10 = arith.constant 0 : index
    %c0_11 = arith.constant 0 : index
    %14 = vector.load %arg6[%c0_10, %c0_11] : memref<32x256xf32, #tpu.memory_space<vmem>>, vector<32x256xf32>
    %c0_12 = arith.constant 0 : index
    %c0_13 = arith.constant 0 : index
    %c0_14 = arith.constant 0 : index
    %15 = vector.load %arg3[%c0_12, %c0_13, %c0_14] : memref<4x8x32xf32, #tpu.memory_space<vmem>>, vector<1x8x32xf32>
    %16 = vector.shape_cast %15 : vector<1x8x32xf32> to vector<8x32xf32>
    %c1 = arith.constant 1 : index
    %c0_15 = arith.constant 0 : index
    %c0_16 = arith.constant 0 : index
    %17 = vector.load %arg3[%c1, %c0_15, %c0_16] : memref<4x8x32xf32, #tpu.memory_space<vmem>>, vector<1x8x32xf32>
    %18 = vector.shape_cast %17 : vector<1x8x32xf32> to vector<8x32xf32>
    %19 = tpu.concatenate %16, %18 in 0 : vector<8x32xf32>, vector<8x32xf32> -> vector<16x32xf32>
    %c0_17 = arith.constant 0 : index
    %c0_18 = arith.constant 0 : index
    %c0_19 = arith.constant 0 : index
    %20 = vector.load %arg4[%c0_17, %c0_18, %c0_19] : memref<4x8x32xf32, #tpu.memory_space<vmem>>, vector<1x8x32xf32>
    %21 = vector.shape_cast %20 : vector<1x8x32xf32> to vector<8x32xf32>
    %c1_20 = arith.constant 1 : index
    %c0_21 = arith.constant 0 : index
    %c0_22 = arith.constant 0 : index
    %22 = vector.load %arg4[%c1_20, %c0_21, %c0_22] : memref<4x8x32xf32, #tpu.memory_space<vmem>>, vector<1x8x32xf32>
    %23 = vector.shape_cast %22 : vector<1x8x32xf32> to vector<8x32xf32>
    %24 = tpu.concatenate %21, %23 in 0 : vector<8x32xf32>, vector<8x32xf32> -> vector<16x32xf32>
    %cst_23 = arith.constant dense<0.000000e+00> : vector<16x256xf32>
    %25 = tpu.matmul %19, %14, %cst_23 {dimension_numbers = #tpu.dot_dimension_numbers<[1], [0], [0], [1], [0, 0, 1, 1], [], []>} : vector<16x32xf32>, vector<32x256xf32>, vector<16x256xf32> -> vector<16x256xf32>
    %26 = vector.extract_strided_slice %25 {offsets = [0, 0], sizes = [8, 128], strides = [1, 1]} : vector<16x256xf32> to vector<8x128xf32>
    %27 = vector.extract_strided_slice %12 {offsets = [0, 0], sizes = [8, 128], strides = [1, 1]} : vector<64x128xf32> to vector<8x128xf32>
    %28 = arith.addf %26, %27 : vector<8x128xf32>
    %29 = vector.extract_strided_slice %25 {offsets = [8, 128], sizes = [8, 128], strides = [1, 1]} : vector<16x256xf32> to vector<8x128xf32>
    %30 = vector.extract_strided_slice %13 {offsets = [56, 0], sizes = [8, 128], strides = [1, 1]} : vector<64x128xf32> to vector<8x128xf32>
    %31 = arith.addf %29, %30 : vector<8x128xf32>
    %32 = tpu.concatenate %28, %31 in 0 : vector<8x128xf32>, vector<8x128xf32> -> vector<16x128xf32>
    %33 = arith.negf %32 : vector<16x128xf32>
    %34 = math.exp %33 : vector<16x128xf32>
    %cst_24 = arith.constant 1.000000e+00 : f32
    %35 = vector.broadcast %cst_24 : f32 to vector<16x128xf32>
    %36 = arith.addf %35, %34 : vector<16x128xf32>
    %37 = arith.divf %35, %36 : vector<16x128xf32>
    %38 = math.tanh %32 : vector<16x128xf32>
    %39 = vector.extract_strided_slice %37 {offsets = [0, 0], sizes = [16, 32], strides = [1, 1]} : vector<16x128xf32> to vector<16x32xf32>
    %40 = vector.extract_strided_slice %37 {offsets = [0, 32], sizes = [16, 32], strides = [1, 1]} : vector<16x128xf32> to vector<16x32xf32>
    %41 = vector.extract_strided_slice %38 {offsets = [0, 64], sizes = [16, 32], strides = [1, 1]} : vector<16x128xf32> to vector<16x32xf32>
    %42 = vector.extract_strided_slice %37 {offsets = [0, 96], sizes = [16, 32], strides = [1, 1]} : vector<16x128xf32> to vector<16x32xf32>
    %43 = arith.mulf %40, %24 : vector<16x32xf32>
    %44 = arith.mulf %39, %41 : vector<16x32xf32>
    %45 = arith.addf %43, %44 : vector<16x32xf32>
    %46 = math.tanh %45 : vector<16x32xf32>
    %47 = arith.mulf %42, %46 : vector<16x32xf32>
    %48 = vector.extract_strided_slice %47 {offsets = [0, 0], sizes = [8, 32], strides = [1, 1]} : vector<16x32xf32> to vector<8x32xf32>
    %49 = vector.extract_strided_slice %47 {offsets = [8, 0], sizes = [8, 32], strides = [1, 1]} : vector<16x32xf32> to vector<8x32xf32>
    %cst_25 = arith.constant dense<0.000000e+00> : vector<16x256xf32>
    %50 = tpu.matmul %47, %14, %cst_25 {dimension_numbers = #tpu.dot_dimension_numbers<[1], [0], [0], [1], [0, 0, 1, 1], [], []>} : vector<16x32xf32>, vector<32x256xf32>, vector<16x256xf32> -> vector<16x256xf32>
    %51 = vector.extract_strided_slice %50 {offsets = [0, 0], sizes = [8, 128], strides = [1, 1]} : vector<16x256xf32> to vector<8x128xf32>
    %52 = vector.extract_strided_slice %12 {offsets = [8, 0], sizes = [8, 128], strides = [1, 1]} : vector<64x128xf32> to vector<8x128xf32>
    %53 = arith.addf %51, %52 : vector<8x128xf32>
    %54 = vector.extract_strided_slice %50 {offsets = [8, 128], sizes = [8, 128], strides = [1, 1]} : vector<16x256xf32> to vector<8x128xf32>
    %55 = vector.extract_strided_slice %13 {offsets = [48, 0], sizes = [8, 128], strides = [1, 1]} : vector<64x128xf32> to vector<8x128xf32>
    %56 = arith.addf %54, %55 : vector<8x128xf32>
    %57 = tpu.concatenate %53, %56 in 0 : vector<8x128xf32>, vector<8x128xf32> -> vector<16x128xf32>
    %58 = arith.negf %57 : vector<16x128xf32>
    %59 = math.exp %58 : vector<16x128xf32>
    %cst_26 = arith.constant 1.000000e+00 : f32
    %60 = vector.broadcast %cst_26 : f32 to vector<16x128xf32>
    %61 = arith.addf %60, %59 : vector<16x128xf32>
    %62 = arith.divf %60, %61 : vector<16x128xf32>
    %63 = math.tanh %57 : vector<16x128xf32>
    %64 = vector.extract_strided_slice %62 {offsets = [0, 0], sizes = [16, 32], strides = [1, 1]} : vector<16x128xf32> to vector<16x32xf32>
    %65 = vector.extract_strided_slice %62 {offsets = [0, 32], sizes = [16, 32], strides = [1, 1]} : vector<16x128xf32> to vector<16x32xf32>
    %66 = vector.extract_strided_slice %63 {offsets = [0, 64], sizes = [16, 32], strides = [1, 1]} : vector<16x128xf32> to vector<16x32xf32>
    %67 = vector.extract_strided_slice %62 {offsets = [0, 96], sizes = [16, 32], strides = [1, 1]} : vector<16x128xf32> to vector<16x32xf32>
    %68 = arith.mulf %65, %45 : vector<16x32xf32>
    %69 = arith.mulf %64, %66 : vector<16x32xf32>
    %70 = arith.addf %68, %69 : vector<16x32xf32>
    %71 = math.tanh %70 : vector<16x32xf32>
    %72 = arith.mulf %67, %71 : vector<16x32xf32>
    %73 = vector.extract_strided_slice %72 {offsets = [0, 0], sizes = [8, 32], strides = [1, 1]} : vector<16x32xf32> to vector<8x32xf32>
    %74 = vector.extract_strided_slice %72 {offsets = [8, 0], sizes = [8, 32], strides = [1, 1]} : vector<16x32xf32> to vector<8x32xf32>
    %cst_27 = arith.constant dense<0.000000e+00> : vector<16x256xf32>
    %75 = tpu.matmul %72, %14, %cst_27 {dimension_numbers = #tpu.dot_dimension_numbers<[1], [0], [0], [1], [0, 0, 1, 1], [], []>} : vector<16x32xf32>, vector<32x256xf32>, vector<16x256xf32> -> vector<16x256xf32>
    %76 = vector.extract_strided_slice %75 {offsets = [0, 0], sizes = [8, 128], strides = [1, 1]} : vector<16x256xf32> to vector<8x128xf32>
    %77 = vector.extract_strided_slice %12 {offsets = [16, 0], sizes = [8, 128], strides = [1, 1]} : vector<64x128xf32> to vector<8x128xf32>
    %78 = arith.addf %76, %77 : vector<8x128xf32>
    %79 = vector.extract_strided_slice %75 {offsets = [8, 128], sizes = [8, 128], strides = [1, 1]} : vector<16x256xf32> to vector<8x128xf32>
    %80 = vector.extract_strided_slice %13 {offsets = [40, 0], sizes = [8, 128], strides = [1, 1]} : vector<64x128xf32> to vector<8x128xf32>
    %81 = arith.addf %79, %80 : vector<8x128xf32>
    %82 = tpu.concatenate %78, %81 in 0 : vector<8x128xf32>, vector<8x128xf32> -> vector<16x128xf32>
    %83 = arith.negf %82 : vector<16x128xf32>
    %84 = math.exp %83 : vector<16x128xf32>
    %cst_28 = arith.constant 1.000000e+00 : f32
    %85 = vector.broadcast %cst_28 : f32 to vector<16x128xf32>
    %86 = arith.addf %85, %84 : vector<16x128xf32>
    %87 = arith.divf %85, %86 : vector<16x128xf32>
    %88 = math.tanh %82 : vector<16x128xf32>
    %89 = vector.extract_strided_slice %87 {offsets = [0, 0], sizes = [16, 32], strides = [1, 1]} : vector<16x128xf32> to vector<16x32xf32>
    %90 = vector.extract_strided_slice %87 {offsets = [0, 32], sizes = [16, 32], strides = [1, 1]} : vector<16x128xf32> to vector<16x32xf32>
    %91 = vector.extract_strided_slice %88 {offsets = [0, 64], sizes = [16, 32], strides = [1, 1]} : vector<16x128xf32> to vector<16x32xf32>
    %92 = vector.extract_strided_slice %87 {offsets = [0, 96], sizes = [16, 32], strides = [1, 1]} : vector<16x128xf32> to vector<16x32xf32>
    %93 = arith.mulf %90, %70 : vector<16x32xf32>
    %94 = arith.mulf %89, %91 : vector<16x32xf32>
    %95 = arith.addf %93, %94 : vector<16x32xf32>
    %96 = math.tanh %95 : vector<16x32xf32>
    %97 = arith.mulf %92, %96 : vector<16x32xf32>
    %98 = vector.extract_strided_slice %97 {offsets = [0, 0], sizes = [8, 32], strides = [1, 1]} : vector<16x32xf32> to vector<8x32xf32>
    %99 = vector.extract_strided_slice %97 {offsets = [8, 0], sizes = [8, 32], strides = [1, 1]} : vector<16x32xf32> to vector<8x32xf32>
    %cst_29 = arith.constant dense<0.000000e+00> : vector<16x256xf32>
    %100 = tpu.matmul %97, %14, %cst_29 {dimension_numbers = #tpu.dot_dimension_numbers<[1], [0], [0], [1], [0, 0, 1, 1], [], []>} : vector<16x32xf32>, vector<32x256xf32>, vector<16x256xf32> -> vector<16x256xf32>
    %101 = vector.extract_strided_slice %100 {offsets = [0, 0], sizes = [8, 128], strides = [1, 1]} : vector<16x256xf32> to vector<8x128xf32>
    %102 = vector.extract_strided_slice %12 {offsets = [24, 0], sizes = [8, 128], strides = [1, 1]} : vector<64x128xf32> to vector<8x128xf32>
    %103 = arith.addf %101, %102 : vector<8x128xf32>
    %104 = vector.extract_strided_slice %100 {offsets = [8, 128], sizes = [8, 128], strides = [1, 1]} : vector<16x256xf32> to vector<8x128xf32>
    %105 = vector.extract_strided_slice %13 {offsets = [32, 0], sizes = [8, 128], strides = [1, 1]} : vector<64x128xf32> to vector<8x128xf32>
    %106 = arith.addf %104, %105 : vector<8x128xf32>
    %107 = tpu.concatenate %103, %106 in 0 : vector<8x128xf32>, vector<8x128xf32> -> vector<16x128xf32>
    %108 = arith.negf %107 : vector<16x128xf32>
    %109 = math.exp %108 : vector<16x128xf32>
    %cst_30 = arith.constant 1.000000e+00 : f32
    %110 = vector.broadcast %cst_30 : f32 to vector<16x128xf32>
    %111 = arith.addf %110, %109 : vector<16x128xf32>
    %112 = arith.divf %110, %111 : vector<16x128xf32>
    %113 = math.tanh %107 : vector<16x128xf32>
    %114 = vector.extract_strided_slice %112 {offsets = [0, 0], sizes = [16, 32], strides = [1, 1]} : vector<16x128xf32> to vector<16x32xf32>
    %115 = vector.extract_strided_slice %112 {offsets = [0, 32], sizes = [16, 32], strides = [1, 1]} : vector<16x128xf32> to vector<16x32xf32>
    %116 = vector.extract_strided_slice %113 {offsets = [0, 64], sizes = [16, 32], strides = [1, 1]} : vector<16x128xf32> to vector<16x32xf32>
    %117 = vector.extract_strided_slice %112 {offsets = [0, 96], sizes = [16, 32], strides = [1, 1]} : vector<16x128xf32> to vector<16x32xf32>
    %118 = arith.mulf %115, %95 : vector<16x32xf32>
    %119 = arith.mulf %114, %116 : vector<16x32xf32>
    %120 = arith.addf %118, %119 : vector<16x32xf32>
    %121 = math.tanh %120 : vector<16x32xf32>
    %122 = arith.mulf %117, %121 : vector<16x32xf32>
    %123 = vector.extract_strided_slice %122 {offsets = [0, 0], sizes = [8, 32], strides = [1, 1]} : vector<16x32xf32> to vector<8x32xf32>
    %124 = vector.extract_strided_slice %122 {offsets = [8, 0], sizes = [8, 32], strides = [1, 1]} : vector<16x32xf32> to vector<8x32xf32>
    %cst_31 = arith.constant dense<0.000000e+00> : vector<16x256xf32>
    %125 = tpu.matmul %122, %14, %cst_31 {dimension_numbers = #tpu.dot_dimension_numbers<[1], [0], [0], [1], [0, 0, 1, 1], [], []>} : vector<16x32xf32>, vector<32x256xf32>, vector<16x256xf32> -> vector<16x256xf32>
    %126 = vector.extract_strided_slice %125 {offsets = [0, 0], sizes = [8, 128], strides = [1, 1]} : vector<16x256xf32> to vector<8x128xf32>
    %127 = vector.extract_strided_slice %12 {offsets = [32, 0], sizes = [8, 128], strides = [1, 1]} : vector<64x128xf32> to vector<8x128xf32>
    %128 = arith.addf %126, %127 : vector<8x128xf32>
    %129 = vector.extract_strided_slice %125 {offsets = [8, 128], sizes = [8, 128], strides = [1, 1]} : vector<16x256xf32> to vector<8x128xf32>
    %130 = vector.extract_strided_slice %13 {offsets = [24, 0], sizes = [8, 128], strides = [1, 1]} : vector<64x128xf32> to vector<8x128xf32>
    %131 = arith.addf %129, %130 : vector<8x128xf32>
    %132 = tpu.concatenate %128, %131 in 0 : vector<8x128xf32>, vector<8x128xf32> -> vector<16x128xf32>
    %133 = arith.negf %132 : vector<16x128xf32>
    %134 = math.exp %133 : vector<16x128xf32>
    %cst_32 = arith.constant 1.000000e+00 : f32
    %135 = vector.broadcast %cst_32 : f32 to vector<16x128xf32>
    %136 = arith.addf %135, %134 : vector<16x128xf32>
    %137 = arith.divf %135, %136 : vector<16x128xf32>
    %138 = math.tanh %132 : vector<16x128xf32>
    %139 = vector.extract_strided_slice %137 {offsets = [0, 0], sizes = [16, 32], strides = [1, 1]} : vector<16x128xf32> to vector<16x32xf32>
    %140 = vector.extract_strided_slice %137 {offsets = [0, 32], sizes = [16, 32], strides = [1, 1]} : vector<16x128xf32> to vector<16x32xf32>
    %141 = vector.extract_strided_slice %138 {offsets = [0, 64], sizes = [16, 32], strides = [1, 1]} : vector<16x128xf32> to vector<16x32xf32>
    %142 = vector.extract_strided_slice %137 {offsets = [0, 96], sizes = [16, 32], strides = [1, 1]} : vector<16x128xf32> to vector<16x32xf32>
    %143 = arith.mulf %140, %120 : vector<16x32xf32>
    %144 = arith.mulf %139, %141 : vector<16x32xf32>
    %145 = arith.addf %143, %144 : vector<16x32xf32>
    %146 = math.tanh %145 : vector<16x32xf32>
    %147 = arith.mulf %142, %146 : vector<16x32xf32>
    %148 = vector.extract_strided_slice %147 {offsets = [0, 0], sizes = [8, 32], strides = [1, 1]} : vector<16x32xf32> to vector<8x32xf32>
    %149 = vector.extract_strided_slice %147 {offsets = [8, 0], sizes = [8, 32], strides = [1, 1]} : vector<16x32xf32> to vector<8x32xf32>
    %cst_33 = arith.constant dense<0.000000e+00> : vector<16x256xf32>
    %150 = tpu.matmul %147, %14, %cst_33 {dimension_numbers = #tpu.dot_dimension_numbers<[1], [0], [0], [1], [0, 0, 1, 1], [], []>} : vector<16x32xf32>, vector<32x256xf32>, vector<16x256xf32> -> vector<16x256xf32>
    %151 = vector.extract_strided_slice %150 {offsets = [0, 0], sizes = [8, 128], strides = [1, 1]} : vector<16x256xf32> to vector<8x128xf32>
    %152 = vector.extract_strided_slice %12 {offsets = [40, 0], sizes = [8, 128], strides = [1, 1]} : vector<64x128xf32> to vector<8x128xf32>
    %153 = arith.addf %151, %152 : vector<8x128xf32>
    %154 = vector.extract_strided_slice %150 {offsets = [8, 128], sizes = [8, 128], strides = [1, 1]} : vector<16x256xf32> to vector<8x128xf32>
    %155 = vector.extract_strided_slice %13 {offsets = [16, 0], sizes = [8, 128], strides = [1, 1]} : vector<64x128xf32> to vector<8x128xf32>
    %156 = arith.addf %154, %155 : vector<8x128xf32>
    %157 = tpu.concatenate %153, %156 in 0 : vector<8x128xf32>, vector<8x128xf32> -> vector<16x128xf32>
    %158 = arith.negf %157 : vector<16x128xf32>
    %159 = math.exp %158 : vector<16x128xf32>
    %cst_34 = arith.constant 1.000000e+00 : f32
    %160 = vector.broadcast %cst_34 : f32 to vector<16x128xf32>
    %161 = arith.addf %160, %159 : vector<16x128xf32>
    %162 = arith.divf %160, %161 : vector<16x128xf32>
    %163 = math.tanh %157 : vector<16x128xf32>
    %164 = vector.extract_strided_slice %162 {offsets = [0, 0], sizes = [16, 32], strides = [1, 1]} : vector<16x128xf32> to vector<16x32xf32>
    %165 = vector.extract_strided_slice %162 {offsets = [0, 32], sizes = [16, 32], strides = [1, 1]} : vector<16x128xf32> to vector<16x32xf32>
    %166 = vector.extract_strided_slice %163 {offsets = [0, 64], sizes = [16, 32], strides = [1, 1]} : vector<16x128xf32> to vector<16x32xf32>
    %167 = vector.extract_strided_slice %162 {offsets = [0, 96], sizes = [16, 32], strides = [1, 1]} : vector<16x128xf32> to vector<16x32xf32>
    %168 = arith.mulf %165, %145 : vector<16x32xf32>
    %169 = arith.mulf %164, %166 : vector<16x32xf32>
    %170 = arith.addf %168, %169 : vector<16x32xf32>
    %171 = math.tanh %170 : vector<16x32xf32>
    %172 = arith.mulf %167, %171 : vector<16x32xf32>
    %173 = vector.extract_strided_slice %172 {offsets = [0, 0], sizes = [8, 32], strides = [1, 1]} : vector<16x32xf32> to vector<8x32xf32>
    %174 = vector.extract_strided_slice %172 {offsets = [8, 0], sizes = [8, 32], strides = [1, 1]} : vector<16x32xf32> to vector<8x32xf32>
    %cst_35 = arith.constant dense<0.000000e+00> : vector<16x256xf32>
    %175 = tpu.matmul %172, %14, %cst_35 {dimension_numbers = #tpu.dot_dimension_numbers<[1], [0], [0], [1], [0, 0, 1, 1], [], []>} : vector<16x32xf32>, vector<32x256xf32>, vector<16x256xf32> -> vector<16x256xf32>
    %176 = vector.extract_strided_slice %175 {offsets = [0, 0], sizes = [8, 128], strides = [1, 1]} : vector<16x256xf32> to vector<8x128xf32>
    %177 = vector.extract_strided_slice %12 {offsets = [48, 0], sizes = [8, 128], strides = [1, 1]} : vector<64x128xf32> to vector<8x128xf32>
    %178 = arith.addf %176, %177 : vector<8x128xf32>
    %179 = vector.extract_strided_slice %175 {offsets = [8, 128], sizes = [8, 128], strides = [1, 1]} : vector<16x256xf32> to vector<8x128xf32>
    %180 = vector.extract_strided_slice %13 {offsets = [8, 0], sizes = [8, 128], strides = [1, 1]} : vector<64x128xf32> to vector<8x128xf32>
    %181 = arith.addf %179, %180 : vector<8x128xf32>
    %182 = tpu.concatenate %178, %181 in 0 : vector<8x128xf32>, vector<8x128xf32> -> vector<16x128xf32>
    %183 = arith.negf %182 : vector<16x128xf32>
    %184 = math.exp %183 : vector<16x128xf32>
    %cst_36 = arith.constant 1.000000e+00 : f32
    %185 = vector.broadcast %cst_36 : f32 to vector<16x128xf32>
    %186 = arith.addf %185, %184 : vector<16x128xf32>
    %187 = arith.divf %185, %186 : vector<16x128xf32>
    %188 = math.tanh %182 : vector<16x128xf32>
    %189 = vector.extract_strided_slice %187 {offsets = [0, 0], sizes = [16, 32], strides = [1, 1]} : vector<16x128xf32> to vector<16x32xf32>
    %190 = vector.extract_strided_slice %187 {offsets = [0, 32], sizes = [16, 32], strides = [1, 1]} : vector<16x128xf32> to vector<16x32xf32>
    %191 = vector.extract_strided_slice %188 {offsets = [0, 64], sizes = [16, 32], strides = [1, 1]} : vector<16x128xf32> to vector<16x32xf32>
    %192 = vector.extract_strided_slice %187 {offsets = [0, 96], sizes = [16, 32], strides = [1, 1]} : vector<16x128xf32> to vector<16x32xf32>
    %193 = arith.mulf %190, %170 : vector<16x32xf32>
    %194 = arith.mulf %189, %191 : vector<16x32xf32>
    %195 = arith.addf %193, %194 : vector<16x32xf32>
    %196 = math.tanh %195 : vector<16x32xf32>
    %197 = arith.mulf %192, %196 : vector<16x32xf32>
    %198 = vector.extract_strided_slice %197 {offsets = [0, 0], sizes = [8, 32], strides = [1, 1]} : vector<16x32xf32> to vector<8x32xf32>
    %199 = vector.extract_strided_slice %197 {offsets = [8, 0], sizes = [8, 32], strides = [1, 1]} : vector<16x32xf32> to vector<8x32xf32>
    %cst_37 = arith.constant dense<0.000000e+00> : vector<16x256xf32>
    %200 = tpu.matmul %197, %14, %cst_37 {dimension_numbers = #tpu.dot_dimension_numbers<[1], [0], [0], [1], [0, 0, 1, 1], [], []>} : vector<16x32xf32>, vector<32x256xf32>, vector<16x256xf32> -> vector<16x256xf32>
    %201 = vector.extract_strided_slice %200 {offsets = [0, 0], sizes = [8, 128], strides = [1, 1]} : vector<16x256xf32> to vector<8x128xf32>
    %202 = vector.extract_strided_slice %12 {offsets = [56, 0], sizes = [8, 128], strides = [1, 1]} : vector<64x128xf32> to vector<8x128xf32>
    %203 = arith.addf %201, %202 : vector<8x128xf32>
    %204 = vector.extract_strided_slice %200 {offsets = [8, 128], sizes = [8, 128], strides = [1, 1]} : vector<16x256xf32> to vector<8x128xf32>
    %205 = vector.extract_strided_slice %13 {offsets = [0, 0], sizes = [8, 128], strides = [1, 1]} : vector<64x128xf32> to vector<8x128xf32>
    %206 = arith.addf %204, %205 : vector<8x128xf32>
    %207 = tpu.concatenate %203, %206 in 0 : vector<8x128xf32>, vector<8x128xf32> -> vector<16x128xf32>
    %208 = arith.negf %207 : vector<16x128xf32>
    %209 = math.exp %208 : vector<16x128xf32>
    %cst_38 = arith.constant 1.000000e+00 : f32
    %210 = vector.broadcast %cst_38 : f32 to vector<16x128xf32>
    %211 = arith.addf %210, %209 : vector<16x128xf32>
    %212 = arith.divf %210, %211 : vector<16x128xf32>
    %213 = math.tanh %207 : vector<16x128xf32>
    %214 = vector.extract_strided_slice %212 {offsets = [0, 0], sizes = [16, 32], strides = [1, 1]} : vector<16x128xf32> to vector<16x32xf32>
    %215 = vector.extract_strided_slice %212 {offsets = [0, 32], sizes = [16, 32], strides = [1, 1]} : vector<16x128xf32> to vector<16x32xf32>
    %216 = vector.extract_strided_slice %213 {offsets = [0, 64], sizes = [16, 32], strides = [1, 1]} : vector<16x128xf32> to vector<16x32xf32>
    %217 = vector.extract_strided_slice %212 {offsets = [0, 96], sizes = [16, 32], strides = [1, 1]} : vector<16x128xf32> to vector<16x32xf32>
    %218 = arith.mulf %215, %195 : vector<16x32xf32>
    %219 = arith.mulf %214, %216 : vector<16x32xf32>
    %220 = arith.addf %218, %219 : vector<16x32xf32>
    %221 = math.tanh %220 : vector<16x32xf32>
    %222 = arith.mulf %217, %221 : vector<16x32xf32>
    %223 = vector.extract_strided_slice %222 {offsets = [0, 0], sizes = [8, 32], strides = [1, 1]} : vector<16x32xf32> to vector<8x32xf32>
    %224 = vector.extract_strided_slice %222 {offsets = [8, 0], sizes = [8, 32], strides = [1, 1]} : vector<16x32xf32> to vector<8x32xf32>
    %225 = vector.extract_strided_slice %222 {offsets = [0, 0], sizes = [8, 32], strides = [1, 1]} : vector<16x32xf32> to vector<8x32xf32>
    %c0_39 = arith.constant 0 : index
    %c0_40 = arith.constant 0 : index
    %c0_41 = arith.constant 0 : index
    %226 = vector.load %arg12[%c0_39, %c0_40, %c0_41] : memref<4x8x32xf32, #tpu.memory_space<vmem>>, vector<1x8x32xf32>
    %227 = vector.shape_cast %226 : vector<1x8x32xf32> to vector<8x32xf32>
    %228 = vector.shape_cast %225 : vector<8x32xf32> to vector<1x8x32xf32>
    tpu.vector_store %arg12[%c0_39, %c0_40, %c0_41], %228 {strides = array<i32>} : memref<4x8x32xf32, #tpu.memory_space<vmem>>, vector<1x8x32xf32>,
    %229 = vector.extract_strided_slice %222 {offsets = [8, 0], sizes = [8, 32], strides = [1, 1]} : vector<16x32xf32> to vector<8x32xf32>
    %c1_42 = arith.constant 1 : index
    %c0_43 = arith.constant 0 : index
    %c0_44 = arith.constant 0 : index
    %230 = vector.load %arg12[%c1_42, %c0_43, %c0_44] : memref<4x8x32xf32, #tpu.memory_space<vmem>>, vector<1x8x32xf32>
    %231 = vector.shape_cast %230 : vector<1x8x32xf32> to vector<8x32xf32>
    %232 = vector.shape_cast %229 : vector<8x32xf32> to vector<1x8x32xf32>
    tpu.vector_store %arg12[%c1_42, %c0_43, %c0_44], %232 {strides = array<i32>} : memref<4x8x32xf32, #tpu.memory_space<vmem>>, vector<1x8x32xf32>,
    %233 = vector.extract_strided_slice %220 {offsets = [0, 0], sizes = [8, 32], strides = [1, 1]} : vector<16x32xf32> to vector<8x32xf32>
    %c0_45 = arith.constant 0 : index
    %c0_46 = arith.constant 0 : index
    %c0_47 = arith.constant 0 : index
    %234 = vector.load %arg13[%c0_45, %c0_46, %c0_47] : memref<4x8x32xf32, #tpu.memory_space<vmem>>, vector<1x8x32xf32>
    %235 = vector.shape_cast %234 : vector<1x8x32xf32> to vector<8x32xf32>
    %236 = vector.shape_cast %233 : vector<8x32xf32> to vector<1x8x32xf32>
    tpu.vector_store %arg13[%c0_45, %c0_46, %c0_47], %236 {strides = array<i32>} : memref<4x8x32xf32, #tpu.memory_space<vmem>>, vector<1x8x32xf32>,
    %237 = vector.extract_strided_slice %220 {offsets = [8, 0], sizes = [8, 32], strides = [1, 1]} : vector<16x32xf32> to vector<8x32xf32>
    %c1_48 = arith.constant 1 : index
    %c0_49 = arith.constant 0 : index
    %c0_50 = arith.constant 0 : index
    %238 = vector.load %arg13[%c1_48, %c0_49, %c0_50] : memref<4x8x32xf32, #tpu.memory_space<vmem>>, vector<1x8x32xf32>
    %239 = vector.shape_cast %238 : vector<1x8x32xf32> to vector<8x32xf32>
    %240 = vector.shape_cast %237 : vector<8x32xf32> to vector<1x8x32xf32>
    tpu.vector_store %arg13[%c1_48, %c0_49, %c0_50], %240 {strides = array<i32>} : memref<4x8x32xf32, #tpu.memory_space<vmem>>, vector<1x8x32xf32>,
    %241 = tpu.concatenate %48, %73, %98, %123, %148, %173, %198, %223 in 0 : vector<8x32xf32>, vector<8x32xf32>, vector<8x32xf32>, vector<8x32xf32>, vector<8x32xf32>, vector<8x32xf32>, vector<8x32xf32>, vector<8x32xf32> -> vector<64x32xf32>
    %242 = tpu.concatenate %224, %199, %174, %149, %124, %99, %74, %49 in 0 : vector<8x32xf32>, vector<8x32xf32>, vector<8x32xf32>, vector<8x32xf32>, vector<8x32xf32>, vector<8x32xf32>, vector<8x32xf32>, vector<8x32xf32> -> vector<64x32xf32>
    %243 = tpu.concatenate %241, %242 in 1 : vector<64x32xf32>, vector<64x32xf32> -> vector<64x64xf32>
    %244 = arith.truncf %243 : vector<64x64xf32> to vector<64x64xbf16>
    %c0_51 = arith.constant 0 : index
    %c0_52 = arith.constant 0 : index
    %245 = vector.load %arg8[%c0_51, %c0_52] : memref<64x256xbf16, #tpu.memory_space<vmem>>, vector<64x256xbf16>
    %cst_53 = arith.constant dense<0.000000e+00> : vector<64x256xf32>
    %246 = tpu.matmul %244, %245, %cst_53 {dimension_numbers = #tpu.dot_dimension_numbers<[1], [0], [0], [1], [0, 0, 1, 1], [], []>} : vector<64x64xbf16>, vector<64x256xbf16>, vector<64x256xf32> -> vector<64x256xf32>
    %c0_54 = arith.constant 0 : index
    %c0_55 = arith.constant 0 : index
    %247 = vector.load %arg10[%c0_54, %c0_55] : memref<1x256xf32, #tpu.memory_space<vmem>>, vector<1x256xf32>
    %248 = vector.broadcast %247 : vector<1x256xf32> to vector<64x256xf32>
    %249 = arith.addf %246, %248 : vector<64x256xf32>
    %250 = vector.extract_strided_slice %249 {offsets = [0, 0], sizes = [64, 128], strides = [1, 1]} : vector<64x256xf32> to vector<64x128xf32>
    %251 = vector.extract_strided_slice %249 {offsets = [0, 128], sizes = [64, 128], strides = [1, 1]} : vector<64x256xf32> to vector<64x128xf32>
    %c0_56 = arith.constant 0 : index
    %c0_57 = arith.constant 0 : index
    %252 = vector.load %arg9[%c0_56, %c0_57] : memref<32x256xf32, #tpu.memory_space<vmem>>, vector<32x256xf32>
    %c2 = arith.constant 2 : index
    %c0_58 = arith.constant 0 : index
    %c0_59 = arith.constant 0 : index
    %253 = vector.load %arg3[%c2, %c0_58, %c0_59] : memref<4x8x32xf32, #tpu.memory_space<vmem>>, vector<1x8x32xf32>
    %254 = vector.shape_cast %253 : vector<1x8x32xf32> to vector<8x32xf32>
    %c3 = arith.constant 3 : index
    %c0_60 = arith.constant 0 : index
    %c0_61 = arith.constant 0 : index
    %255 = vector.load %arg3[%c3, %c0_60, %c0_61] : memref<4x8x32xf32, #tpu.memory_space<vmem>>, vector<1x8x32xf32>
    %256 = vector.shape_cast %255 : vector<1x8x32xf32> to vector<8x32xf32>
    %257 = tpu.concatenate %254, %256 in 0 : vector<8x32xf32>, vector<8x32xf32> -> vector<16x32xf32>
    %c2_62 = arith.constant 2 : index
    %c0_63 = arith.constant 0 : index
    %c0_64 = arith.constant 0 : index
    %258 = vector.load %arg4[%c2_62, %c0_63, %c0_64] : memref<4x8x32xf32, #tpu.memory_space<vmem>>, vector<1x8x32xf32>
    %259 = vector.shape_cast %258 : vector<1x8x32xf32> to vector<8x32xf32>
    %c3_65 = arith.constant 3 : index
    %c0_66 = arith.constant 0 : index
    %c0_67 = arith.constant 0 : index
    %260 = vector.load %arg4[%c3_65, %c0_66, %c0_67] : memref<4x8x32xf32, #tpu.memory_space<vmem>>, vector<1x8x32xf32>
    %261 = vector.shape_cast %260 : vector<1x8x32xf32> to vector<8x32xf32>
    %262 = tpu.concatenate %259, %261 in 0 : vector<8x32xf32>, vector<8x32xf32> -> vector<16x32xf32>
    %cst_68 = arith.constant dense<0.000000e+00> : vector<16x256xf32>
    %263 = tpu.matmul %257, %252, %cst_68 {dimension_numbers = #tpu.dot_dimension_numbers<[1], [0], [0], [1], [0, 0, 1, 1], [], []>} : vector<16x32xf32>, vector<32x256xf32>, vector<16x256xf32> -> vector<16x256xf32>
    %264 = vector.extract_strided_slice %263 {offsets = [0, 0], sizes = [8, 128], strides = [1, 1]} : vector<16x256xf32> to vector<8x128xf32>
    %265 = vector.extract_strided_slice %250 {offsets = [0, 0], sizes = [8, 128], strides = [1, 1]} : vector<64x128xf32> to vector<8x128xf32>
    %266 = arith.addf %264, %265 : vector<8x128xf32>
    %267 = vector.extract_strided_slice %263 {offsets = [8, 128], sizes = [8, 128], strides = [1, 1]} : vector<16x256xf32> to vector<8x128xf32>
    %268 = vector.extract_strided_slice %251 {offsets = [56, 0], sizes = [8, 128], strides = [1, 1]} : vector<64x128xf32> to vector<8x128xf32>
    %269 = arith.addf %267, %268 : vector<8x128xf32>
    %270 = tpu.concatenate %266, %269 in 0 : vector<8x128xf32>, vector<8x128xf32> -> vector<16x128xf32>
    %271 = arith.negf %270 : vector<16x128xf32>
    %272 = math.exp %271 : vector<16x128xf32>
    %cst_69 = arith.constant 1.000000e+00 : f32
    %273 = vector.broadcast %cst_69 : f32 to vector<16x128xf32>
    %274 = arith.addf %273, %272 : vector<16x128xf32>
    %275 = arith.divf %273, %274 : vector<16x128xf32>
    %276 = math.tanh %270 : vector<16x128xf32>
    %277 = vector.extract_strided_slice %275 {offsets = [0, 0], sizes = [16, 32], strides = [1, 1]} : vector<16x128xf32> to vector<16x32xf32>
    %278 = vector.extract_strided_slice %275 {offsets = [0, 32], sizes = [16, 32], strides = [1, 1]} : vector<16x128xf32> to vector<16x32xf32>
    %279 = vector.extract_strided_slice %276 {offsets = [0, 64], sizes = [16, 32], strides = [1, 1]} : vector<16x128xf32> to vector<16x32xf32>
    %280 = vector.extract_strided_slice %275 {offsets = [0, 96], sizes = [16, 32], strides = [1, 1]} : vector<16x128xf32> to vector<16x32xf32>
    %281 = arith.mulf %278, %262 : vector<16x32xf32>
    %282 = arith.mulf %277, %279 : vector<16x32xf32>
    %283 = arith.addf %281, %282 : vector<16x32xf32>
    %284 = math.tanh %283 : vector<16x32xf32>
    %285 = arith.mulf %280, %284 : vector<16x32xf32>
    %286 = vector.extract_strided_slice %285 {offsets = [0, 0], sizes = [8, 32], strides = [1, 1]} : vector<16x32xf32> to vector<8x32xf32>
    %287 = vector.extract_strided_slice %285 {offsets = [8, 0], sizes = [8, 32], strides = [1, 1]} : vector<16x32xf32> to vector<8x32xf32>
    %cst_70 = arith.constant dense<0.000000e+00> : vector<16x256xf32>
    %288 = tpu.matmul %285, %252, %cst_70 {dimension_numbers = #tpu.dot_dimension_numbers<[1], [0], [0], [1], [0, 0, 1, 1], [], []>} : vector<16x32xf32>, vector<32x256xf32>, vector<16x256xf32> -> vector<16x256xf32>
    %289 = vector.extract_strided_slice %288 {offsets = [0, 0], sizes = [8, 128], strides = [1, 1]} : vector<16x256xf32> to vector<8x128xf32>
    %290 = vector.extract_strided_slice %250 {offsets = [8, 0], sizes = [8, 128], strides = [1, 1]} : vector<64x128xf32> to vector<8x128xf32>
    %291 = arith.addf %289, %290 : vector<8x128xf32>
    %292 = vector.extract_strided_slice %288 {offsets = [8, 128], sizes = [8, 128], strides = [1, 1]} : vector<16x256xf32> to vector<8x128xf32>
    %293 = vector.extract_strided_slice %251 {offsets = [48, 0], sizes = [8, 128], strides = [1, 1]} : vector<64x128xf32> to vector<8x128xf32>
    %294 = arith.addf %292, %293 : vector<8x128xf32>
    %295 = tpu.concatenate %291, %294 in 0 : vector<8x128xf32>, vector<8x128xf32> -> vector<16x128xf32>
    %296 = arith.negf %295 : vector<16x128xf32>
    %297 = math.exp %296 : vector<16x128xf32>
    %cst_71 = arith.constant 1.000000e+00 : f32
    %298 = vector.broadcast %cst_71 : f32 to vector<16x128xf32>
    %299 = arith.addf %298, %297 : vector<16x128xf32>
    %300 = arith.divf %298, %299 : vector<16x128xf32>
    %301 = math.tanh %295 : vector<16x128xf32>
    %302 = vector.extract_strided_slice %300 {offsets = [0, 0], sizes = [16, 32], strides = [1, 1]} : vector<16x128xf32> to vector<16x32xf32>
    %303 = vector.extract_strided_slice %300 {offsets = [0, 32], sizes = [16, 32], strides = [1, 1]} : vector<16x128xf32> to vector<16x32xf32>
    %304 = vector.extract_strided_slice %301 {offsets = [0, 64], sizes = [16, 32], strides = [1, 1]} : vector<16x128xf32> to vector<16x32xf32>
    %305 = vector.extract_strided_slice %300 {offsets = [0, 96], sizes = [16, 32], strides = [1, 1]} : vector<16x128xf32> to vector<16x32xf32>
    %306 = arith.mulf %303, %283 : vector<16x32xf32>
    %307 = arith.mulf %302, %304 : vector<16x32xf32>
    %308 = arith.addf %306, %307 : vector<16x32xf32>
    %309 = math.tanh %308 : vector<16x32xf32>
    %310 = arith.mulf %305, %309 : vector<16x32xf32>
    %311 = vector.extract_strided_slice %310 {offsets = [0, 0], sizes = [8, 32], strides = [1, 1]} : vector<16x32xf32> to vector<8x32xf32>
    %312 = vector.extract_strided_slice %310 {offsets = [8, 0], sizes = [8, 32], strides = [1, 1]} : vector<16x32xf32> to vector<8x32xf32>
    %cst_72 = arith.constant dense<0.000000e+00> : vector<16x256xf32>
    %313 = tpu.matmul %310, %252, %cst_72 {dimension_numbers = #tpu.dot_dimension_numbers<[1], [0], [0], [1], [0, 0, 1, 1], [], []>} : vector<16x32xf32>, vector<32x256xf32>, vector<16x256xf32> -> vector<16x256xf32>
    %314 = vector.extract_strided_slice %313 {offsets = [0, 0], sizes = [8, 128], strides = [1, 1]} : vector<16x256xf32> to vector<8x128xf32>
    %315 = vector.extract_strided_slice %250 {offsets = [16, 0], sizes = [8, 128], strides = [1, 1]} : vector<64x128xf32> to vector<8x128xf32>
    %316 = arith.addf %314, %315 : vector<8x128xf32>
    %317 = vector.extract_strided_slice %313 {offsets = [8, 128], sizes = [8, 128], strides = [1, 1]} : vector<16x256xf32> to vector<8x128xf32>
    %318 = vector.extract_strided_slice %251 {offsets = [40, 0], sizes = [8, 128], strides = [1, 1]} : vector<64x128xf32> to vector<8x128xf32>
    %319 = arith.addf %317, %318 : vector<8x128xf32>
    %320 = tpu.concatenate %316, %319 in 0 : vector<8x128xf32>, vector<8x128xf32> -> vector<16x128xf32>
    %321 = arith.negf %320 : vector<16x128xf32>
    %322 = math.exp %321 : vector<16x128xf32>
    %cst_73 = arith.constant 1.000000e+00 : f32
    %323 = vector.broadcast %cst_73 : f32 to vector<16x128xf32>
    %324 = arith.addf %323, %322 : vector<16x128xf32>
    %325 = arith.divf %323, %324 : vector<16x128xf32>
    %326 = math.tanh %320 : vector<16x128xf32>
    %327 = vector.extract_strided_slice %325 {offsets = [0, 0], sizes = [16, 32], strides = [1, 1]} : vector<16x128xf32> to vector<16x32xf32>
    %328 = vector.extract_strided_slice %325 {offsets = [0, 32], sizes = [16, 32], strides = [1, 1]} : vector<16x128xf32> to vector<16x32xf32>
    %329 = vector.extract_strided_slice %326 {offsets = [0, 64], sizes = [16, 32], strides = [1, 1]} : vector<16x128xf32> to vector<16x32xf32>
    %330 = vector.extract_strided_slice %325 {offsets = [0, 96], sizes = [16, 32], strides = [1, 1]} : vector<16x128xf32> to vector<16x32xf32>
    %331 = arith.mulf %328, %308 : vector<16x32xf32>
    %332 = arith.mulf %327, %329 : vector<16x32xf32>
    %333 = arith.addf %331, %332 : vector<16x32xf32>
    %334 = math.tanh %333 : vector<16x32xf32>
    %335 = arith.mulf %330, %334 : vector<16x32xf32>
    %336 = vector.extract_strided_slice %335 {offsets = [0, 0], sizes = [8, 32], strides = [1, 1]} : vector<16x32xf32> to vector<8x32xf32>
    %337 = vector.extract_strided_slice %335 {offsets = [8, 0], sizes = [8, 32], strides = [1, 1]} : vector<16x32xf32> to vector<8x32xf32>
    %cst_74 = arith.constant dense<0.000000e+00> : vector<16x256xf32>
    %338 = tpu.matmul %335, %252, %cst_74 {dimension_numbers = #tpu.dot_dimension_numbers<[1], [0], [0], [1], [0, 0, 1, 1], [], []>} : vector<16x32xf32>, vector<32x256xf32>, vector<16x256xf32> -> vector<16x256xf32>
    %339 = vector.extract_strided_slice %338 {offsets = [0, 0], sizes = [8, 128], strides = [1, 1]} : vector<16x256xf32> to vector<8x128xf32>
    %340 = vector.extract_strided_slice %250 {offsets = [24, 0], sizes = [8, 128], strides = [1, 1]} : vector<64x128xf32> to vector<8x128xf32>
    %341 = arith.addf %339, %340 : vector<8x128xf32>
    %342 = vector.extract_strided_slice %338 {offsets = [8, 128], sizes = [8, 128], strides = [1, 1]} : vector<16x256xf32> to vector<8x128xf32>
    %343 = vector.extract_strided_slice %251 {offsets = [32, 0], sizes = [8, 128], strides = [1, 1]} : vector<64x128xf32> to vector<8x128xf32>
    %344 = arith.addf %342, %343 : vector<8x128xf32>
    %345 = tpu.concatenate %341, %344 in 0 : vector<8x128xf32>, vector<8x128xf32> -> vector<16x128xf32>
    %346 = arith.negf %345 : vector<16x128xf32>
    %347 = math.exp %346 : vector<16x128xf32>
    %cst_75 = arith.constant 1.000000e+00 : f32
    %348 = vector.broadcast %cst_75 : f32 to vector<16x128xf32>
    %349 = arith.addf %348, %347 : vector<16x128xf32>
    %350 = arith.divf %348, %349 : vector<16x128xf32>
    %351 = math.tanh %345 : vector<16x128xf32>
    %352 = vector.extract_strided_slice %350 {offsets = [0, 0], sizes = [16, 32], strides = [1, 1]} : vector<16x128xf32> to vector<16x32xf32>
    %353 = vector.extract_strided_slice %350 {offsets = [0, 32], sizes = [16, 32], strides = [1, 1]} : vector<16x128xf32> to vector<16x32xf32>
    %354 = vector.extract_strided_slice %351 {offsets = [0, 64], sizes = [16, 32], strides = [1, 1]} : vector<16x128xf32> to vector<16x32xf32>
    %355 = vector.extract_strided_slice %350 {offsets = [0, 96], sizes = [16, 32], strides = [1, 1]} : vector<16x128xf32> to vector<16x32xf32>
    %356 = arith.mulf %353, %333 : vector<16x32xf32>
    %357 = arith.mulf %352, %354 : vector<16x32xf32>
    %358 = arith.addf %356, %357 : vector<16x32xf32>
    %359 = math.tanh %358 : vector<16x32xf32>
    %360 = arith.mulf %355, %359 : vector<16x32xf32>
    %361 = vector.extract_strided_slice %360 {offsets = [0, 0], sizes = [8, 32], strides = [1, 1]} : vector<16x32xf32> to vector<8x32xf32>
    %362 = vector.extract_strided_slice %360 {offsets = [8, 0], sizes = [8, 32], strides = [1, 1]} : vector<16x32xf32> to vector<8x32xf32>
    %cst_76 = arith.constant dense<0.000000e+00> : vector<16x256xf32>
    %363 = tpu.matmul %360, %252, %cst_76 {dimension_numbers = #tpu.dot_dimension_numbers<[1], [0], [0], [1], [0, 0, 1, 1], [], []>} : vector<16x32xf32>, vector<32x256xf32>, vector<16x256xf32> -> vector<16x256xf32>
    %364 = vector.extract_strided_slice %363 {offsets = [0, 0], sizes = [8, 128], strides = [1, 1]} : vector<16x256xf32> to vector<8x128xf32>
    %365 = vector.extract_strided_slice %250 {offsets = [32, 0], sizes = [8, 128], strides = [1, 1]} : vector<64x128xf32> to vector<8x128xf32>
    %366 = arith.addf %364, %365 : vector<8x128xf32>
    %367 = vector.extract_strided_slice %363 {offsets = [8, 128], sizes = [8, 128], strides = [1, 1]} : vector<16x256xf32> to vector<8x128xf32>
    %368 = vector.extract_strided_slice %251 {offsets = [24, 0], sizes = [8, 128], strides = [1, 1]} : vector<64x128xf32> to vector<8x128xf32>
    %369 = arith.addf %367, %368 : vector<8x128xf32>
    %370 = tpu.concatenate %366, %369 in 0 : vector<8x128xf32>, vector<8x128xf32> -> vector<16x128xf32>
    %371 = arith.negf %370 : vector<16x128xf32>
    %372 = math.exp %371 : vector<16x128xf32>
    %cst_77 = arith.constant 1.000000e+00 : f32
    %373 = vector.broadcast %cst_77 : f32 to vector<16x128xf32>
    %374 = arith.addf %373, %372 : vector<16x128xf32>
    %375 = arith.divf %373, %374 : vector<16x128xf32>
    %376 = math.tanh %370 : vector<16x128xf32>
    %377 = vector.extract_strided_slice %375 {offsets = [0, 0], sizes = [16, 32], strides = [1, 1]} : vector<16x128xf32> to vector<16x32xf32>
    %378 = vector.extract_strided_slice %375 {offsets = [0, 32], sizes = [16, 32], strides = [1, 1]} : vector<16x128xf32> to vector<16x32xf32>
    %379 = vector.extract_strided_slice %376 {offsets = [0, 64], sizes = [16, 32], strides = [1, 1]} : vector<16x128xf32> to vector<16x32xf32>
    %380 = vector.extract_strided_slice %375 {offsets = [0, 96], sizes = [16, 32], strides = [1, 1]} : vector<16x128xf32> to vector<16x32xf32>
    %381 = arith.mulf %378, %358 : vector<16x32xf32>
    %382 = arith.mulf %377, %379 : vector<16x32xf32>
    %383 = arith.addf %381, %382 : vector<16x32xf32>
    %384 = math.tanh %383 : vector<16x32xf32>
    %385 = arith.mulf %380, %384 : vector<16x32xf32>
    %386 = vector.extract_strided_slice %385 {offsets = [0, 0], sizes = [8, 32], strides = [1, 1]} : vector<16x32xf32> to vector<8x32xf32>
    %387 = vector.extract_strided_slice %385 {offsets = [8, 0], sizes = [8, 32], strides = [1, 1]} : vector<16x32xf32> to vector<8x32xf32>
    %cst_78 = arith.constant dense<0.000000e+00> : vector<16x256xf32>
    %388 = tpu.matmul %385, %252, %cst_78 {dimension_numbers = #tpu.dot_dimension_numbers<[1], [0], [0], [1], [0, 0, 1, 1], [], []>} : vector<16x32xf32>, vector<32x256xf32>, vector<16x256xf32> -> vector<16x256xf32>
    %389 = vector.extract_strided_slice %388 {offsets = [0, 0], sizes = [8, 128], strides = [1, 1]} : vector<16x256xf32> to vector<8x128xf32>
    %390 = vector.extract_strided_slice %250 {offsets = [40, 0], sizes = [8, 128], strides = [1, 1]} : vector<64x128xf32> to vector<8x128xf32>
    %391 = arith.addf %389, %390 : vector<8x128xf32>
    %392 = vector.extract_strided_slice %388 {offsets = [8, 128], sizes = [8, 128], strides = [1, 1]} : vector<16x256xf32> to vector<8x128xf32>
    %393 = vector.extract_strided_slice %251 {offsets = [16, 0], sizes = [8, 128], strides = [1, 1]} : vector<64x128xf32> to vector<8x128xf32>
    %394 = arith.addf %392, %393 : vector<8x128xf32>
    %395 = tpu.concatenate %391, %394 in 0 : vector<8x128xf32>, vector<8x128xf32> -> vector<16x128xf32>
    %396 = arith.negf %395 : vector<16x128xf32>
    %397 = math.exp %396 : vector<16x128xf32>
    %cst_79 = arith.constant 1.000000e+00 : f32
    %398 = vector.broadcast %cst_79 : f32 to vector<16x128xf32>
    %399 = arith.addf %398, %397 : vector<16x128xf32>
    %400 = arith.divf %398, %399 : vector<16x128xf32>
    %401 = math.tanh %395 : vector<16x128xf32>
    %402 = vector.extract_strided_slice %400 {offsets = [0, 0], sizes = [16, 32], strides = [1, 1]} : vector<16x128xf32> to vector<16x32xf32>
    %403 = vector.extract_strided_slice %400 {offsets = [0, 32], sizes = [16, 32], strides = [1, 1]} : vector<16x128xf32> to vector<16x32xf32>
    %404 = vector.extract_strided_slice %401 {offsets = [0, 64], sizes = [16, 32], strides = [1, 1]} : vector<16x128xf32> to vector<16x32xf32>
    %405 = vector.extract_strided_slice %400 {offsets = [0, 96], sizes = [16, 32], strides = [1, 1]} : vector<16x128xf32> to vector<16x32xf32>
    %406 = arith.mulf %403, %383 : vector<16x32xf32>
    %407 = arith.mulf %402, %404 : vector<16x32xf32>
    %408 = arith.addf %406, %407 : vector<16x32xf32>
    %409 = math.tanh %408 : vector<16x32xf32>
    %410 = arith.mulf %405, %409 : vector<16x32xf32>
    %411 = vector.extract_strided_slice %410 {offsets = [0, 0], sizes = [8, 32], strides = [1, 1]} : vector<16x32xf32> to vector<8x32xf32>
    %412 = vector.extract_strided_slice %410 {offsets = [8, 0], sizes = [8, 32], strides = [1, 1]} : vector<16x32xf32> to vector<8x32xf32>
    %cst_80 = arith.constant dense<0.000000e+00> : vector<16x256xf32>
    %413 = tpu.matmul %410, %252, %cst_80 {dimension_numbers = #tpu.dot_dimension_numbers<[1], [0], [0], [1], [0, 0, 1, 1], [], []>} : vector<16x32xf32>, vector<32x256xf32>, vector<16x256xf32> -> vector<16x256xf32>
    %414 = vector.extract_strided_slice %413 {offsets = [0, 0], sizes = [8, 128], strides = [1, 1]} : vector<16x256xf32> to vector<8x128xf32>
    %415 = vector.extract_strided_slice %250 {offsets = [48, 0], sizes = [8, 128], strides = [1, 1]} : vector<64x128xf32> to vector<8x128xf32>
    %416 = arith.addf %414, %415 : vector<8x128xf32>
    %417 = vector.extract_strided_slice %413 {offsets = [8, 128], sizes = [8, 128], strides = [1, 1]} : vector<16x256xf32> to vector<8x128xf32>
    %418 = vector.extract_strided_slice %251 {offsets = [8, 0], sizes = [8, 128], strides = [1, 1]} : vector<64x128xf32> to vector<8x128xf32>
    %419 = arith.addf %417, %418 : vector<8x128xf32>
    %420 = tpu.concatenate %416, %419 in 0 : vector<8x128xf32>, vector<8x128xf32> -> vector<16x128xf32>
    %421 = arith.negf %420 : vector<16x128xf32>
    %422 = math.exp %421 : vector<16x128xf32>
    %cst_81 = arith.constant 1.000000e+00 : f32
    %423 = vector.broadcast %cst_81 : f32 to vector<16x128xf32>
    %424 = arith.addf %423, %422 : vector<16x128xf32>
    %425 = arith.divf %423, %424 : vector<16x128xf32>
    %426 = math.tanh %420 : vector<16x128xf32>
    %427 = vector.extract_strided_slice %425 {offsets = [0, 0], sizes = [16, 32], strides = [1, 1]} : vector<16x128xf32> to vector<16x32xf32>
    %428 = vector.extract_strided_slice %425 {offsets = [0, 32], sizes = [16, 32], strides = [1, 1]} : vector<16x128xf32> to vector<16x32xf32>
    %429 = vector.extract_strided_slice %426 {offsets = [0, 64], sizes = [16, 32], strides = [1, 1]} : vector<16x128xf32> to vector<16x32xf32>
    %430 = vector.extract_strided_slice %425 {offsets = [0, 96], sizes = [16, 32], strides = [1, 1]} : vector<16x128xf32> to vector<16x32xf32>
    %431 = arith.mulf %428, %408 : vector<16x32xf32>
    %432 = arith.mulf %427, %429 : vector<16x32xf32>
    %433 = arith.addf %431, %432 : vector<16x32xf32>
    %434 = math.tanh %433 : vector<16x32xf32>
    %435 = arith.mulf %430, %434 : vector<16x32xf32>
    %436 = vector.extract_strided_slice %435 {offsets = [0, 0], sizes = [8, 32], strides = [1, 1]} : vector<16x32xf32> to vector<8x32xf32>
    %437 = vector.extract_strided_slice %435 {offsets = [8, 0], sizes = [8, 32], strides = [1, 1]} : vector<16x32xf32> to vector<8x32xf32>
    %cst_82 = arith.constant dense<0.000000e+00> : vector<16x256xf32>
    %438 = tpu.matmul %435, %252, %cst_82 {dimension_numbers = #tpu.dot_dimension_numbers<[1], [0], [0], [1], [0, 0, 1, 1], [], []>} : vector<16x32xf32>, vector<32x256xf32>, vector<16x256xf32> -> vector<16x256xf32>
    %439 = vector.extract_strided_slice %438 {offsets = [0, 0], sizes = [8, 128], strides = [1, 1]} : vector<16x256xf32> to vector<8x128xf32>
    %440 = vector.extract_strided_slice %250 {offsets = [56, 0], sizes = [8, 128], strides = [1, 1]} : vector<64x128xf32> to vector<8x128xf32>
    %441 = arith.addf %439, %440 : vector<8x128xf32>
    %442 = vector.extract_strided_slice %438 {offsets = [8, 128], sizes = [8, 128], strides = [1, 1]} : vector<16x256xf32> to vector<8x128xf32>
    %443 = vector.extract_strided_slice %251 {offsets = [0, 0], sizes = [8, 128], strides = [1, 1]} : vector<64x128xf32> to vector<8x128xf32>
    %444 = arith.addf %442, %443 : vector<8x128xf32>
    %445 = tpu.concatenate %441, %444 in 0 : vector<8x128xf32>, vector<8x128xf32> -> vector<16x128xf32>
    %446 = arith.negf %445 : vector<16x128xf32>
    %447 = math.exp %446 : vector<16x128xf32>
    %cst_83 = arith.constant 1.000000e+00 : f32
    %448 = vector.broadcast %cst_83 : f32 to vector<16x128xf32>
    %449 = arith.addf %448, %447 : vector<16x128xf32>
    %450 = arith.divf %448, %449 : vector<16x128xf32>
    %451 = math.tanh %445 : vector<16x128xf32>
    %452 = vector.extract_strided_slice %450 {offsets = [0, 0], sizes = [16, 32], strides = [1, 1]} : vector<16x128xf32> to vector<16x32xf32>
    %453 = vector.extract_strided_slice %450 {offsets = [0, 32], sizes = [16, 32], strides = [1, 1]} : vector<16x128xf32> to vector<16x32xf32>
    %454 = vector.extract_strided_slice %451 {offsets = [0, 64], sizes = [16, 32], strides = [1, 1]} : vector<16x128xf32> to vector<16x32xf32>
    %455 = vector.extract_strided_slice %450 {offsets = [0, 96], sizes = [16, 32], strides = [1, 1]} : vector<16x128xf32> to vector<16x32xf32>
    %456 = arith.mulf %453, %433 : vector<16x32xf32>
    %457 = arith.mulf %452, %454 : vector<16x32xf32>
    %458 = arith.addf %456, %457 : vector<16x32xf32>
    %459 = math.tanh %458 : vector<16x32xf32>
    %460 = arith.mulf %455, %459 : vector<16x32xf32>
    %461 = vector.extract_strided_slice %460 {offsets = [0, 0], sizes = [8, 32], strides = [1, 1]} : vector<16x32xf32> to vector<8x32xf32>
    %462 = vector.extract_strided_slice %460 {offsets = [8, 0], sizes = [8, 32], strides = [1, 1]} : vector<16x32xf32> to vector<8x32xf32>
    %463 = vector.extract_strided_slice %460 {offsets = [0, 0], sizes = [8, 32], strides = [1, 1]} : vector<16x32xf32> to vector<8x32xf32>
    %c2_84 = arith.constant 2 : index
    %c0_85 = arith.constant 0 : index
    %c0_86 = arith.constant 0 : index
    %464 = vector.load %arg12[%c2_84, %c0_85, %c0_86] : memref<4x8x32xf32, #tpu.memory_space<vmem>>, vector<1x8x32xf32>
    %465 = vector.shape_cast %464 : vector<1x8x32xf32> to vector<8x32xf32>
    %466 = vector.shape_cast %463 : vector<8x32xf32> to vector<1x8x32xf32>
    tpu.vector_store %arg12[%c2_84, %c0_85, %c0_86], %466 {strides = array<i32>} : memref<4x8x32xf32, #tpu.memory_space<vmem>>, vector<1x8x32xf32>,
    %467 = vector.extract_strided_slice %460 {offsets = [8, 0], sizes = [8, 32], strides = [1, 1]} : vector<16x32xf32> to vector<8x32xf32>
    %c3_87 = arith.constant 3 : index
    %c0_88 = arith.constant 0 : index
    %c0_89 = arith.constant 0 : index
    %468 = vector.load %arg12[%c3_87, %c0_88, %c0_89] : memref<4x8x32xf32, #tpu.memory_space<vmem>>, vector<1x8x32xf32>
    %469 = vector.shape_cast %468 : vector<1x8x32xf32> to vector<8x32xf32>
    %470 = vector.shape_cast %467 : vector<8x32xf32> to vector<1x8x32xf32>
    tpu.vector_store %arg12[%c3_87, %c0_88, %c0_89], %470 {strides = array<i32>} : memref<4x8x32xf32, #tpu.memory_space<vmem>>, vector<1x8x32xf32>,
    %471 = vector.extract_strided_slice %458 {offsets = [0, 0], sizes = [8, 32], strides = [1, 1]} : vector<16x32xf32> to vector<8x32xf32>
    %c2_90 = arith.constant 2 : index
    %c0_91 = arith.constant 0 : index
    %c0_92 = arith.constant 0 : index
    %472 = vector.load %arg13[%c2_90, %c0_91, %c0_92] : memref<4x8x32xf32, #tpu.memory_space<vmem>>, vector<1x8x32xf32>
    %473 = vector.shape_cast %472 : vector<1x8x32xf32> to vector<8x32xf32>
    %474 = vector.shape_cast %471 : vector<8x32xf32> to vector<1x8x32xf32>
    tpu.vector_store %arg13[%c2_90, %c0_91, %c0_92], %474 {strides = array<i32>} : memref<4x8x32xf32, #tpu.memory_space<vmem>>, vector<1x8x32xf32>,
    %475 = vector.extract_strided_slice %458 {offsets = [8, 0], sizes = [8, 32], strides = [1, 1]} : vector<16x32xf32> to vector<8x32xf32>
    %c3_93 = arith.constant 3 : index
    %c0_94 = arith.constant 0 : index
    %c0_95 = arith.constant 0 : index
    %476 = vector.load %arg13[%c3_93, %c0_94, %c0_95] : memref<4x8x32xf32, #tpu.memory_space<vmem>>, vector<1x8x32xf32>
    %477 = vector.shape_cast %476 : vector<1x8x32xf32> to vector<8x32xf32>
    %478 = vector.shape_cast %475 : vector<8x32xf32> to vector<1x8x32xf32>
    tpu.vector_store %arg13[%c3_93, %c0_94, %c0_95], %478 {strides = array<i32>} : memref<4x8x32xf32, #tpu.memory_space<vmem>>, vector<1x8x32xf32>,
    %479 = tpu.concatenate %286, %311, %336, %361, %386, %411, %436, %461 in 0 : vector<8x32xf32>, vector<8x32xf32>, vector<8x32xf32>, vector<8x32xf32>, vector<8x32xf32>, vector<8x32xf32>, vector<8x32xf32>, vector<8x32xf32> -> vector<64x32xf32>
    %480 = tpu.concatenate %462, %437, %412, %387, %362, %337, %312, %287 in 0 : vector<8x32xf32>, vector<8x32xf32>, vector<8x32xf32>, vector<8x32xf32>, vector<8x32xf32>, vector<8x32xf32>, vector<8x32xf32>, vector<8x32xf32> -> vector<64x32xf32>
    %481 = tpu.concatenate %479, %480 in 1 : vector<64x32xf32>, vector<64x32xf32> -> vector<64x64xf32>
    %cst_96 = arith.constant 0.000000e+00 : f32
    %482 = vector.broadcast %cst_96 : f32 to vector<64x64xf32>
    %483 = tpu.concatenate %481, %482 in 1 : vector<64x64xf32>, vector<64x64xf32> -> vector<64x128xf32>
    %c0_97 = arith.constant 0 : index
    %c0_98 = arith.constant 0 : index
    %484 = vector.load %arg11[%c0_97, %c0_98] : memref<64x128xf32, #tpu.memory_space<vmem>>, vector<64x128xf32>
    tpu.vector_store %arg11[%c0_97, %c0_98], %483 {strides = array<i32>} : memref<64x128xf32, #tpu.memory_space<vmem>>, vector<64x128xf32>,
    return
  }
}

</mosaic_0001>

<llo_original>
// kernel: encoder_forward.1
$region0: #{encoder_forward.1}
  #allocation0 [shape = 'u32[]', space=smem, size = 0x4, offset = 0x4, fixed_abs, tag = 'smem constant byte address 0x4 - core index']
  #allocation1 [shape = 'u32[144,128]{1,0:T(1,128)}', space=vmem, size = 0x12000, scoped, tag = 'internal scratch']
  %s0 = inlined_call_operand.vmem [shape: bf16[64,16], index: 0, kind: input, shape index: {}]
  %s1 = inlined_call_operand.vmem [shape: bf16[16,32], index: 1, kind: input, shape index: {}]
  %s2 = inlined_call_operand.vmem [shape: f32[1,32], index: 2, kind: input, shape index: {}]
  %s3 = inlined_call_operand.vmem [shape: f32[4,8,32], index: 3, kind: input, shape index: {}]
  %s4 = inlined_call_operand.vmem [shape: f32[4,8,32], index: 4, kind: input, shape index: {}]
  %s5 = inlined_call_operand.vmem [shape: bf16[32,256], index: 5, kind: input, shape index: {}]
  %s6 = inlined_call_operand.vmem [shape: f32[32,256], index: 6, kind: input, shape index: {}]
  %s7 = inlined_call_operand.vmem [shape: f32[1,256], index: 7, kind: input, shape index: {}]
  %s8 = inlined_call_operand.vmem [shape: bf16[64,256], index: 8, kind: input, shape index: {}]
  %s9 = inlined_call_operand.vmem [shape: f32[32,256], index: 9, kind: input, shape index: {}]
  %s10 = inlined_call_operand.vmem [shape: f32[1,256], index: 10, kind: input, shape index: {}]
  %s11 = inlined_call_operand.vmem [shape: f32[64,128], index: 11, kind: output, shape index: {0}]
  %s12 = inlined_call_operand.vmem [shape: f32[4,8,32], index: 12, kind: output, shape index: {1}]
  %s13 = inlined_call_operand.vmem [shape: f32[4,8,32], index: 13, kind: output, shape index: {2}]
  %14 = xla_tuple %s11, %s12, %s13
  %s15 = sld [smem:[#allocation0]]
  $region70: #{encoder_forward.1} parent=0
    _
  %s17 = ssub.s32 1, %s15
  %s18 = scalar_select 0, %s17, %s15
  // Predicated region
  $region2: #{encoder_forward.1} parent=0 // pred_check
    _
  $region3: #{encoder_forward.1} parent=0 // pred_check_branch
    %20 = sbr.rel (0) target = $region5
  $region4: #{encoder_forward.1} parent=0 // pred_region
    _
  $region5: #{encoder_forward.1} parent=0 // pred_fallthru
    _
  // Predicated region
  $region6: #{encoder_forward.1} parent=0 // pred_check
    _
  $region7: #{encoder_forward.1} parent=0 // pred_check_branch
    %22 = sbr.rel (0) target = $region9
  $region8: #{encoder_forward.1} parent=0 // pred_region
    _
  $region9: #{encoder_forward.1} parent=0 // pred_fallthru
    _
  // Predicated region
  $region10: #{encoder_forward.1} parent=0 // pred_check
    _
  $region11: #{encoder_forward.1} parent=0 // pred_check_branch
    %24 = sbr.rel (0) target = $region13
  $region12: #{encoder_forward.1} parent=0 // pred_region
    _
  $region13: #{encoder_forward.1} parent=0 // pred_fallthru
    _
  // Predicated region
  $region14: #{encoder_forward.1} parent=0 // pred_check
    _
  $region15: #{encoder_forward.1} parent=0 // pred_check_branch
    %26 = sbr.rel (0) target = $region17
  $region16: #{encoder_forward.1} parent=0 // pred_region
    _
  $region17: #{encoder_forward.1} parent=0 // pred_fallthru
    _
  // Predicated region
  $region18: #{encoder_forward.1} parent=0 // pred_check
    _
  $region19: #{encoder_forward.1} parent=0 // pred_check_branch
    %28 = sbr.rel (0) target = $region21
  $region20: #{encoder_forward.1} parent=0 // pred_region
    _
  $region21: #{encoder_forward.1} parent=0 // pred_fallthru
    _
  // Predicated region
  $region22: #{encoder_forward.1} parent=0 // pred_check
    _
  $region23: #{encoder_forward.1} parent=0 // pred_check_branch
    %30 = sbr.rel (0) target = $region25
  $region24: #{encoder_forward.1} parent=0 // pred_region
    _
  $region25: #{encoder_forward.1} parent=0 // pred_fallthru
    _
  // Predicated region
  $region26: #{encoder_forward.1} parent=0 // pred_check
    _
  $region27: #{encoder_forward.1} parent=0 // pred_check_branch
    %32 = sbr.rel (0) target = $region29
  $region28: #{encoder_forward.1} parent=0 // pred_region
    _
  $region29: #{encoder_forward.1} parent=0 // pred_fallthru
    _
  // Predicated region
  $region30: #{encoder_forward.1} parent=0 // pred_check
    _
  $region31: #{encoder_forward.1} parent=0 // pred_check_branch
    %34 = sbr.rel (0) target = $region33
  $region32: #{encoder_forward.1} parent=0 // pred_region
    _
  $region33: #{encoder_forward.1} parent=0 // pred_fallthru
    _
  // Predicated region
  $region34: #{encoder_forward.1} parent=0 // pred_check
    _
  $region35: #{encoder_forward.1} parent=0 // pred_check_branch
    %36 = sbr.rel (0) target = $region37
  $region36: #{encoder_forward.1} parent=0 // pred_region
    _
  $region37: #{encoder_forward.1} parent=0 // pred_fallthru
    _
  // Predicated region
  $region38: #{encoder_forward.1} parent=0 // pred_check
    _
  $region39: #{encoder_forward.1} parent=0 // pred_check_branch
    %38 = sbr.rel (0) target = $region41
  $region40: #{encoder_forward.1} parent=0 // pred_region
    _
  $region41: #{encoder_forward.1} parent=0 // pred_fallthru
    _
  // Predicated region
  $region42: #{encoder_forward.1} parent=0 // pred_check
    _
  $region43: #{encoder_forward.1} parent=0 // pred_check_branch
    %40 = sbr.rel (0) target = $region45
  $region44: #{encoder_forward.1} parent=0 // pred_region
    _
  $region45: #{encoder_forward.1} parent=0 // pred_fallthru
    _
  %v42 = vld [vmem:[%s0] sm:$0xf]
  %v43 = vld [vmem:[%s0 + $0x4] sm:$0xf]
  %v44 = vld [vmem:[%s0 + $0x8] sm:$0xf]
  %v45 = vld [vmem:[%s0 + $0xc] sm:$0xf]
  %v46 = vld [vmem:[%s0 + $0x10] sm:$0xf]
  %v47 = vld [vmem:[%s0 + $0x14] sm:$0xf]
  %v48 = vld [vmem:[%s0 + $0x18] sm:$0xf]
  %v49 = vld [vmem:[%s0 + $0x1c] sm:$0xf]
  %v50 = vld [vmem:[%s1] sm:$0xf]
  %v51 = vld [vmem:[%s1 + $0x4] sm:$0xf]
  %v52 = vld [vmem:[%s2] sm:$0x1]
  %v54 = vlaneseq
  %v55 = vshrl.u32 %v54, 7
  %v56 = vsub.s32 0, %v55
  %v57 = vrot.slane %v52, %v56
  %v67 = vunpack.c.l.b16 %v42
  %v68 = vunpack.c.l.b16 %v43
  %v69 = vunpack.c.l.b16 %v44
  %v70 = vunpack.c.l.b16 %v45
  %v71 = vunpack.c.l.b16 %v46
  %v72 = vunpack.c.l.b16 %v47
  %v73 = vunpack.c.l.b16 %v48
  %v74 = vunpack.c.l.b16 %v49
  %v75 = vpack.c.b16 %v68, %v67
  %v76 = vpack.c.b16 %v70, %v69
  %v77 = vpack.c.b16 %v72, %v71
  %v78 = vpack.c.b16 %v74, %v73
  %v81 = vunpack.c.l.b16 %v50
  %v82 = vunpack.c.l.b16 %v51
  %v83 = vpack.c.b16 %v82, %v81
  %vm85 = vcmask 130048
  %v87 = vsel %vm85, %v75, 0
  %v90 = vsel %vm85, %v76, 0
  %v93 = vsel %vm85, %v77, 0
  %v96 = vsel %vm85, %v78, 0
  %98 = vmatprep.subr.bf16.mxu0 0
  %99 = vmatpush1.bf16.msra.mxu0 %v83
  %100 = vmatprep.subr.bf16.mxu0 0
  %101 = vmatpush1.bf16.msra.mxu0 0
  %102 = vmatprep.subr.bf16.mxu0 0
  %103 = vmatpush1.bf16.msra.mxu0 0
  %104 = vmatprep.subr.bf16.mxu0 0
  %105 = vmatpush1.bf16.msra.mxu0 0
  %106 = vmatprep.subr.bf16.mxu0 0
  %107 = vmatpush1.bf16.msra.mxu0 0
  %108 = vmatprep.subr.bf16.mxu0 0
  %109 = vmatpush1.bf16.msra.mxu0 0
  %110 = vmatprep.subr.bf16.mxu0 0
  %111 = vmatpush1.bf16.msra.mxu0 0
  %112 = vmatprep.subr.bf16.mxu0 0
  %113 = vmatpush1.bf16.msra.mxu0 0
  %114 = vmatprep.subr.bf16.mxu0 0
  %115 = vmatpush1.bf16.msra.mxu0 0
  %116 = vmatprep.subr.bf16.mxu0 0
  %117 = vmatpush1.bf16.msra.mxu0 0
  %118 = vmatprep.subr.bf16.mxu0 0
  %119 = vmatpush1.bf16.msra.mxu0 0
  %120 = vmatprep.subr.bf16.mxu0 0
  %121 = vmatpush1.bf16.msra.mxu0 0
  %122 = vmatprep.subr.bf16.mxu0 0
  %123 = vmatpush1.bf16.msra.mxu0 0
  %124 = vmatprep.subr.bf16.mxu0 0
  %125 = vmatpush1.bf16.msra.mxu0 0
  %126 = vmatprep.subr.bf16.mxu0 0
  %127 = vmatpush1.bf16.msra.mxu0 0
  %128 = vmatprep.subr.bf16.mxu0 0
  %129 = vmatpush1.bf16.msra.mxu0 0
  %130 = vmatprep.mubr.bf16.mxu0 0
  %131 = vmatmul.mubr.bf16.gmra.mrb[0].mxu0 %v87
  %v132 = vpop.f32.mrb[0].mxu0
  %v133 = vadd.f32 %v57, %v132
  %v134 = vpop.f32.mrb[0].mxu0
  %v135 = vpop.f32.mrb[0].mxu0
  %v136 = vadd.f32 %v57, %v135
  %v137 = vpop.f32.mrb[0].mxu0
  %138 = vmatprep.mubr.bf16.mxu0 0
  %139 = vmatmul.mubr.bf16.gmra.mrb[0].mxu0 %v90
  %v140 = vpop.f32.mrb[0].mxu0
  %v141 = vadd.f32 %v57, %v140
  %v142 = vpop.f32.mrb[0].mxu0
  %v143 = vpop.f32.mrb[0].mxu0
  %v144 = vadd.f32 %v57, %v143
  %v145 = vpop.f32.mrb[0].mxu0
  %146 = vmatprep.mubr.bf16.mxu0 0
  %147 = vmatmul.mubr.bf16.gmra.mrb[0].mxu0 %v93
  %v148 = vpop.f32.mrb[0].mxu0
  %v149 = vadd.f32 %v57, %v148
  %v150 = vpop.f32.mrb[0].mxu0
  %v151 = vpop.f32.mrb[0].mxu0
  %v152 = vadd.f32 %v57, %v151
  %v153 = vpop.f32.mrb[0].mxu0
  %154 = vmatprep.mubr.bf16.mxu0 0
  %155 = vmatmul.mubr.bf16.gmra.mrb[0].mxu0 %v96
  %v156 = vpop.f32.mrb[0].mxu0
  %v157 = vadd.f32 %v57, %v156
  %v158 = vpop.f32.mrb[0].mxu0
  %v159 = vpop.f32.mrb[0].mxu0
  %v160 = vadd.f32 %v57, %v159
  %v161 = vpop.f32.mrb[0].mxu0
  %162 = vdwg.mxu0
  %v163 = vpack.c.bf16 %v136, %v133
  %v164 = vpack.c.bf16 %v144, %v141
  %v165 = vpack.c.bf16 %v152, %v149
  %v166 = vpack.c.bf16 %v160, %v157
  %v167 = vld [vmem:[%s5] sm:$0xff]
  %v168 = vld [vmem:[%s5 + $0x8] sm:$0xff]
  %v169 = vld [vmem:[%s5 + $0x10] sm:$0xff]
  %v170 = vld [vmem:[%s5 + $0x18] sm:$0xff]
  %v171 = vld [vmem:[%s7] sm:$0x3]
  %v173 = vlaneseq
  %v174 = vshrl.u32 %v173, 7
  %v175 = vsub.s32 0, %v174
  %v176 = vrot.slane %v171, %v175
  %v177 = vlaneseq
  %v178 = vshrl.u32 %v177, 7
  %v179 = vsub.s32 1, %v178
  %v180 = vrot.slane %v171, %v179
  %v187 = vunpack.c.l.b16 %v167
  %v188 = vunpack.c.h.b16 %v167
  %v189 = vunpack.c.l.b16 %v168
  %v190 = vunpack.c.h.b16 %v168
  %v191 = vunpack.c.l.b16 %v169
  %v192 = vunpack.c.h.b16 %v169
  %v193 = vunpack.c.l.b16 %v170
  %v194 = vunpack.c.h.b16 %v170
  %v195 = vpack.c.b16 %v189, %v187
  %v196 = vpack.c.b16 %v190, %v188
  %v197 = vpack.c.b16 %v193, %v191
  %v198 = vpack.c.b16 %v194, %v192
  %vm203 = vcmask 261120
  %v205 = vsel %vm203, %v163, 0
  %v208 = vsel %vm203, %v164, 0
  %v211 = vsel %vm203, %v165, 0
  %v214 = vsel %vm203, %v166, 0
  %216 = vmatprep.subr.bf16.mxu0 %v196
  %217 = vmatpush1.bf16.msra.mxu0 %v195
  %218 = vmatprep.subr.bf16.mxu0 %v198
  %219 = vmatpush1.bf16.msra.mxu0 %v197
  %220 = vmatprep.subr.bf16.mxu0 0
  %221 = vmatpush1.bf16.msra.mxu0 0
  %222 = vmatprep.subr.bf16.mxu0 0
  %223 = vmatpush1.bf16.msra.mxu0 0
  %224 = vmatprep.subr.bf16.mxu0 0
  %225 = vmatpush1.bf16.msra.mxu0 0
  %226 = vmatprep.subr.bf16.mxu0 0
  %227 = vmatpush1.bf16.msra.mxu0 0
  %228 = vmatprep.subr.bf16.mxu0 0
  %229 = vmatpush1.bf16.msra.mxu0 0
  %230 = vmatprep.subr.bf16.mxu0 0
  %231 = vmatpush1.bf16.msra.mxu0 0
  %232 = vmatprep.subr.bf16.mxu0 0
  %233 = vmatpush1.bf16.msra.mxu0 0
  %234 = vmatprep.subr.bf16.mxu0 0
  %235 = vmatpush1.bf16.msra.mxu0 0
  %236 = vmatprep.subr.bf16.mxu0 0
  %237 = vmatpush1.bf16.msra.mxu0 0
  %238 = vmatprep.subr.bf16.mxu0 0
  %239 = vmatpush1.bf16.msra.mxu0 0
  %240 = vmatprep.subr.bf16.mxu0 0
  %241 = vmatpush1.bf16.msra.mxu0 0
  %242 = vmatprep.subr.bf16.mxu0 0
  %243 = vmatpush1.bf16.msra.mxu0 0
  %244 = vmatprep.subr.bf16.mxu0 0
  %245 = vmatpush1.bf16.msra.mxu0 0
  %246 = vmatprep.subr.bf16.mxu0 0
  %247 = vmatpush1.bf16.msra.mxu0 0
  %248 = vmatprep.mubr.bf16.mxu0 0
  %249 = vmatmul.mubr.bf16.gmra.mrb[0].mxu0 %v205
  %v250 = vpop.f32.mrb[0].mxu0
  %v251 = vadd.f32 %v176, %v250
  %v252 = vpop.f32.mrb[0].mxu0
  %v253 = vadd.f32 %v180, %v252
  %v254 = vpop.f32.mrb[0].mxu0
  %v255 = vadd.f32 %v176, %v254
  %v256 = vpop.f32.mrb[0].mxu0
  %v257 = vadd.f32 %v180, %v256
  %258 = vmatprep.mubr.bf16.mxu0 0
  %259 = vmatmul.mubr.bf16.gmra.mrb[0].mxu0 %v208
  %v260 = vpop.f32.mrb[0].mxu0
  %v261 = vadd.f32 %v176, %v260
  %v262 = vpop.f32.mrb[0].mxu0
  %v263 = vadd.f32 %v180, %v262
  %v264 = vpop.f32.mrb[0].mxu0
  %v265 = vadd.f32 %v176, %v264
  %v266 = vpop.f32.mrb[0].mxu0
  %v267 = vadd.f32 %v180, %v266
  %268 = vmatprep.mubr.bf16.mxu0 0
  %269 = vmatmul.mubr.bf16.gmra.mrb[0].mxu0 %v211
  %v270 = vpop.f32.mrb[0].mxu0
  %v271 = vadd.f32 %v176, %v270
  %v272 = vpop.f32.mrb[0].mxu0
  %v273 = vadd.f32 %v180, %v272
  %v274 = vpop.f32.mrb[0].mxu0
  %v275 = vadd.f32 %v176, %v274
  %v276 = vpop.f32.mrb[0].mxu0
  %v277 = vadd.f32 %v180, %v276
  %278 = vmatprep.mubr.bf16.mxu0 0
  %279 = vmatmul.mubr.bf16.gmra.mrb[0].mxu0 %v214
  %v280 = vpop.f32.mrb[0].mxu0
  %v281 = vadd.f32 %v176, %v280
  %v282 = vpop.f32.mrb[0].mxu0
  %v283 = vadd.f32 %v180, %v282
  %v284 = vpop.f32.mrb[0].mxu0
  %v285 = vadd.f32 %v176, %v284
  %v286 = vpop.f32.mrb[0].mxu0
  %v287 = vadd.f32 %v180, %v286
  %288 = vdwg.mxu0
  %v289 = vld [vmem:[%s6] sm:$0xff]
  %v290 = vld [vmem:[%s6 + $0x8] sm:$0xff]
  %v291 = vld [vmem:[%s6 + $0x10] sm:$0xff]
  %v292 = vld [vmem:[%s6 + $0x18] sm:$0xff]
  %v293 = vld [vmem:[%s6 + $0x20] sm:$0xff]
  %v294 = vld [vmem:[%s6 + $0x28] sm:$0xff]
  %v295 = vld [vmem:[%s6 + $0x30] sm:$0xff]
  %v296 = vld [vmem:[%s6 + $0x38] sm:$0xff]
  %v297 = vld [vmem:[%s3] sm:$0xff]
  %s298 = scalar_lea.vmem %s3, 8
  %v299 = vld [vmem:[%s298] sm:$0xff]
  %v300 = vld [vmem:[%s4] sm:$0xff]
  %s301 = scalar_lea.vmem %s4, 8
  %v302 = vld [vmem:[%s301] sm:$0xff]
  %v304 = vsel %vm203, %v297, 0
  %v307 = vsel %vm203, %v299, 0
  %309 = vmatprep.subr.mxu0 %v290
  %310 = vmatpush1.msra.mxu0 %v289
  %311 = vmatprep.subr.mxu0 %v292
  %312 = vmatpush1.msra.mxu0 %v291
  %313 = vmatprep.subr.mxu0 %v294
  %314 = vmatpush1.msra.mxu0 %v293
  %315 = vmatprep.subr.mxu0 %v296
  %316 = vmatpush1.msra.mxu0 %v295
  %317 = vmatprep.subr.mxu0 0.0
  %318 = vmatpush1.msra.mxu0 0.0
  %319 = vmatprep.subr.mxu0 0.0
  %320 = vmatpush1.msra.mxu0 0.0
  %321 = vmatprep.subr.mxu0 0.0
  %322 = vmatpush1.msra.mxu0 0.0
  %323 = vmatprep.subr.mxu0 0.0
  %324 = vmatpush1.msra.mxu0 0.0
  %325 = vmatprep.subr.mxu0 0.0
  %326 = vmatpush1.msra.mxu0 0.0
  %327 = vmatprep.subr.mxu0 0.0
  %328 = vmatpush1.msra.mxu0 0.0
  %329 = vmatprep.subr.mxu0 0.0
  %330 = vmatpush1.msra.mxu0 0.0
  %331 = vmatprep.subr.mxu0 0.0
  %332 = vmatpush1.msra.mxu0 0.0
  %333 = vmatprep.subr.mxu0 0.0
  %334 = vmatpush1.msra.mxu0 0.0
  %335 = vmatprep.subr.mxu0 0.0
  %336 = vmatpush1.msra.mxu0 0.0
  %337 = vmatprep.subr.mxu0 0.0
  %338 = vmatpush1.msra.mxu0 0.0
  %339 = vmatprep.subr.mxu0 0.0
  %340 = vmatpush1.msra.mxu0 0.0
  %341 = vmatprep.subr.mxu0 0.0
  %342 = vmatpush1.msra.mxu0 0.0
  %343 = vmatprep.subr.mxu0 0.0
  %344 = vmatpush1.msra.mxu0 0.0
  %345 = vmatprep.subr.mxu0 0.0
  %346 = vmatpush1.msra.mxu0 0.0
  %347 = vmatprep.subr.mxu0 0.0
  %348 = vmatpush1.msra.mxu0 0.0
  %349 = vmatprep.subr.mxu0 0.0
  %350 = vmatpush1.msra.mxu0 0.0
  %351 = vmatprep.subr.mxu0 0.0
  %352 = vmatpush1.msra.mxu0 0.0
  %353 = vmatprep.subr.mxu0 0.0
  %354 = vmatpush1.msra.mxu0 0.0
  %355 = vmatprep.subr.mxu0 0.0
  %356 = vmatpush1.msra.mxu0 0.0
  %357 = vmatprep.subr.mxu0 0.0
  %358 = vmatpush1.msra.mxu0 0.0
  %359 = vmatprep.subr.mxu0 0.0
  %360 = vmatpush1.msra.mxu0 0.0
  %361 = vmatprep.subr.mxu0 0.0
  %362 = vmatpush1.msra.mxu0 0.0
  %363 = vmatprep.subr.mxu0 0.0
  %364 = vmatpush1.msra.mxu0 0.0
  %365 = vmatprep.subr.mxu0 0.0
  %366 = vmatpush1.msra.mxu0 0.0
  %367 = vmatprep.subr.mxu0 0.0
  %368 = vmatpush1.msra.mxu0 0.0
  %369 = vmatprep.subr.mxu0 0.0
  %370 = vmatpush1.msra.mxu0 0.0
  %371 = vmatprep.subr.mxu0 0.0
  %372 = vmatpush1.msra.mxu0 0.0
  %373 = vmatprep.mubr.f32.mxu0 0.0
  %374 = vmatmul.mubr.f32.gmra.mrb[0].mxu0 %v304
  %v375 = vpop.f32.mrb[0].mxu0
  %v376 = vadd.f32 0.0, %v375
  %v377 = vpop.f32.mrb[0].mxu0
  %378 = vmatprep.mubr.f32.mxu0 0.0
  %379 = vmatmul.mubr.f32.gmra.mrb[0].mxu0 %v307
  %v380 = vpop.f32.mrb[0].mxu0
  %v381 = vpop.f32.mrb[0].mxu0
  %v382 = vadd.f32 0.0, %v381
  %383 = vdwg.mxu0
  %v384 = vadd.f32 %v376, %v251
  %v385 = vadd.f32 %v382, %v287
  %v386 = vxor.u32 %v384, 2147483648
  %v387 = vxor.u32 %v385, 2147483648
  %v388 = vmul.f32 %v386, 1.442695
  %v389 = vpow.pop %v388
  %v390 = vmul.f32 %v387, 1.442695
  %v391 = vpow.pop %v390
  %v392 = vadd.f32 %v389, 1.0
  %v393 = vadd.f32 %v391, 1.0
  %v394 = vrcp.pop %v392
  %v395 = vmul.f32 1.0, %v394
  %v396 = vrcp.pop %v393
  %v397 = vmul.f32 1.0, %v396
  %v398 = vtanh.pop %v384
  %v399 = vtanh.pop %v385
  %402 = vrot.lane.b32.xlu0 %v300, 32
  %v403 = vpop.permute.xlu0 %402
  %404 = vrot.lane.b32.xlu0 %v302, 32
  %v405 = vpop.permute.xlu0 %404
  %v408 = vmul.f32 %v395, %v403
  %v409 = vmul.f32 %v397, %v405
  %412 = vrot.lane.b32.xlu0 %v398, 64
  %v413 = vpop.permute.xlu0 %412
  %414 = vrot.lane.b32.xlu0 %v399, 64
  %v415 = vpop.permute.xlu0 %414
  %v418 = vmul.f32 %v395, %v413
  %v419 = vmul.f32 %v397, %v415
  %422 = vrot.lane.b32.xlu0 %v418, 32
  %v423 = vpop.permute.xlu0 %422
  %424 = vrot.lane.b32.xlu0 %v419, 32
  %v425 = vpop.permute.xlu0 %424
  %v428 = vadd.f32 %v408, %v423
  %v429 = vadd.f32 %v409, %v425
  %v430 = vtanh.pop %v428
  %v431 = vtanh.pop %v429
  %434 = vrot.lane.b32.xlu0 %v430, 64
  %v435 = vpop.permute.xlu0 %434
  %436 = vrot.lane.b32.xlu0 %v431, 64
  %v437 = vpop.permute.xlu0 %436
  %v440 = vmul.f32 %v395, %v435
  %v441 = vmul.f32 %v397, %v437
  %444 = vrot.lane.b32.xlu0 %v440, 32
  %v445 = vpop.permute.xlu0 %444
  %446 = vrot.lane.b32.xlu0 %v441, 32
  %v447 = vpop.permute.xlu0 %446
  %v448 = vsel %vm203, %v445, 0
  %v450 = vsel %vm203, %v447, 0
  %452 = vmatprep.subr.mxu0 %v290
  %453 = vmatpush1.msra.mxu0 %v289
  %454 = vmatprep.subr.mxu0 %v292
  %455 = vmatpush1.msra.mxu0 %v291
  %456 = vmatprep.subr.mxu0 %v294
  %457 = vmatpush1.msra.mxu0 %v293
  %458 = vmatprep.subr.mxu0 %v296
  %459 = vmatpush1.msra.mxu0 %v295
  %460 = vmatprep.subr.mxu0 0.0
  %461 = vmatpush1.msra.mxu0 0.0
  %462 = vmatprep.subr.mxu0 0.0
  %463 = vmatpush1.msra.mxu0 0.0
  %464 = vmatprep.subr.mxu0 0.0
  %465 = vmatpush1.msra.mxu0 0.0
  %466 = vmatprep.subr.mxu0 0.0
  %467 = vmatpush1.msra.mxu0 0.0
  %468 = vmatprep.subr.mxu0 0.0
  %469 = vmatpush1.msra.mxu0 0.0
  %470 = vmatprep.subr.mxu0 0.0
  %471 = vmatpush1.msra.mxu0 0.0
  %472 = vmatprep.subr.mxu0 0.0
  %473 = vmatpush1.msra.mxu0 0.0
  %474 = vmatprep.subr.mxu0 0.0
  %475 = vmatpush1.msra.mxu0 0.0
  %476 = vmatprep.subr.mxu0 0.0
  %477 = vmatpush1.msra.mxu0 0.0
  %478 = vmatprep.subr.mxu0 0.0
  %479 = vmatpush1.msra.mxu0 0.0
  %480 = vmatprep.subr.mxu0 0.0
  %481 = vmatpush1.msra.mxu0 0.0
  %482 = vmatprep.subr.mxu0 0.0
  %483 = vmatpush1.msra.mxu0 0.0
  %484 = vmatprep.subr.mxu0 0.0
  %485 = vmatpush1.msra.mxu0 0.0
  %486 = vmatprep.subr.mxu0 0.0
  %487 = vmatpush1.msra.mxu0 0.0
  %488 = vmatprep.subr.mxu0 0.0
  %489 = vmatpush1.msra.mxu0 0.0
  %490 = vmatprep.subr.mxu0 0.0
  %491 = vmatpush1.msra.mxu0 0.0
  %492 = vmatprep.subr.mxu0 0.0
  %493 = vmatpush1.msra.mxu0 0.0
  %494 = vmatprep.subr.mxu0 0.0
  %495 = vmatpush1.msra.mxu0 0.0
  %496 = vmatprep.subr.mxu0 0.0
  %497 = vmatpush1.msra.mxu0 0.0
  %498 = vmatprep.subr.mxu0 0.0
  %499 = vmatpush1.msra.mxu0 0.0
  %500 = vmatprep.subr.mxu0 0.0
  %501 = vmatpush1.msra.mxu0 0.0
  %502 = vmatprep.subr.mxu0 0.0
  %503 = vmatpush1.msra.mxu0 0.0
  %504 = vmatprep.subr.mxu0 0.0
  %505 = vmatpush1.msra.mxu0 0.0
  %506 = vmatprep.subr.mxu0 0.0
  %507 = vmatpush1.msra.mxu0 0.0
  %508 = vmatprep.subr.mxu0 0.0
  %509 = vmatpush1.msra.mxu0 0.0
  %510 = vmatprep.subr.mxu0 0.0
  %511 = vmatpush1.msra.mxu0 0.0
  %512 = vmatprep.subr.mxu0 0.0
  %513 = vmatpush1.msra.mxu0 0.0
  %514 = vmatprep.subr.mxu0 0.0
  %515 = vmatpush1.msra.mxu0 0.0
  %516 = vmatprep.mubr.f32.mxu0 0.0
  %517 = vmatmul.mubr.f32.gmra.mrb[0].mxu0 %v448
  %v518 = vpop.f32.mrb[0].mxu0
  %v519 = vadd.f32 0.0, %v518
  %v520 = vpop.f32.mrb[0].mxu0
  %521 = vmatprep.mubr.f32.mxu0 0.0
  %522 = vmatmul.mubr.f32.gmra.mrb[0].mxu0 %v450
  %v523 = vpop.f32.mrb[0].mxu0
  %v524 = vpop.f32.mrb[0].mxu0
  %v525 = vadd.f32 0.0, %v524
  %526 = vdwg.mxu0
  %v527 = vadd.f32 %v519, %v255
  %v528 = vadd.f32 %v525, %v283
  %v529 = vxor.u32 %v527, 2147483648
  %v530 = vxor.u32 %v528, 2147483648
  %v531 = vmul.f32 %v529, 1.442695
  %v532 = vpow.pop %v531
  %v533 = vmul.f32 %v530, 1.442695
  %v534 = vpow.pop %v533
  %v535 = vadd.f32 %v532, 1.0
  %v536 = vadd.f32 %v534, 1.0
  %v537 = vrcp.pop %v535
  %v538 = vmul.f32 1.0, %v537
  %v539 = vrcp.pop %v536
  %v540 = vmul.f32 1.0, %v539
  %v541 = vtanh.pop %v527
  %v542 = vtanh.pop %v528
  %v543 = vmul.f32 %v538, %v428
  %v544 = vmul.f32 %v540, %v429
  %547 = vrot.lane.b32.xlu0 %v541, 64
  %v548 = vpop.permute.xlu0 %547
  %549 = vrot.lane.b32.xlu0 %v542, 64
  %v550 = vpop.permute.xlu0 %549
  %v553 = vmul.f32 %v538, %v548
  %v554 = vmul.f32 %v540, %v550
  %557 = vrot.lane.b32.xlu0 %v553, 32
  %v558 = vpop.permute.xlu0 %557
  %559 = vrot.lane.b32.xlu0 %v554, 32
  %v560 = vpop.permute.xlu0 %559
  %v563 = vadd.f32 %v543, %v558
  %v564 = vadd.f32 %v544, %v560
  %v565 = vtanh.pop %v563
  %v566 = vtanh.pop %v564
  %569 = vrot.lane.b32.xlu0 %v565, 64
  %v570 = vpop.permute.xlu0 %569
  %571 = vrot.lane.b32.xlu0 %v566, 64
  %v572 = vpop.permute.xlu0 %571
  %v575 = vmul.f32 %v538, %v570
  %v576 = vmul.f32 %v540, %v572
  %579 = vrot.lane.b32.xlu0 %v575, 32
  %v580 = vpop.permute.xlu0 %579
  %581 = vrot.lane.b32.xlu0 %v576, 32
  %v582 = vpop.permute.xlu0 %581
  %v583 = vsel %vm203, %v580, 0
  %v585 = vsel %vm203, %v582, 0
  %587 = vmatprep.subr.mxu0 %v290
  %588 = vmatpush1.msra.mxu0 %v289
  %589 = vmatprep.subr.mxu0 %v292
  %590 = vmatpush1.msra.mxu0 %v291
  %591 = vmatprep.subr.mxu0 %v294
  %592 = vmatpush1.msra.mxu0 %v293
  %593 = vmatprep.subr.mxu0 %v296
  %594 = vmatpush1.msra.mxu0 %v295
  %595 = vmatprep.subr.mxu0 0.0
  %596 = vmatpush1.msra.mxu0 0.0
  %597 = vmatprep.subr.mxu0 0.0
  %598 = vmatpush1.msra.mxu0 0.0
  %599 = vmatprep.subr.mxu0 0.0
  %600 = vmatpush1.msra.mxu0 0.0
  %601 = vmatprep.subr.mxu0 0.0
  %602 = vmatpush1.msra.mxu0 0.0
  %603 = vmatprep.subr.mxu0 0.0
  %604 = vmatpush1.msra.mxu0 0.0
  %605 = vmatprep.subr.mxu0 0.0
  %606 = vmatpush1.msra.mxu0 0.0
  %607 = vmatprep.subr.mxu0 0.0
  %608 = vmatpush1.msra.mxu0 0.0
  %609 = vmatprep.subr.mxu0 0.0
  %610 = vmatpush1.msra.mxu0 0.0
  %611 = vmatprep.subr.mxu0 0.0
  %612 = vmatpush1.msra.mxu0 0.0
  %613 = vmatprep.subr.mxu0 0.0
  %614 = vmatpush1.msra.mxu0 0.0
  %615 = vmatprep.subr.mxu0 0.0
  %616 = vmatpush1.msra.mxu0 0.0
  %617 = vmatprep.subr.mxu0 0.0
  %618 = vmatpush1.msra.mxu0 0.0
  %619 = vmatprep.subr.mxu0 0.0
  %620 = vmatpush1.msra.mxu0 0.0
  %621 = vmatprep.subr.mxu0 0.0
  %622 = vmatpush1.msra.mxu0 0.0
  %623 = vmatprep.subr.mxu0 0.0
  %624 = vmatpush1.msra.mxu0 0.0
  %625 = vmatprep.subr.mxu0 0.0
  %626 = vmatpush1.msra.mxu0 0.0
  %627 = vmatprep.subr.mxu0 0.0
  %628 = vmatpush1.msra.mxu0 0.0
  %629 = vmatprep.subr.mxu0 0.0
  %630 = vmatpush1.msra.mxu0 0.0
  %631 = vmatprep.subr.mxu0 0.0
  %632 = vmatpush1.msra.mxu0 0.0
  %633 = vmatprep.subr.mxu0 0.0
  %634 = vmatpush1.msra.mxu0 0.0
  %635 = vmatprep.subr.mxu0 0.0
  %636 = vmatpush1.msra.mxu0 0.0
  %637 = vmatprep.subr.mxu0 0.0
  %638 = vmatpush1.msra.mxu0 0.0
  %639 = vmatprep.subr.mxu0 0.0
  %640 = vmatpush1.msra.mxu0 0.0
  %641 = vmatprep.subr.mxu0 0.0
  %642 = vmatpush1.msra.mxu0 0.0
  %643 = vmatprep.subr.mxu0 0.0
  %644 = vmatpush1.msra.mxu0 0.0
  %645 = vmatprep.subr.mxu0 0.0
  %646 = vmatpush1.msra.mxu0 0.0
  %647 = vmatprep.subr.mxu0 0.0
  %648 = vmatpush1.msra.mxu0 0.0
  %649 = vmatprep.subr.mxu0 0.0
  %650 = vmatpush1.msra.mxu0 0.0
  %651 = vmatprep.mubr.f32.mxu0 0.0
  %652 = vmatmul.mubr.f32.gmra.mrb[0].mxu0 %v583
  %v653 = vpop.f32.mrb[0].mxu0
  %v654 = vadd.f32 0.0, %v653
  %v655 = vpop.f32.mrb[0].mxu0
  %656 = vmatprep.mubr.f32.mxu0 0.0
  %657 = vmatmul.mubr.f32.gmra.mrb[0].mxu0 %v585
  %v658 = vpop.f32.mrb[0].mxu0
  %v659 = vpop.f32.mrb[0].mxu0
  %v660 = vadd.f32 0.0, %v659
  %661 = vdwg.mxu0
  %v662 = vadd.f32 %v654, %v261
  %v663 = vadd.f32 %v660, %v277
  %v664 = vxor.u32 %v662, 2147483648
  %v665 = vxor.u32 %v663, 2147483648
  %v666 = vmul.f32 %v664, 1.442695
  %v667 = vpow.pop %v666
  %v668 = vmul.f32 %v665, 1.442695
  %v669 = vpow.pop %v668
  %v670 = vadd.f32 %v667, 1.0
  %v671 = vadd.f32 %v669, 1.0
  %v672 = vrcp.pop %v670
  %v673 = vmul.f32 1.0, %v672
  %v674 = vrcp.pop %v671
  %v675 = vmul.f32 1.0, %v674
  %v676 = vtanh.pop %v662
  %v677 = vtanh.pop %v663
  %v678 = vmul.f32 %v673, %v563
  %v679 = vmul.f32 %v675, %v564
  %682 = vrot.lane.b32.xlu0 %v676, 64
  %v683 = vpop.permute.xlu0 %682
  %684 = vrot.lane.b32.xlu0 %v677, 64
  %v685 = vpop.permute.xlu0 %684
  %v688 = vmul.f32 %v673, %v683
  %v689 = vmul.f32 %v675, %v685
  %692 = vrot.lane.b32.xlu0 %v688, 32
  %v693 = vpop.permute.xlu0 %692
  %694 = vrot.lane.b32.xlu0 %v689, 32
  %v695 = vpop.permute.xlu0 %694
  %v698 = vadd.f32 %v678, %v693
  %v699 = vadd.f32 %v679, %v695
  %v700 = vtanh.pop %v698
  %v701 = vtanh.pop %v699
  %704 = vrot.lane.b32.xlu0 %v700, 64
  %v705 = vpop.permute.xlu0 %704
  %706 = vrot.lane.b32.xlu0 %v701, 64
  %v707 = vpop.permute.xlu0 %706
  %v710 = vmul.f32 %v673, %v705
  %v711 = vmul.f32 %v675, %v707
  %714 = vrot.lane.b32.xlu0 %v710, 32
  %v715 = vpop.permute.xlu0 %714
  %716 = vrot.lane.b32.xlu0 %v711, 32
  %v717 = vpop.permute.xlu0 %716
  %v718 = vsel %vm203, %v715, 0
  %v720 = vsel %vm203, %v717, 0
  %722 = vmatprep.subr.mxu0 %v290
  %723 = vmatpush1.msra.mxu0 %v289
  %724 = vmatprep.subr.mxu0 %v292
  %725 = vmatpush1.msra.mxu0 %v291
  %726 = vmatprep.subr.mxu0 %v294
  %727 = vmatpush1.msra.mxu0 %v293
  %728 = vmatprep.subr.mxu0 %v296
  %729 = vmatpush1.msra.mxu0 %v295
  %730 = vmatprep.subr.mxu0 0.0
  %731 = vmatpush1.msra.mxu0 0.0
  %732 = vmatprep.subr.mxu0 0.0
  %733 = vmatpush1.msra.mxu0 0.0
  %734 = vmatprep.subr.mxu0 0.0
  %735 = vmatpush1.msra.mxu0 0.0
  %736 = vmatprep.subr.mxu0 0.0
  %737 = vmatpush1.msra.mxu0 0.0
  %738 = vmatprep.subr.mxu0 0.0
  %739 = vmatpush1.msra.mxu0 0.0
  %740 = vmatprep.subr.mxu0 0.0
  %741 = vmatpush1.msra.mxu0 0.0
  %742 = vmatprep.subr.mxu0 0.0
  %743 = vmatpush1.msra.mxu0 0.0
  %744 = vmatprep.subr.mxu0 0.0
  %745 = vmatpush1.msra.mxu0 0.0
  %746 = vmatprep.subr.mxu0 0.0
  %747 = vmatpush1.msra.mxu0 0.0
  %748 = vmatprep.subr.mxu0 0.0
  %749 = vmatpush1.msra.mxu0 0.0
  %750 = vmatprep.subr.mxu0 0.0
  %751 = vmatpush1.msra.mxu0 0.0
  %752 = vmatprep.subr.mxu0 0.0
  %753 = vmatpush1.msra.mxu0 0.0
  %754 = vmatprep.subr.mxu0 0.0
  %755 = vmatpush1.msra.mxu0 0.0
  %756 = vmatprep.subr.mxu0 0.0
  %757 = vmatpush1.msra.mxu0 0.0
  %758 = vmatprep.subr.mxu0 0.0
  %759 = vmatpush1.msra.mxu0 0.0
  %760 = vmatprep.subr.mxu0 0.0
  %761 = vmatpush1.msra.mxu0 0.0
  %762 = vmatprep.subr.mxu0 0.0
  %763 = vmatpush1.msra.mxu0 0.0
  %764 = vmatprep.subr.mxu0 0.0
  %765 = vmatpush1.msra.mxu0 0.0
  %766 = vmatprep.subr.mxu0 0.0
  %767 = vmatpush1.msra.mxu0 0.0
  %768 = vmatprep.subr.mxu0 0.0
  %769 = vmatpush1.msra.mxu0 0.0
  %770 = vmatprep.subr.mxu0 0.0
  %771 = vmatpush1.msra.mxu0 0.0
  %772 = vmatprep.subr.mxu0 0.0
  %773 = vmatpush1.msra.mxu0 0.0
  %774 = vmatprep.subr.mxu0 0.0
  %775 = vmatpush1.msra.mxu0 0.0
  %776 = vmatprep.subr.mxu0 0.0
  %777 = vmatpush1.msra.mxu0 0.0
  %778 = vmatprep.subr.mxu0 0.0
  %779 = vmatpush1.msra.mxu0 0.0
  %780 = vmatprep.subr.mxu0 0.0
  %781 = vmatpush1.msra.mxu0 0.0
  %782 = vmatprep.subr.mxu0 0.0
  %783 = vmatpush1.msra.mxu0 0.0
  %784 = vmatprep.subr.mxu0 0.0
  %785 = vmatpush1.msra.mxu0 0.0
  %786 = vmatprep.mubr.f32.mxu0 0.0
  %787 = vmatmul.mubr.f32.gmra.mrb[0].mxu0 %v718
  %v788 = vpop.f32.mrb[0].mxu0
  %v789 = vadd.f32 0.0, %v788
  %v790 = vpop.f32.mrb[0].mxu0
  %791 = vmatprep.mubr.f32.mxu0 0.0
  %792 = vmatmul.mubr.f32.gmra.mrb[0].mxu0 %v720
  %v793 = vpop.f32.mrb[0].mxu0
  %v794 = vpop.f32.mrb[0].mxu0
  %v795 = vadd.f32 0.0, %v794
  %796 = vdwg.mxu0
  %v797 = vadd.f32 %v789, %v265
  %v798 = vadd.f32 %v795, %v273
  %v799 = vxor.u32 %v797, 2147483648
  %v800 = vxor.u32 %v798, 2147483648
  %v801 = vmul.f32 %v799, 1.442695
  %v802 = vpow.pop %v801
  %v803 = vmul.f32 %v800, 1.442695
  %v804 = vpow.pop %v803
  %v805 = vadd.f32 %v802, 1.0
  %v806 = vadd.f32 %v804, 1.0
  %v807 = vrcp.pop %v805
  %v808 = vmul.f32 1.0, %v807
  %v809 = vrcp.pop %v806
  %v810 = vmul.f32 1.0, %v809
  %v811 = vtanh.pop %v797
  %v812 = vtanh.pop %v798
  %v813 = vmul.f32 %v808, %v698
  %v814 = vmul.f32 %v810, %v699
  %817 = vrot.lane.b32.xlu0 %v811, 64
  %v818 = vpop.permute.xlu0 %817
  %819 = vrot.lane.b32.xlu0 %v812, 64
  %v820 = vpop.permute.xlu0 %819
  %v823 = vmul.f32 %v808, %v818
  %v824 = vmul.f32 %v810, %v820
  %827 = vrot.lane.b32.xlu0 %v823, 32
  %v828 = vpop.permute.xlu0 %827
  %829 = vrot.lane.b32.xlu0 %v824, 32
  %v830 = vpop.permute.xlu0 %829
  %v833 = vadd.f32 %v813, %v828
  %v834 = vadd.f32 %v814, %v830
  %v835 = vtanh.pop %v833
  %v836 = vtanh.pop %v834
  %839 = vrot.lane.b32.xlu0 %v835, 64
  %v840 = vpop.permute.xlu0 %839
  %841 = vrot.lane.b32.xlu0 %v836, 64
  %v842 = vpop.permute.xlu0 %841
  %v845 = vmul.f32 %v808, %v840
  %v846 = vmul.f32 %v810, %v842
  %849 = vrot.lane.b32.xlu0 %v845, 32
  %v850 = vpop.permute.xlu0 %849
  %851 = vrot.lane.b32.xlu0 %v846, 32
  %v852 = vpop.permute.xlu0 %851
  %v853 = vsel %vm203, %v850, 0
  %v855 = vsel %vm203, %v852, 0
  %857 = vmatprep.subr.mxu0 %v290
  %858 = vmatpush1.msra.mxu0 %v289
  %859 = vmatprep.subr.mxu0 %v292
  %860 = vmatpush1.msra.mxu0 %v291
  %861 = vmatprep.subr.mxu0 %v294
  %862 = vmatpush1.msra.mxu0 %v293
  %863 = vmatprep.subr.mxu0 %v296
  %864 = vmatpush1.msra.mxu0 %v295
  %865 = vmatprep.subr.mxu0 0.0
  %866 = vmatpush1.msra.mxu0 0.0
  %867 = vmatprep.subr.mxu0 0.0
  %868 = vmatpush1.msra.mxu0 0.0
  %869 = vmatprep.subr.mxu0 0.0
  %870 = vmatpush1.msra.mxu0 0.0
  %871 = vmatprep.subr.mxu0 0.0
  %872 = vmatpush1.msra.mxu0 0.0
  %873 = vmatprep.subr.mxu0 0.0
  %874 = vmatpush1.msra.mxu0 0.0
  %875 = vmatprep.subr.mxu0 0.0
  %876 = vmatpush1.msra.mxu0 0.0
  %877 = vmatprep.subr.mxu0 0.0
  %878 = vmatpush1.msra.mxu0 0.0
  %879 = vmatprep.subr.mxu0 0.0
  %880 = vmatpush1.msra.mxu0 0.0
  %881 = vmatprep.subr.mxu0 0.0
  %882 = vmatpush1.msra.mxu0 0.0
  %883 = vmatprep.subr.mxu0 0.0
  %884 = vmatpush1.msra.mxu0 0.0
  %885 = vmatprep.subr.mxu0 0.0
  %886 = vmatpush1.msra.mxu0 0.0
  %887 = vmatprep.subr.mxu0 0.0
  %888 = vmatpush1.msra.mxu0 0.0
  %889 = vmatprep.subr.mxu0 0.0
  %890 = vmatpush1.msra.mxu0 0.0
  %891 = vmatprep.subr.mxu0 0.0
  %892 = vmatpush1.msra.mxu0 0.0
  %893 = vmatprep.subr.mxu0 0.0
  %894 = vmatpush1.msra.mxu0 0.0
  %895 = vmatprep.subr.mxu0 0.0
  %896 = vmatpush1.msra.mxu0 0.0
  %897 = vmatprep.subr.mxu0 0.0
  %898 = vmatpush1.msra.mxu0 0.0
  %899 = vmatprep.subr.mxu0 0.0
  %900 = vmatpush1.msra.mxu0 0.0
  %901 = vmatprep.subr.mxu0 0.0
  %902 = vmatpush1.msra.mxu0 0.0
  %903 = vmatprep.subr.mxu0 0.0
  %904 = vmatpush1.msra.mxu0 0.0
  %905 = vmatprep.subr.mxu0 0.0
  %906 = vmatpush1.msra.mxu0 0.0
  %907 = vmatprep.subr.mxu0 0.0
  %908 = vmatpush1.msra.mxu0 0.0
  %909 = vmatprep.subr.mxu0 0.0
  %910 = vmatpush1.msra.mxu0 0.0
  %911 = vmatprep.subr.mxu0 0.0
  %912 = vmatpush1.msra.mxu0 0.0
  %913 = vmatprep.subr.mxu0 0.0
  %914 = vmatpush1.msra.mxu0 0.0
  %915 = vmatprep.subr.mxu0 0.0
  %916 = vmatpush1.msra.mxu0 0.0
  %917 = vmatprep.subr.mxu0 0.0
  %918 = vmatpush1.msra.mxu0 0.0
  %919 = vmatprep.subr.mxu0 0.0
  %920 = vmatpush1.msra.mxu0 0.0
  %921 = vmatprep.mubr.f32.mxu0 0.0
  %922 = vmatmul.mubr.f32.gmra.mrb[0].mxu0 %v853
  %v923 = vpop.f32.mrb[0].mxu0
  %v924 = vadd.f32 0.0, %v923
  %v925 = vpop.f32.mrb[0].mxu0
  %926 = vmatprep.mubr.f32.mxu0 0.0
  %927 = vmatmul.mubr.f32.gmra.mrb[0].mxu0 %v855
  %v928 = vpop.f32.mrb[0].mxu0
  %v929 = vpop.f32.mrb[0].mxu0
  %v930 = vadd.f32 0.0, %v929
  %931 = vdwg.mxu0
  %v932 = vadd.f32 %v924, %v271
  %v933 = vadd.f32 %v930, %v267
  %v934 = vxor.u32 %v932, 2147483648
  %v935 = vxor.u32 %v933, 2147483648
  %v936 = vmul.f32 %v934, 1.442695
  %v937 = vpow.pop %v936
  %v938 = vmul.f32 %v935, 1.442695
  %v939 = vpow.pop %v938
  %v940 = vadd.f32 %v937, 1.0
  %v941 = vadd.f32 %v939, 1.0
  %v942 = vrcp.pop %v940
  %v943 = vmul.f32 1.0, %v942
  %v944 = vrcp.pop %v941
  %v945 = vmul.f32 1.0, %v944
  %v946 = vtanh.pop %v932
  %v947 = vtanh.pop %v933
  %v948 = vmul.f32 %v943, %v833
  %v949 = vmul.f32 %v945, %v834
  %952 = vrot.lane.b32.xlu0 %v946, 64
  %v953 = vpop.permute.xlu0 %952
  %954 = vrot.lane.b32.xlu0 %v947, 64
  %v955 = vpop.permute.xlu0 %954
  %v958 = vmul.f32 %v943, %v953
  %v959 = vmul.f32 %v945, %v955
  %962 = vrot.lane.b32.xlu0 %v958, 32
  %v963 = vpop.permute.xlu0 %962
  %964 = vrot.lane.b32.xlu0 %v959, 32
  %v965 = vpop.permute.xlu0 %964
  %v968 = vadd.f32 %v948, %v963
  %v969 = vadd.f32 %v949, %v965
  %v970 = vtanh.pop %v968
  %v971 = vtanh.pop %v969
  %974 = vrot.lane.b32.xlu0 %v970, 64
  %v975 = vpop.permute.xlu0 %974
  %976 = vrot.lane.b32.xlu0 %v971, 64
  %v977 = vpop.permute.xlu0 %976
  %v980 = vmul.f32 %v943, %v975
  %v981 = vmul.f32 %v945, %v977
  %984 = vrot.lane.b32.xlu0 %v980, 32
  %v985 = vpop.permute.xlu0 %984
  %986 = vrot.lane.b32.xlu0 %v981, 32
  %v987 = vpop.permute.xlu0 %986
  %v988 = vsel %vm203, %v985, 0
  %v990 = vsel %vm203, %v987, 0
  %992 = vmatprep.subr.mxu0 %v290
  %993 = vmatpush1.msra.mxu0 %v289
  %994 = vmatprep.subr.mxu0 %v292
  %995 = vmatpush1.msra.mxu0 %v291
  %996 = vmatprep.subr.mxu0 %v294
  %997 = vmatpush1.msra.mxu0 %v293
  %998 = vmatprep.subr.mxu0 %v296
  %999 = vmatpush1.msra.mxu0 %v295
  %1000 = vmatprep.subr.mxu0 0.0
  %1001 = vmatpush1.msra.mxu0 0.0
  %1002 = vmatprep.subr.mxu0 0.0
  %1003 = vmatpush1.msra.mxu0 0.0
  %1004 = vmatprep.subr.mxu0 0.0
  %1005 = vmatpush1.msra.mxu0 0.0
  %1006 = vmatprep.subr.mxu0 0.0
  %1007 = vmatpush1.msra.mxu0 0.0
  %1008 = vmatprep.subr.mxu0 0.0
  %1009 = vmatpush1.msra.mxu0 0.0
  %1010 = vmatprep.subr.mxu0 0.0
  %1011 = vmatpush1.msra.mxu0 0.0
  %1012 = vmatprep.subr.mxu0 0.0
  %1013 = vmatpush1.msra.mxu0 0.0
  %1014 = vmatprep.subr.mxu0 0.0
  %1015 = vmatpush1.msra.mxu0 0.0
  %1016 = vmatprep.subr.mxu0 0.0
  %1017 = vmatpush1.msra.mxu0 0.0
  %1018 = vmatprep.subr.mxu0 0.0
  %1019 = vmatpush1.msra.mxu0 0.0
  %1020 = vmatprep.subr.mxu0 0.0
  %1021 = vmatpush1.msra.mxu0 0.0
  %1022 = vmatprep.subr.mxu0 0.0
  %1023 = vmatpush1.msra.mxu0 0.0
  %1024 = vmatprep.subr.mxu0 0.0
  %1025 = vmatpush1.msra.mxu0 0.0
  %1026 = vmatprep.subr.mxu0 0.0
  %1027 = vmatpush1.msra.mxu0 0.0
  %1028 = vmatprep.subr.mxu0 0.0
  %1029 = vmatpush1.msra.mxu0 0.0
  %1030 = vmatprep.subr.mxu0 0.0
  %1031 = vmatpush1.msra.mxu0 0.0
  %1032 = vmatprep.subr.mxu0 0.0
  %1033 = vmatpush1.msra.mxu0 0.0
  %1034 = vmatprep.subr.mxu0 0.0
  %1035 = vmatpush1.msra.mxu0 0.0
  %1036 = vmatprep.subr.mxu0 0.0
  %1037 = vmatpush1.msra.mxu0 0.0
  %1038 = vmatprep.subr.mxu0 0.0
  %1039 = vmatpush1.msra.mxu0 0.0
  %1040 = vmatprep.subr.mxu0 0.0
  %1041 = vmatpush1.msra.mxu0 0.0
  %1042 = vmatprep.subr.mxu0 0.0
  %1043 = vmatpush1.msra.mxu0 0.0
  %1044 = vmatprep.subr.mxu0 0.0
  %1045 = vmatpush1.msra.mxu0 0.0
  %1046 = vmatprep.subr.mxu0 0.0
  %1047 = vmatpush1.msra.mxu0 0.0
  %1048 = vmatprep.subr.mxu0 0.0
  %1049 = vmatpush1.msra.mxu0 0.0
  %1050 = vmatprep.subr.mxu0 0.0
  %1051 = vmatpush1.msra.mxu0 0.0
  %1052 = vmatprep.subr.mxu0 0.0
  %1053 = vmatpush1.msra.mxu0 0.0
  %1054 = vmatprep.subr.mxu0 0.0
  %1055 = vmatpush1.msra.mxu0 0.0
  %1056 = vmatprep.mubr.f32.mxu0 0.0
  %1057 = vmatmul.mubr.f32.gmra.mrb[0].mxu0 %v988
  %v1058 = vpop.f32.mrb[0].mxu0
  %v1059 = vadd.f32 0.0, %v1058
  %v1060 = vpop.f32.mrb[0].mxu0
  %1061 = vmatprep.mubr.f32.mxu0 0.0
  %1062 = vmatmul.mubr.f32.gmra.mrb[0].mxu0 %v990
  %v1063 = vpop.f32.mrb[0].mxu0
  %v1064 = vpop.f32.mrb[0].mxu0
  %v1065 = vadd.f32 0.0, %v1064
  %1066 = vdwg.mxu0
  %v1067 = vadd.f32 %v1059, %v275
  %v1068 = vadd.f32 %v1065, %v263
  %v1069 = vxor.u32 %v1067, 2147483648
  %v1070 = vxor.u32 %v1068, 2147483648
  %v1071 = vmul.f32 %v1069, 1.442695
  %v1072 = vpow.pop %v1071
  %v1073 = vmul.f32 %v1070, 1.442695
  %v1074 = vpow.pop %v1073
  %v1075 = vadd.f32 %v1072, 1.0
  %v1076 = vadd.f32 %v1074, 1.0
  %v1077 = vrcp.pop %v1075
  %v1078 = vmul.f32 1.0, %v1077
  %v1079 = vrcp.pop %v1076
  %v1080 = vmul.f32 1.0, %v1079
  %v1081 = vtanh.pop %v1067
  %v1082 = vtanh.pop %v1068
  %v1083 = vmul.f32 %v1078, %v968
  %v1084 = vmul.f32 %v1080, %v969
  %1087 = vrot.lane.b32.xlu0 %v1081, 64
  %v1088 = vpop.permute.xlu0 %1087
  %1089 = vrot.lane.b32.xlu0 %v1082, 64
  %v1090 = vpop.permute.xlu0 %1089
  %v1093 = vmul.f32 %v1078, %v1088
  %v1094 = vmul.f32 %v1080, %v1090
  %1097 = vrot.lane.b32.xlu0 %v1093, 32
  %v1098 = vpop.permute.xlu0 %1097
  %1099 = vrot.lane.b32.xlu0 %v1094, 32
  %v1100 = vpop.permute.xlu0 %1099
  %v1103 = vadd.f32 %v1083, %v1098
  %v1104 = vadd.f32 %v1084, %v1100
  %v1105 = vtanh.pop %v1103
  %v1106 = vtanh.pop %v1104
  %1109 = vrot.lane.b32.xlu0 %v1105, 64
  %v1110 = vpop.permute.xlu0 %1109
  %1111 = vrot.lane.b32.xlu0 %v1106, 64
  %v1112 = vpop.permute.xlu0 %1111
  %v1115 = vmul.f32 %v1078, %v1110
  %v1116 = vmul.f32 %v1080, %v1112
  %1119 = vrot.lane.b32.xlu0 %v1115, 32
  %v1120 = vpop.permute.xlu0 %1119
  %1121 = vrot.lane.b32.xlu0 %v1116, 32
  %v1122 = vpop.permute.xlu0 %1121
  %v1123 = vsel %vm203, %v1120, 0
  %v1125 = vsel %vm203, %v1122, 0
  %1127 = vmatprep.subr.mxu0 %v290
  %1128 = vmatpush1.msra.mxu0 %v289
  %1129 = vmatprep.subr.mxu0 %v292
  %1130 = vmatpush1.msra.mxu0 %v291
  %1131 = vmatprep.subr.mxu0 %v294
  %1132 = vmatpush1.msra.mxu0 %v293
  %1133 = vmatprep.subr.mxu0 %v296
  %1134 = vmatpush1.msra.mxu0 %v295
  %1135 = vmatprep.subr.mxu0 0.0
  %1136 = vmatpush1.msra.mxu0 0.0
  %1137 = vmatprep.subr.mxu0 0.0
  %1138 = vmatpush1.msra.mxu0 0.0
  %1139 = vmatprep.subr.mxu0 0.0
  %1140 = vmatpush1.msra.mxu0 0.0
  %1141 = vmatprep.subr.mxu0 0.0
  %1142 = vmatpush1.msra.mxu0 0.0
  %1143 = vmatprep.subr.mxu0 0.0
  %1144 = vmatpush1.msra.mxu0 0.0
  %1145 = vmatprep.subr.mxu0 0.0
  %1146 = vmatpush1.msra.mxu0 0.0
  %1147 = vmatprep.subr.mxu0 0.0
  %1148 = vmatpush1.msra.mxu0 0.0
  %1149 = vmatprep.subr.mxu0 0.0
  %1150 = vmatpush1.msra.mxu0 0.0
  %1151 = vmatprep.subr.mxu0 0.0
  %1152 = vmatpush1.msra.mxu0 0.0
  %1153 = vmatprep.subr.mxu0 0.0
  %1154 = vmatpush1.msra.mxu0 0.0
  %1155 = vmatprep.subr.mxu0 0.0
  %1156 = vmatpush1.msra.mxu0 0.0
  %1157 = vmatprep.subr.mxu0 0.0
  %1158 = vmatpush1.msra.mxu0 0.0
  %1159 = vmatprep.subr.mxu0 0.0
  %1160 = vmatpush1.msra.mxu0 0.0
  %1161 = vmatprep.subr.mxu0 0.0
  %1162 = vmatpush1.msra.mxu0 0.0
  %1163 = vmatprep.subr.mxu0 0.0
  %1164 = vmatpush1.msra.mxu0 0.0
  %1165 = vmatprep.subr.mxu0 0.0
  %1166 = vmatpush1.msra.mxu0 0.0
  %1167 = vmatprep.subr.mxu0 0.0
  %1168 = vmatpush1.msra.mxu0 0.0
  %1169 = vmatprep.subr.mxu0 0.0
  %1170 = vmatpush1.msra.mxu0 0.0
  %1171 = vmatprep.subr.mxu0 0.0
  %1172 = vmatpush1.msra.mxu0 0.0
  %1173 = vmatprep.subr.mxu0 0.0
  %1174 = vmatpush1.msra.mxu0 0.0
  %1175 = vmatprep.subr.mxu0 0.0
  %1176 = vmatpush1.msra.mxu0 0.0
  %1177 = vmatprep.subr.mxu0 0.0
  %1178 = vmatpush1.msra.mxu0 0.0
  %1179 = vmatprep.subr.mxu0 0.0
  %1180 = vmatpush1.msra.mxu0 0.0
  %1181 = vmatprep.subr.mxu0 0.0
  %1182 = vmatpush1.msra.mxu0 0.0
  %1183 = vmatprep.subr.mxu0 0.0
  %1184 = vmatpush1.msra.mxu0 0.0
  %1185 = vmatprep.subr.mxu0 0.0
  %1186 = vmatpush1.msra.mxu0 0.0
  %1187 = vmatprep.subr.mxu0 0.0
  %1188 = vmatpush1.msra.mxu0 0.0
  %1189 = vmatprep.subr.mxu0 0.0
  %1190 = vmatpush1.msra.mxu0 0.0
  %1191 = vmatprep.mubr.f32.mxu0 0.0
  %1192 = vmatmul.mubr.f32.gmra.mrb[0].mxu0 %v1123
  %v1193 = vpop.f32.mrb[0].mxu0
  %v1194 = vadd.f32 0.0, %v1193
  %v1195 = vpop.f32.mrb[0].mxu0
  %1196 = vmatprep.mubr.f32.mxu0 0.0
  %1197 = vmatmul.mubr.f32.gmra.mrb[0].mxu0 %v1125
  %v1198 = vpop.f32.mrb[0].mxu0
  %v1199 = vpop.f32.mrb[0].mxu0
  %v1200 = vadd.f32 0.0, %v1199
  %1201 = vdwg.mxu0
  %v1202 = vadd.f32 %v1194, %v281
  %v1203 = vadd.f32 %v1200, %v257
  %v1204 = vxor.u32 %v1202, 2147483648
  %v1205 = vxor.u32 %v1203, 2147483648
  %v1206 = vmul.f32 %v1204, 1.442695
  %v1207 = vpow.pop %v1206
  %v1208 = vmul.f32 %v1205, 1.442695
  %v1209 = vpow.pop %v1208
  %v1210 = vadd.f32 %v1207, 1.0
  %v1211 = vadd.f32 %v1209, 1.0
  %v1212 = vrcp.pop %v1210
  %v1213 = vmul.f32 1.0, %v1212
  %v1214 = vrcp.pop %v1211
  %v1215 = vmul.f32 1.0, %v1214
  %v1216 = vtanh.pop %v1202
  %v1217 = vtanh.pop %v1203
  %v1218 = vmul.f32 %v1213, %v1103
  %v1219 = vmul.f32 %v1215, %v1104
  %1222 = vrot.lane.b32.xlu0 %v1216, 64
  %v1223 = vpop.permute.xlu0 %1222
  %1224 = vrot.lane.b32.xlu0 %v1217, 64
  %v1225 = vpop.permute.xlu0 %1224
  %v1228 = vmul.f32 %v1213, %v1223
  %v1229 = vmul.f32 %v1215, %v1225
  %1232 = vrot.lane.b32.xlu0 %v1228, 32
  %v1233 = vpop.permute.xlu0 %1232
  %1234 = vrot.lane.b32.xlu0 %v1229, 32
  %v1235 = vpop.permute.xlu0 %1234
  %v1238 = vadd.f32 %v1218, %v1233
  %v1239 = vadd.f32 %v1219, %v1235
  %v1240 = vtanh.pop %v1238
  %v1241 = vtanh.pop %v1239
  %1244 = vrot.lane.b32.xlu0 %v1240, 64
  %v1245 = vpop.permute.xlu0 %1244
  %1246 = vrot.lane.b32.xlu0 %v1241, 64
  %v1247 = vpop.permute.xlu0 %1246
  %v1250 = vmul.f32 %v1213, %v1245
  %v1251 = vmul.f32 %v1215, %v1247
  %1254 = vrot.lane.b32.xlu0 %v1250, 32
  %v1255 = vpop.permute.xlu0 %1254
  %1256 = vrot.lane.b32.xlu0 %v1251, 32
  %v1257 = vpop.permute.xlu0 %1256
  %v1258 = vsel %vm203, %v1255, 0
  %v1260 = vsel %vm203, %v1257, 0
  %1262 = vmatprep.subr.mxu0 %v290
  %1263 = vmatpush1.msra.mxu0 %v289
  %1264 = vmatprep.subr.mxu0 %v292
  %1265 = vmatpush1.msra.mxu0 %v291
  %1266 = vmatprep.subr.mxu0 %v294
  %1267 = vmatpush1.msra.mxu0 %v293
  %1268 = vmatprep.subr.mxu0 %v296
  %1269 = vmatpush1.msra.mxu0 %v295
  %1270 = vmatprep.subr.mxu0 0.0
  %1271 = vmatpush1.msra.mxu0 0.0
  %1272 = vmatprep.subr.mxu0 0.0
  %1273 = vmatpush1.msra.mxu0 0.0
  %1274 = vmatprep.subr.mxu0 0.0
  %1275 = vmatpush1.msra.mxu0 0.0
  %1276 = vmatprep.subr.mxu0 0.0
  %1277 = vmatpush1.msra.mxu0 0.0
  %1278 = vmatprep.subr.mxu0 0.0
  %1279 = vmatpush1.msra.mxu0 0.0
  %1280 = vmatprep.subr.mxu0 0.0
  %1281 = vmatpush1.msra.mxu0 0.0
  %1282 = vmatprep.subr.mxu0 0.0
  %1283 = vmatpush1.msra.mxu0 0.0
  %1284 = vmatprep.subr.mxu0 0.0
  %1285 = vmatpush1.msra.mxu0 0.0
  %1286 = vmatprep.subr.mxu0 0.0
  %1287 = vmatpush1.msra.mxu0 0.0
  %1288 = vmatprep.subr.mxu0 0.0
  %1289 = vmatpush1.msra.mxu0 0.0
  %1290 = vmatprep.subr.mxu0 0.0
  %1291 = vmatpush1.msra.mxu0 0.0
  %1292 = vmatprep.subr.mxu0 0.0
  %1293 = vmatpush1.msra.mxu0 0.0
  %1294 = vmatprep.subr.mxu0 0.0
  %1295 = vmatpush1.msra.mxu0 0.0
  %1296 = vmatprep.subr.mxu0 0.0
  %1297 = vmatpush1.msra.mxu0 0.0
  %1298 = vmatprep.subr.mxu0 0.0
  %1299 = vmatpush1.msra.mxu0 0.0
  %1300 = vmatprep.subr.mxu0 0.0
  %1301 = vmatpush1.msra.mxu0 0.0
  %1302 = vmatprep.subr.mxu0 0.0
  %1303 = vmatpush1.msra.mxu0 0.0
  %1304 = vmatprep.subr.mxu0 0.0
  %1305 = vmatpush1.msra.mxu0 0.0
  %1306 = vmatprep.subr.mxu0 0.0
  %1307 = vmatpush1.msra.mxu0 0.0
  %1308 = vmatprep.subr.mxu0 0.0
  %1309 = vmatpush1.msra.mxu0 0.0
  %1310 = vmatprep.subr.mxu0 0.0
  %1311 = vmatpush1.msra.mxu0 0.0
  %1312 = vmatprep.subr.mxu0 0.0
  %1313 = vmatpush1.msra.mxu0 0.0
  %1314 = vmatprep.subr.mxu0 0.0
  %1315 = vmatpush1.msra.mxu0 0.0
  %1316 = vmatprep.subr.mxu0 0.0
  %1317 = vmatpush1.msra.mxu0 0.0
  %1318 = vmatprep.subr.mxu0 0.0
  %1319 = vmatpush1.msra.mxu0 0.0
  %1320 = vmatprep.subr.mxu0 0.0
  %1321 = vmatpush1.msra.mxu0 0.0
  %1322 = vmatprep.subr.mxu0 0.0
  %1323 = vmatpush1.msra.mxu0 0.0
  %1324 = vmatprep.subr.mxu0 0.0
  %1325 = vmatpush1.msra.mxu0 0.0
  %1326 = vmatprep.mubr.f32.mxu0 0.0
  %1327 = vmatmul.mubr.f32.gmra.mrb[0].mxu0 %v1258
  %v1328 = vpop.f32.mrb[0].mxu0
  %v1329 = vadd.f32 0.0, %v1328
  %v1330 = vpop.f32.mrb[0].mxu0
  %1331 = vmatprep.mubr.f32.mxu0 0.0
  %1332 = vmatmul.mubr.f32.gmra.mrb[0].mxu0 %v1260
  %v1333 = vpop.f32.mrb[0].mxu0
  %v1334 = vpop.f32.mrb[0].mxu0
  %v1335 = vadd.f32 0.0, %v1334
  %1336 = vdwg.mxu0
  %v1337 = vadd.f32 %v1329, %v285
  %v1338 = vadd.f32 %v1335, %v253
  %v1339 = vxor.u32 %v1337, 2147483648
  %v1340 = vxor.u32 %v1338, 2147483648
  %v1341 = vmul.f32 %v1339, 1.442695
  %v1342 = vpow.pop %v1341
  %v1343 = vmul.f32 %v1340, 1.442695
  %v1344 = vpow.pop %v1343
  %v1345 = vadd.f32 %v1342, 1.0
  %v1346 = vadd.f32 %v1344, 1.0
  %v1347 = vrcp.pop %v1345
  %v1348 = vmul.f32 1.0, %v1347
  %v1349 = vrcp.pop %v1346
  %v1350 = vmul.f32 1.0, %v1349
  %v1351 = vtanh.pop %v1337
  %v1352 = vtanh.pop %v1338
  %v1353 = vmul.f32 %v1348, %v1238
  %v1354 = vmul.f32 %v1350, %v1239
  %1357 = vrot.lane.b32.xlu0 %v1351, 64
  %v1358 = vpop.permute.xlu0 %1357
  %1359 = vrot.lane.b32.xlu0 %v1352, 64
  %v1360 = vpop.permute.xlu0 %1359
  %v1363 = vmul.f32 %v1348, %v1358
  %v1364 = vmul.f32 %v1350, %v1360
  %1367 = vrot.lane.b32.xlu0 %v1363, 32
  %v1368 = vpop.permute.xlu0 %1367
  %1369 = vrot.lane.b32.xlu0 %v1364, 32
  %v1370 = vpop.permute.xlu0 %1369
  %v1373 = vadd.f32 %v1353, %v1368
  %v1374 = vadd.f32 %v1354, %v1370
  %v1375 = vtanh.pop %v1373
  %v1376 = vtanh.pop %v1374
  %1379 = vrot.lane.b32.xlu0 %v1375, 64
  %v1380 = vpop.permute.xlu0 %1379
  %1381 = vrot.lane.b32.xlu0 %v1376, 64
  %v1382 = vpop.permute.xlu0 %1381
  %v1385 = vmul.f32 %v1348, %v1380
  %v1386 = vmul.f32 %v1350, %v1382
  %1388 = vrot.lane.b32.xlu0 %v1385, 32
  %v1389 = vpop.permute.xlu0 %1388
  %1391 = vst.msk [vmem:[%s12] sm:$0xff] %vm203, %v1389
  %1393 = vrot.lane.b32.xlu0 %v1386, 32
  %v1394 = vpop.permute.xlu0 %1393
  %s1396 = scalar_lea.vmem %s12, 8
  %1397 = vst.msk [vmem:[%s1396] sm:$0xff] %vm203, %v1394
  %1399 = vrot.lane.b32.xlu0 %v1373, 96
  %v1400 = vpop.permute.xlu0 %1399
  %1402 = vst.msk [vmem:[%s13] sm:$0xff] %vm203, %v1400
  %1404 = vrot.lane.b32.xlu0 %v1374, 96
  %v1405 = vpop.permute.xlu0 %1404
  %s1407 = scalar_lea.vmem %s13, 8
  %1408 = vst.msk [vmem:[%s1407] sm:$0xff] %vm203, %v1405
  %1416 = vrot.lane.b32.xlu0 %v1386, 64
  %v1417 = vpop.permute.xlu0 %1416
  %1418 = vrot.lane.b32.xlu0 %v1251, 64
  %v1419 = vpop.permute.xlu0 %1418
  %1420 = vrot.lane.b32.xlu0 %v1116, 64
  %v1421 = vpop.permute.xlu0 %1420
  %1422 = vrot.lane.b32.xlu0 %v981, 64
  %v1423 = vpop.permute.xlu0 %1422
  %1424 = vrot.lane.b32.xlu0 %v846, 64
  %v1425 = vpop.permute.xlu0 %1424
  %1426 = vrot.lane.b32.xlu0 %v711, 64
  %v1427 = vpop.permute.xlu0 %1426
  %1428 = vrot.lane.b32.xlu0 %v576, 64
  %v1429 = vpop.permute.xlu0 %1428
  %1430 = vrot.lane.b32.xlu0 %v441, 64
  %v1431 = vpop.permute.xlu0 %1430
  %v1440 = vsel %vm203, %v445, %v1417
  %v1441 = vsel %vm203, %v580, %v1419
  %v1442 = vsel %vm203, %v715, %v1421
  %v1443 = vsel %vm203, %v850, %v1423
  %v1444 = vsel %vm203, %v985, %v1425
  %v1445 = vsel %vm203, %v1120, %v1427
  %v1446 = vsel %vm203, %v1255, %v1429
  %v1447 = vsel %vm203, %v1389, %v1431
  %v1448 = vpack.c.bf16 %v1441, %v1440
  %v1449 = vpack.c.bf16 %v1443, %v1442
  %v1450 = vpack.c.bf16 %v1445, %v1444
  %v1451 = vpack.c.bf16 %v1447, %v1446
  %v1452 = vld [vmem:[%s8] sm:$0xff]
  %v1453 = vld [vmem:[%s8 + $0x8] sm:$0xff]
  %v1454 = vld [vmem:[%s8 + $0x10] sm:$0xff]
  %v1455 = vld [vmem:[%s8 + $0x18] sm:$0xff]
  %v1456 = vld [vmem:[%s8 + $0x20] sm:$0xff]
  %v1457 = vld [vmem:[%s8 + $0x28] sm:$0xff]
  %v1458 = vld [vmem:[%s8 + $0x30] sm:$0xff]
  %v1459 = vld [vmem:[%s8 + $0x38] sm:$0xff]
  %v1460 = vld [vmem:[%s10] sm:$0x3]
  %v1462 = vlaneseq
  %v1463 = vshrl.u32 %v1462, 7
  %v1464 = vsub.s32 0, %v1463
  %v1465 = vrot.slane %v1460, %v1464
  %v1466 = vlaneseq
  %v1467 = vshrl.u32 %v1466, 7
  %v1468 = vsub.s32 1, %v1467
  %v1469 = vrot.slane %v1460, %v1468
  %v1480 = vunpack.c.l.b16 %v1452
  %v1481 = vunpack.c.h.b16 %v1452
  %v1482 = vunpack.c.l.b16 %v1453
  %v1483 = vunpack.c.h.b16 %v1453
  %v1484 = vunpack.c.l.b16 %v1454
  %v1485 = vunpack.c.h.b16 %v1454
  %v1486 = vunpack.c.l.b16 %v1455
  %v1487 = vunpack.c.h.b16 %v1455
  %v1488 = vunpack.c.l.b16 %v1456
  %v1489 = vunpack.c.h.b16 %v1456
  %v1490 = vunpack.c.l.b16 %v1457
  %v1491 = vunpack.c.h.b16 %v1457
  %v1492 = vunpack.c.l.b16 %v1458
  %v1493 = vunpack.c.h.b16 %v1458
  %v1494 = vunpack.c.l.b16 %v1459
  %v1495 = vunpack.c.h.b16 %v1459
  %v1496 = vpack.c.b16 %v1482, %v1480
  %v1497 = vpack.c.b16 %v1483, %v1481
  %v1498 = vpack.c.b16 %v1486, %v1484
  %v1499 = vpack.c.b16 %v1487, %v1485
  %v1500 = vpack.c.b16 %v1490, %v1488
  %v1501 = vpack.c.b16 %v1491, %v1489
  %v1502 = vpack.c.b16 %v1494, %v1492
  %v1503 = vpack.c.b16 %v1495, %v1493
  %vm1512 = vcmask 523264
  %v1514 = vsel %vm1512, %v1448, 0
  %v1517 = vsel %vm1512, %v1449, 0
  %v1520 = vsel %vm1512, %v1450, 0
  %v1523 = vsel %vm1512, %v1451, 0
  %1525 = vmatprep.subr.bf16.mxu0 %v1497
  %1526 = vmatpush1.bf16.msra.mxu0 %v1496
  %1527 = vmatprep.subr.bf16.mxu0 %v1499
  %1528 = vmatpush1.bf16.msra.mxu0 %v1498
  %1529 = vmatprep.subr.bf16.mxu0 %v1501
  %1530 = vmatpush1.bf16.msra.mxu0 %v1500
  %1531 = vmatprep.subr.bf16.mxu0 %v1503
  %1532 = vmatpush1.bf16.msra.mxu0 %v1502
  %1533 = vmatprep.subr.bf16.mxu0 0
  %1534 = vmatpush1.bf16.msra.mxu0 0
  %1535 = vmatprep.subr.bf16.mxu0 0
  %1536 = vmatpush1.bf16.msra.mxu0 0
  %1537 = vmatprep.subr.bf16.mxu0 0
  %1538 = vmatpush1.bf16.msra.mxu0 0
  %1539 = vmatprep.subr.bf16.mxu0 0
  %1540 = vmatpush1.bf16.msra.mxu0 0
  %1541 = vmatprep.subr.bf16.mxu0 0
  %1542 = vmatpush1.bf16.msra.mxu0 0
  %1543 = vmatprep.subr.bf16.mxu0 0
  %1544 = vmatpush1.bf16.msra.mxu0 0
  %1545 = vmatprep.subr.bf16.mxu0 0
  %1546 = vmatpush1.bf16.msra.mxu0 0
  %1547 = vmatprep.subr.bf16.mxu0 0
  %1548 = vmatpush1.bf16.msra.mxu0 0
  %1549 = vmatprep.subr.bf16.mxu0 0
  %1550 = vmatpush1.bf16.msra.mxu0 0
  %1551 = vmatprep.subr.bf16.mxu0 0
  %1552 = vmatpush1.bf16.msra.mxu0 0
  %1553 = vmatprep.subr.bf16.mxu0 0
  %1554 = vmatpush1.bf16.msra.mxu0 0
  %1555 = vmatprep.subr.bf16.mxu0 0
  %1556 = vmatpush1.bf16.msra.mxu0 0
  %1557 = vmatprep.mubr.bf16.mxu0 0
  %1558 = vmatmul.mubr.bf16.gmra.mrb[0].mxu0 %v1514
  %v1559 = vpop.f32.mrb[0].mxu0
  %v1560 = vadd.f32 %v1465, %v1559
  %v1561 = vpop.f32.mrb[0].mxu0
  %v1562 = vadd.f32 %v1469, %v1561
  %v1563 = vpop.f32.mrb[0].mxu0
  %v1564 = vadd.f32 %v1465, %v1563
  %v1565 = vpop.f32.mrb[0].mxu0
  %v1566 = vadd.f32 %v1469, %v1565
  %1567 = vmatprep.mubr.bf16.mxu0 0
  %1568 = vmatmul.mubr.bf16.gmra.mrb[0].mxu0 %v1517
  %v1569 = vpop.f32.mrb[0].mxu0
  %v1570 = vadd.f32 %v1465, %v1569
  %v1571 = vpop.f32.mrb[0].mxu0
  %v1572 = vadd.f32 %v1469, %v1571
  %v1573 = vpop.f32.mrb[0].mxu0
  %v1574 = vadd.f32 %v1465, %v1573
  %v1575 = vpop.f32.mrb[0].mxu0
  %v1576 = vadd.f32 %v1469, %v1575
  %1577 = vmatprep.mubr.bf16.mxu0 0
  %1578 = vmatmul.mubr.bf16.gmra.mrb[0].mxu0 %v1520
  %v1579 = vpop.f32.mrb[0].mxu0
  %v1580 = vadd.f32 %v1465, %v1579
  %v1581 = vpop.f32.mrb[0].mxu0
  %v1582 = vadd.f32 %v1469, %v1581
  %v1583 = vpop.f32.mrb[0].mxu0
  %v1584 = vadd.f32 %v1465, %v1583
  %v1585 = vpop.f32.mrb[0].mxu0
  %v1586 = vadd.f32 %v1469, %v1585
  %1587 = vmatprep.mubr.bf16.mxu0 0
  %1588 = vmatmul.mubr.bf16.gmra.mrb[0].mxu0 %v1523
  %v1589 = vpop.f32.mrb[0].mxu0
  %v1590 = vadd.f32 %v1465, %v1589
  %v1591 = vpop.f32.mrb[0].mxu0
  %v1592 = vadd.f32 %v1469, %v1591
  %v1593 = vpop.f32.mrb[0].mxu0
  %v1594 = vadd.f32 %v1465, %v1593
  %v1595 = vpop.f32.mrb[0].mxu0
  %v1596 = vadd.f32 %v1469, %v1595
  %1597 = vdwg.mxu0
  %v1598 = vld [vmem:[%s9] sm:$0xff]
  %v1599 = vld [vmem:[%s9 + $0x8] sm:$0xff]
  %v1600 = vld [vmem:[%s9 + $0x10] sm:$0xff]
  %v1601 = vld [vmem:[%s9 + $0x18] sm:$0xff]
  %v1602 = vld [vmem:[%s9 + $0x20] sm:$0xff]
  %v1603 = vld [vmem:[%s9 + $0x28] sm:$0xff]
  %v1604 = vld [vmem:[%s9 + $0x30] sm:$0xff]
  %v1605 = vld [vmem:[%s9 + $0x38] sm:$0xff]
  %s1606 = scalar_lea.vmem %s3, 16
  %v1607 = vld [vmem:[%s1606] sm:$0xff]
  %s1608 = scalar_lea.vmem %s3, 24
  %v1609 = vld [vmem:[%s1608] sm:$0xff]
  %s1610 = scalar_lea.vmem %s4, 16
  %v1611 = vld [vmem:[%s1610] sm:$0xff]
  %s1612 = scalar_lea.vmem %s4, 24
  %v1613 = vld [vmem:[%s1612] sm:$0xff]
  %v1615 = vsel %vm203, %v1607, 0
  %v1618 = vsel %vm203, %v1609, 0
  %1620 = vmatprep.subr.mxu0 %v1599
  %1621 = vmatpush1.msra.mxu0 %v1598
  %1622 = vmatprep.subr.mxu0 %v1601
  %1623 = vmatpush1.msra.mxu0 %v1600
  %1624 = vmatprep.subr.mxu0 %v1603
  %1625 = vmatpush1.msra.mxu0 %v1602
  %1626 = vmatprep.subr.mxu0 %v1605
  %1627 = vmatpush1.msra.mxu0 %v1604
  %1628 = vmatprep.subr.mxu0 0.0
  %1629 = vmatpush1.msra.mxu0 0.0
  %1630 = vmatprep.subr.mxu0 0.0
  %1631 = vmatpush1.msra.mxu0 0.0
  %1632 = vmatprep.subr.mxu0 0.0
  %1633 = vmatpush1.msra.mxu0 0.0
  %1634 = vmatprep.subr.mxu0 0.0
  %1635 = vmatpush1.msra.mxu0 0.0
  %1636 = vmatprep.subr.mxu0 0.0
  %1637 = vmatpush1.msra.mxu0 0.0
  %1638 = vmatprep.subr.mxu0 0.0
  %1639 = vmatpush1.msra.mxu0 0.0
  %1640 = vmatprep.subr.mxu0 0.0
  %1641 = vmatpush1.msra.mxu0 0.0
  %1642 = vmatprep.subr.mxu0 0.0
  %1643 = vmatpush1.msra.mxu0 0.0
  %1644 = vmatprep.subr.mxu0 0.0
  %1645 = vmatpush1.msra.mxu0 0.0
  %1646 = vmatprep.subr.mxu0 0.0
  %1647 = vmatpush1.msra.mxu0 0.0
  %1648 = vmatprep.subr.mxu0 0.0
  %1649 = vmatpush1.msra.mxu0 0.0
  %1650 = vmatprep.subr.mxu0 0.0
  %1651 = vmatpush1.msra.mxu0 0.0
  %1652 = vmatprep.subr.mxu0 0.0
  %1653 = vmatpush1.msra.mxu0 0.0
  %1654 = vmatprep.subr.mxu0 0.0
  %1655 = vmatpush1.msra.mxu0 0.0
  %1656 = vmatprep.subr.mxu0 0.0
  %1657 = vmatpush1.msra.mxu0 0.0
  %1658 = vmatprep.subr.mxu0 0.0
  %1659 = vmatpush1.msra.mxu0 0.0
  %1660 = vmatprep.subr.mxu0 0.0
  %1661 = vmatpush1.msra.mxu0 0.0
  %1662 = vmatprep.subr.mxu0 0.0
  %1663 = vmatpush1.msra.mxu0 0.0
  %1664 = vmatprep.subr.mxu0 0.0
  %1665 = vmatpush1.msra.mxu0 0.0
  %1666 = vmatprep.subr.mxu0 0.0
  %1667 = vmatpush1.msra.mxu0 0.0
  %1668 = vmatprep.subr.mxu0 0.0
  %1669 = vmatpush1.msra.mxu0 0.0
  %1670 = vmatprep.subr.mxu0 0.0
  %1671 = vmatpush1.msra.mxu0 0.0
  %1672 = vmatprep.subr.mxu0 0.0
  %1673 = vmatpush1.msra.mxu0 0.0
  %1674 = vmatprep.subr.mxu0 0.0
  %1675 = vmatpush1.msra.mxu0 0.0
  %1676 = vmatprep.subr.mxu0 0.0
  %1677 = vmatpush1.msra.mxu0 0.0
  %1678 = vmatprep.subr.mxu0 0.0
  %1679 = vmatpush1.msra.mxu0 0.0
  %1680 = vmatprep.subr.mxu0 0.0
  %1681 = vmatpush1.msra.mxu0 0.0
  %1682 = vmatprep.subr.mxu0 0.0
  %1683 = vmatpush1.msra.mxu0 0.0
  %1684 = vmatprep.mubr.f32.mxu0 0.0
  %1685 = vmatmul.mubr.f32.gmra.mrb[0].mxu0 %v1615
  %v1686 = vpop.f32.mrb[0].mxu0
  %v1687 = vadd.f32 0.0, %v1686
  %v1688 = vpop.f32.mrb[0].mxu0
  %1689 = vmatprep.mubr.f32.mxu0 0.0
  %1690 = vmatmul.mubr.f32.gmra.mrb[0].mxu0 %v1618
  %v1691 = vpop.f32.mrb[0].mxu0
  %v1692 = vpop.f32.mrb[0].mxu0
  %v1693 = vadd.f32 0.0, %v1692
  %1694 = vdwg.mxu0
  %v1695 = vadd.f32 %v1687, %v1560
  %v1696 = vadd.f32 %v1693, %v1596
  %v1697 = vxor.u32 %v1695, 2147483648
  %v1698 = vxor.u32 %v1696, 2147483648
  %v1699 = vmul.f32 %v1697, 1.442695
  %v1700 = vpow.pop %v1699
  %v1701 = vmul.f32 %v1698, 1.442695
  %v1702 = vpow.pop %v1701
  %v1703 = vadd.f32 %v1700, 1.0
  %v1704 = vadd.f32 %v1702, 1.0
  %v1705 = vrcp.pop %v1703
  %v1706 = vmul.f32 1.0, %v1705
  %v1707 = vrcp.pop %v1704
  %v1708 = vmul.f32 1.0, %v1707
  %v1709 = vtanh.pop %v1695
  %v1710 = vtanh.pop %v1696
  %1713 = vrot.lane.b32.xlu0 %v1611, 32
  %v1714 = vpop.permute.xlu0 %1713
  %1715 = vrot.lane.b32.xlu0 %v1613, 32
  %v1716 = vpop.permute.xlu0 %1715
  %v1719 = vmul.f32 %v1706, %v1714
  %v1720 = vmul.f32 %v1708, %v1716
  %1723 = vrot.lane.b32.xlu0 %v1709, 64
  %v1724 = vpop.permute.xlu0 %1723
  %1725 = vrot.lane.b32.xlu0 %v1710, 64
  %v1726 = vpop.permute.xlu0 %1725
  %v1729 = vmul.f32 %v1706, %v1724
  %v1730 = vmul.f32 %v1708, %v1726
  %1733 = vrot.lane.b32.xlu0 %v1729, 32
  %v1734 = vpop.permute.xlu0 %1733
  %1735 = vrot.lane.b32.xlu0 %v1730, 32
  %v1736 = vpop.permute.xlu0 %1735
  %v1739 = vadd.f32 %v1719, %v1734
  %v1740 = vadd.f32 %v1720, %v1736
  %v1741 = vtanh.pop %v1739
  %v1742 = vtanh.pop %v1740
  %1745 = vrot.lane.b32.xlu0 %v1741, 64
  %v1746 = vpop.permute.xlu0 %1745
  %1747 = vrot.lane.b32.xlu0 %v1742, 64
  %v1748 = vpop.permute.xlu0 %1747
  %v1751 = vmul.f32 %v1706, %v1746
  %v1752 = vmul.f32 %v1708, %v1748
  %1755 = vrot.lane.b32.xlu0 %v1751, 32
  %v1756 = vpop.permute.xlu0 %1755
  %1757 = vrot.lane.b32.xlu0 %v1752, 32
  %v1758 = vpop.permute.xlu0 %1757
  %v1759 = vsel %vm203, %v1756, 0
  %v1761 = vsel %vm203, %v1758, 0
  %1763 = vmatprep.subr.mxu0 %v1599
  %1764 = vmatpush1.msra.mxu0 %v1598
  %1765 = vmatprep.subr.mxu0 %v1601
  %1766 = vmatpush1.msra.mxu0 %v1600
  %1767 = vmatprep.subr.mxu0 %v1603
  %1768 = vmatpush1.msra.mxu0 %v1602
  %1769 = vmatprep.subr.mxu0 %v1605
  %1770 = vmatpush1.msra.mxu0 %v1604
  %1771 = vmatprep.subr.mxu0 0.0
  %1772 = vmatpush1.msra.mxu0 0.0
  %1773 = vmatprep.subr.mxu0 0.0
  %1774 = vmatpush1.msra.mxu0 0.0
  %1775 = vmatprep.subr.mxu0 0.0
  %1776 = vmatpush1.msra.mxu0 0.0
  %1777 = vmatprep.subr.mxu0 0.0
  %1778 = vmatpush1.msra.mxu0 0.0
  %1779 = vmatprep.subr.mxu0 0.0
  %1780 = vmatpush1.msra.mxu0 0.0
  %1781 = vmatprep.subr.mxu0 0.0
  %1782 = vmatpush1.msra.mxu0 0.0
  %1783 = vmatprep.subr.mxu0 0.0
  %1784 = vmatpush1.msra.mxu0 0.0
  %1785 = vmatprep.subr.mxu0 0.0
  %1786 = vmatpush1.msra.mxu0 0.0
  %1787 = vmatprep.subr.mxu0 0.0
  %1788 = vmatpush1.msra.mxu0 0.0
  %1789 = vmatprep.subr.mxu0 0.0
  %1790 = vmatpush1.msra.mxu0 0.0
  %1791 = vmatprep.subr.mxu0 0.0
  %1792 = vmatpush1.msra.mxu0 0.0
  %1793 = vmatprep.subr.mxu0 0.0
  %1794 = vmatpush1.msra.mxu0 0.0
  %1795 = vmatprep.subr.mxu0 0.0
  %1796 = vmatpush1.msra.mxu0 0.0
  %1797 = vmatprep.subr.mxu0 0.0
  %1798 = vmatpush1.msra.mxu0 0.0
  %1799 = vmatprep.subr.mxu0 0.0
  %1800 = vmatpush1.msra.mxu0 0.0
  %1801 = vmatprep.subr.mxu0 0.0
  %1802 = vmatpush1.msra.mxu0 0.0
  %1803 = vmatprep.subr.mxu0 0.0
  %1804 = vmatpush1.msra.mxu0 0.0
  %1805 = vmatprep.subr.mxu0 0.0
  %1806 = vmatpush1.msra.mxu0 0.0
  %1807 = vmatprep.subr.mxu0 0.0
  %1808 = vmatpush1.msra.mxu0 0.0
  %1809 = vmatprep.subr.mxu0 0.0
  %1810 = vmatpush1.msra.mxu0 0.0
  %1811 = vmatprep.subr.mxu0 0.0
  %1812 = vmatpush1.msra.mxu0 0.0
  %1813 = vmatprep.subr.mxu0 0.0
  %1814 = vmatpush1.msra.mxu0 0.0
  %1815 = vmatprep.subr.mxu0 0.0
  %1816 = vmatpush1.msra.mxu0 0.0
  %1817 = vmatprep.subr.mxu0 0.0
  %1818 = vmatpush1.msra.mxu0 0.0
  %1819 = vmatprep.subr.mxu0 0.0
  %1820 = vmatpush1.msra.mxu0 0.0
  %1821 = vmatprep.subr.mxu0 0.0
  %1822 = vmatpush1.msra.mxu0 0.0
  %1823 = vmatprep.subr.mxu0 0.0
  %1824 = vmatpush1.msra.mxu0 0.0
  %1825 = vmatprep.subr.mxu0 0.0
  %1826 = vmatpush1.msra.mxu0 0.0
  %1827 = vmatprep.mubr.f32.mxu0 0.0
  %1828 = vmatmul.mubr.f32.gmra.mrb[0].mxu0 %v1759
  %v1829 = vpop.f32.mrb[0].mxu0
  %v1830 = vadd.f32 0.0, %v1829
  %v1831 = vpop.f32.mrb[0].mxu0
  %1832 = vmatprep.mubr.f32.mxu0 0.0
  %1833 = vmatmul.mubr.f32.gmra.mrb[0].mxu0 %v1761
  %v1834 = vpop.f32.mrb[0].mxu0
  %v1835 = vpop.f32.mrb[0].mxu0
  %v1836 = vadd.f32 0.0, %v1835
  %1837 = vdwg.mxu0
  %v1838 = vadd.f32 %v1830, %v1564
  %v1839 = vadd.f32 %v1836, %v1592
  %v1840 = vxor.u32 %v1838, 2147483648
  %v1841 = vxor.u32 %v1839, 2147483648
  %v1842 = vmul.f32 %v1840, 1.442695
  %v1843 = vpow.pop %v1842
  %v1844 = vmul.f32 %v1841, 1.442695
  %v1845 = vpow.pop %v1844
  %v1846 = vadd.f32 %v1843, 1.0
  %v1847 = vadd.f32 %v1845, 1.0
  %v1848 = vrcp.pop %v1846
  %v1849 = vmul.f32 1.0, %v1848
  %v1850 = vrcp.pop %v1847
  %v1851 = vmul.f32 1.0, %v1850
  %v1852 = vtanh.pop %v1838
  %v1853 = vtanh.pop %v1839
  %v1854 = vmul.f32 %v1849, %v1739
  %v1855 = vmul.f32 %v1851, %v1740
  %1858 = vrot.lane.b32.xlu0 %v1852, 64
  %v1859 = vpop.permute.xlu0 %1858
  %1860 = vrot.lane.b32.xlu0 %v1853, 64
  %v1861 = vpop.permute.xlu0 %1860
  %v1864 = vmul.f32 %v1849, %v1859
  %v1865 = vmul.f32 %v1851, %v1861
  %1868 = vrot.lane.b32.xlu0 %v1864, 32
  %v1869 = vpop.permute.xlu0 %1868
  %1870 = vrot.lane.b32.xlu0 %v1865, 32
  %v1871 = vpop.permute.xlu0 %1870
  %v1874 = vadd.f32 %v1854, %v1869
  %v1875 = vadd.f32 %v1855, %v1871
  %v1876 = vtanh.pop %v1874
  %v1877 = vtanh.pop %v1875
  %1880 = vrot.lane.b32.xlu0 %v1876, 64
  %v1881 = vpop.permute.xlu0 %1880
  %1882 = vrot.lane.b32.xlu0 %v1877, 64
  %v1883 = vpop.permute.xlu0 %1882
  %v1886 = vmul.f32 %v1849, %v1881
  %v1887 = vmul.f32 %v1851, %v1883
  %1890 = vrot.lane.b32.xlu0 %v1886, 32
  %v1891 = vpop.permute.xlu0 %1890
  %1892 = vrot.lane.b32.xlu0 %v1887, 32
  %v1893 = vpop.permute.xlu0 %1892
  %v1894 = vsel %vm203, %v1891, 0
  %v1896 = vsel %vm203, %v1893, 0
  %1898 = vmatprep.subr.mxu0 %v1599
  %1899 = vmatpush1.msra.mxu0 %v1598
  %1900 = vmatprep.subr.mxu0 %v1601
  %1901 = vmatpush1.msra.mxu0 %v1600
  %1902 = vmatprep.subr.mxu0 %v1603
  %1903 = vmatpush1.msra.mxu0 %v1602
  %1904 = vmatprep.subr.mxu0 %v1605
  %1905 = vmatpush1.msra.mxu0 %v1604
  %1906 = vmatprep.subr.mxu0 0.0
  %1907 = vmatpush1.msra.mxu0 0.0
  %1908 = vmatprep.subr.mxu0 0.0
  %1909 = vmatpush1.msra.mxu0 0.0
  %1910 = vmatprep.subr.mxu0 0.0
  %1911 = vmatpush1.msra.mxu0 0.0
  %1912 = vmatprep.subr.mxu0 0.0
  %1913 = vmatpush1.msra.mxu0 0.0
  %1914 = vmatprep.subr.mxu0 0.0
  %1915 = vmatpush1.msra.mxu0 0.0
  %1916 = vmatprep.subr.mxu0 0.0
  %1917 = vmatpush1.msra.mxu0 0.0
  %1918 = vmatprep.subr.mxu0 0.0
  %1919 = vmatpush1.msra.mxu0 0.0
  %1920 = vmatprep.subr.mxu0 0.0
  %1921 = vmatpush1.msra.mxu0 0.0
  %1922 = vmatprep.subr.mxu0 0.0
  %1923 = vmatpush1.msra.mxu0 0.0
  %1924 = vmatprep.subr.mxu0 0.0
  %1925 = vmatpush1.msra.mxu0 0.0
  %1926 = vmatprep.subr.mxu0 0.0
  %1927 = vmatpush1.msra.mxu0 0.0
  %1928 = vmatprep.subr.mxu0 0.0
  %1929 = vmatpush1.msra.mxu0 0.0
  %1930 = vmatprep.subr.mxu0 0.0
  %1931 = vmatpush1.msra.mxu0 0.0
  %1932 = vmatprep.subr.mxu0 0.0
  %1933 = vmatpush1.msra.mxu0 0.0
  %1934 = vmatprep.subr.mxu0 0.0
  %1935 = vmatpush1.msra.mxu0 0.0
  %1936 = vmatprep.subr.mxu0 0.0
  %1937 = vmatpush1.msra.mxu0 0.0
  %1938 = vmatprep.subr.mxu0 0.0
  %1939 = vmatpush1.msra.mxu0 0.0
  %1940 = vmatprep.subr.mxu0 0.0
  %1941 = vmatpush1.msra.mxu0 0.0
  %1942 = vmatprep.subr.mxu0 0.0
  %1943 = vmatpush1.msra.mxu0 0.0
  %1944 = vmatprep.subr.mxu0 0.0
  %1945 = vmatpush1.msra.mxu0 0.0
  %1946 = vmatprep.subr.mxu0 0.0
  %1947 = vmatpush1.msra.mxu0 0.0
  %1948 = vmatprep.subr.mxu0 0.0
  %1949 = vmatpush1.msra.mxu0 0.0
  %1950 = vmatprep.subr.mxu0 0.0
  %1951 = vmatpush1.msra.mxu0 0.0
  %1952 = vmatprep.subr.mxu0 0.0
  %1953 = vmatpush1.msra.mxu0 0.0
  %1954 = vmatprep.subr.mxu0 0.0
  %1955 = vmatpush1.msra.mxu0 0.0
  %1956 = vmatprep.subr.mxu0 0.0
  %1957 = vmatpush1.msra.mxu0 0.0
  %1958 = vmatprep.subr.mxu0 0.0
  %1959 = vmatpush1.msra.mxu0 0.0
  %1960 = vmatprep.subr.mxu0 0.0
  %1961 = vmatpush1.msra.mxu0 0.0
  %1962 = vmatprep.mubr.f32.mxu0 0.0
  %1963 = vmatmul.mubr.f32.gmra.mrb[0].mxu0 %v1894
  %v1964 = vpop.f32.mrb[0].mxu0
  %v1965 = vadd.f32 0.0, %v1964
  %v1966 = vpop.f32.mrb[0].mxu0
  %1967 = vmatprep.mubr.f32.mxu0 0.0
  %1968 = vmatmul.mubr.f32.gmra.mrb[0].mxu0 %v1896
  %v1969 = vpop.f32.mrb[0].mxu0
  %v1970 = vpop.f32.mrb[0].mxu0
  %v1971 = vadd.f32 0.0, %v1970
  %1972 = vdwg.mxu0
  %v1973 = vadd.f32 %v1965, %v1570
  %v1974 = vadd.f32 %v1971, %v1586
  %v1975 = vxor.u32 %v1973, 2147483648
  %v1976 = vxor.u32 %v1974, 2147483648
  %v1977 = vmul.f32 %v1975, 1.442695
  %v1978 = vpow.pop %v1977
  %v1979 = vmul.f32 %v1976, 1.442695
  %v1980 = vpow.pop %v1979
  %v1981 = vadd.f32 %v1978, 1.0
  %v1982 = vadd.f32 %v1980, 1.0
  %v1983 = vrcp.pop %v1981
  %v1984 = vmul.f32 1.0, %v1983
  %v1985 = vrcp.pop %v1982
  %v1986 = vmul.f32 1.0, %v1985
  %v1987 = vtanh.pop %v1973
  %v1988 = vtanh.pop %v1974
  %v1989 = vmul.f32 %v1984, %v1874
  %v1990 = vmul.f32 %v1986, %v1875
  %1993 = vrot.lane.b32.xlu0 %v1987, 64
  %v1994 = vpop.permute.xlu0 %1993
  %1995 = vrot.lane.b32.xlu0 %v1988, 64
  %v1996 = vpop.permute.xlu0 %1995
  %v1999 = vmul.f32 %v1984, %v1994
  %v2000 = vmul.f32 %v1986, %v1996
  %2003 = vrot.lane.b32.xlu0 %v1999, 32
  %v2004 = vpop.permute.xlu0 %2003
  %2005 = vrot.lane.b32.xlu0 %v2000, 32
  %v2006 = vpop.permute.xlu0 %2005
  %v2009 = vadd.f32 %v1989, %v2004
  %v2010 = vadd.f32 %v1990, %v2006
  %v2011 = vtanh.pop %v2009
  %v2012 = vtanh.pop %v2010
  %2015 = vrot.lane.b32.xlu0 %v2011, 64
  %v2016 = vpop.permute.xlu0 %2015
  %2017 = vrot.lane.b32.xlu0 %v2012, 64
  %v2018 = vpop.permute.xlu0 %2017
  %v2021 = vmul.f32 %v1984, %v2016
  %v2022 = vmul.f32 %v1986, %v2018
  %2025 = vrot.lane.b32.xlu0 %v2021, 32
  %v2026 = vpop.permute.xlu0 %2025
  %2027 = vrot.lane.b32.xlu0 %v2022, 32
  %v2028 = vpop.permute.xlu0 %2027
  %v2029 = vsel %vm203, %v2026, 0
  %v2031 = vsel %vm203, %v2028, 0
  %2033 = vmatprep.subr.mxu0 %v1599
  %2034 = vmatpush1.msra.mxu0 %v1598
  %2035 = vmatprep.subr.mxu0 %v1601
  %2036 = vmatpush1.msra.mxu0 %v1600
  %2037 = vmatprep.subr.mxu0 %v1603
  %2038 = vmatpush1.msra.mxu0 %v1602
  %2039 = vmatprep.subr.mxu0 %v1605
  %2040 = vmatpush1.msra.mxu0 %v1604
  %2041 = vmatprep.subr.mxu0 0.0
  %2042 = vmatpush1.msra.mxu0 0.0
  %2043 = vmatprep.subr.mxu0 0.0
  %2044 = vmatpush1.msra.mxu0 0.0
  %2045 = vmatprep.subr.mxu0 0.0
  %2046 = vmatpush1.msra.mxu0 0.0
  %2047 = vmatprep.subr.mxu0 0.0
  %2048 = vmatpush1.msra.mxu0 0.0
  %2049 = vmatprep.subr.mxu0 0.0
  %2050 = vmatpush1.msra.mxu0 0.0
  %2051 = vmatprep.subr.mxu0 0.0
  %2052 = vmatpush1.msra.mxu0 0.0
  %2053 = vmatprep.subr.mxu0 0.0
  %2054 = vmatpush1.msra.mxu0 0.0
  %2055 = vmatprep.subr.mxu0 0.0
  %2056 = vmatpush1.msra.mxu0 0.0
  %2057 = vmatprep.subr.mxu0 0.0
  %2058 = vmatpush1.msra.mxu0 0.0
  %2059 = vmatprep.subr.mxu0 0.0
  %2060 = vmatpush1.msra.mxu0 0.0
  %2061 = vmatprep.subr.mxu0 0.0
  %2062 = vmatpush1.msra.mxu0 0.0
  %2063 = vmatprep.subr.mxu0 0.0
  %2064 = vmatpush1.msra.mxu0 0.0
  %2065 = vmatprep.subr.mxu0 0.0
  %2066 = vmatpush1.msra.mxu0 0.0
  %2067 = vmatprep.subr.mxu0 0.0
  %2068 = vmatpush1.msra.mxu0 0.0
  %2069 = vmatprep.subr.mxu0 0.0
  %2070 = vmatpush1.msra.mxu0 0.0
  %2071 = vmatprep.subr.mxu0 0.0
  %2072 = vmatpush1.msra.mxu0 0.0
  %2073 = vmatprep.subr.mxu0 0.0
  %2074 = vmatpush1.msra.mxu0 0.0
  %2075 = vmatprep.subr.mxu0 0.0
  %2076 = vmatpush1.msra.mxu0 0.0
  %2077 = vmatprep.subr.mxu0 0.0
  %2078 = vmatpush1.msra.mxu0 0.0
  %2079 = vmatprep.subr.mxu0 0.0
  %2080 = vmatpush1.msra.mxu0 0.0
  %2081 = vmatprep.subr.mxu0 0.0
  %2082 = vmatpush1.msra.mxu0 0.0
  %2083 = vmatprep.subr.mxu0 0.0
  %2084 = vmatpush1.msra.mxu0 0.0
  %2085 = vmatprep.subr.mxu0 0.0
  %2086 = vmatpush1.msra.mxu0 0.0
  %2087 = vmatprep.subr.mxu0 0.0
  %2088 = vmatpush1.msra.mxu0 0.0
  %2089 = vmatprep.subr.mxu0 0.0
  %2090 = vmatpush1.msra.mxu0 0.0
  %2091 = vmatprep.subr.mxu0 0.0
  %2092 = vmatpush1.msra.mxu0 0.0
  %2093 = vmatprep.subr.mxu0 0.0
  %2094 = vmatpush1.msra.mxu0 0.0
  %2095 = vmatprep.subr.mxu0 0.0
  %2096 = vmatpush1.msra.mxu0 0.0
  %2097 = vmatprep.mubr.f32.mxu0 0.0
  %2098 = vmatmul.mubr.f32.gmra.mrb[0].mxu0 %v2029
  %v2099 = vpop.f32.mrb[0].mxu0
  %v2100 = vadd.f32 0.0, %v2099
  %v2101 = vpop.f32.mrb[0].mxu0
  %2102 = vmatprep.mubr.f32.mxu0 0.0
  %2103 = vmatmul.mubr.f32.gmra.mrb[0].mxu0 %v2031
  %v2104 = vpop.f32.mrb[0].mxu0
  %v2105 = vpop.f32.mrb[0].mxu0
  %v2106 = vadd.f32 0.0, %v2105
  %2107 = vdwg.mxu0
  %v2108 = vadd.f32 %v2100, %v1574
  %v2109 = vadd.f32 %v2106, %v1582
  %v2110 = vxor.u32 %v2108, 2147483648
  %v2111 = vxor.u32 %v2109, 2147483648
  %v2112 = vmul.f32 %v2110, 1.442695
  %v2113 = vpow.pop %v2112
  %v2114 = vmul.f32 %v2111, 1.442695
  %v2115 = vpow.pop %v2114
  %v2116 = vadd.f32 %v2113, 1.0
  %v2117 = vadd.f32 %v2115, 1.0
  %v2118 = vrcp.pop %v2116
  %v2119 = vmul.f32 1.0, %v2118
  %v2120 = vrcp.pop %v2117
  %v2121 = vmul.f32 1.0, %v2120
  %v2122 = vtanh.pop %v2108
  %v2123 = vtanh.pop %v2109
  %v2124 = vmul.f32 %v2119, %v2009
  %v2125 = vmul.f32 %v2121, %v2010
  %2128 = vrot.lane.b32.xlu0 %v2122, 64
  %v2129 = vpop.permute.xlu0 %2128
  %2130 = vrot.lane.b32.xlu0 %v2123, 64
  %v2131 = vpop.permute.xlu0 %2130
  %v2134 = vmul.f32 %v2119, %v2129
  %v2135 = vmul.f32 %v2121, %v2131
  %2138 = vrot.lane.b32.xlu0 %v2134, 32
  %v2139 = vpop.permute.xlu0 %2138
  %2140 = vrot.lane.b32.xlu0 %v2135, 32
  %v2141 = vpop.permute.xlu0 %2140
  %v2144 = vadd.f32 %v2124, %v2139
  %v2145 = vadd.f32 %v2125, %v2141
  %v2146 = vtanh.pop %v2144
  %v2147 = vtanh.pop %v2145
  %2150 = vrot.lane.b32.xlu0 %v2146, 64
  %v2151 = vpop.permute.xlu0 %2150
  %2152 = vrot.lane.b32.xlu0 %v2147, 64
  %v2153 = vpop.permute.xlu0 %2152
  %v2156 = vmul.f32 %v2119, %v2151
  %v2157 = vmul.f32 %v2121, %v2153
  %2160 = vrot.lane.b32.xlu0 %v2156, 32
  %v2161 = vpop.permute.xlu0 %2160
  %2162 = vrot.lane.b32.xlu0 %v2157, 32
  %v2163 = vpop.permute.xlu0 %2162
  %v2164 = vsel %vm203, %v2161, 0
  %v2166 = vsel %vm203, %v2163, 0
  %2168 = vmatprep.subr.mxu0 %v1599
  %2169 = vmatpush1.msra.mxu0 %v1598
  %2170 = vmatprep.subr.mxu0 %v1601
  %2171 = vmatpush1.msra.mxu0 %v1600
  %2172 = vmatprep.subr.mxu0 %v1603
  %2173 = vmatpush1.msra.mxu0 %v1602
  %2174 = vmatprep.subr.mxu0 %v1605
  %2175 = vmatpush1.msra.mxu0 %v1604
  %2176 = vmatprep.subr.mxu0 0.0
  %2177 = vmatpush1.msra.mxu0 0.0
  %2178 = vmatprep.subr.mxu0 0.0
  %2179 = vmatpush1.msra.mxu0 0.0
  %2180 = vmatprep.subr.mxu0 0.0
  %2181 = vmatpush1.msra.mxu0 0.0
  %2182 = vmatprep.subr.mxu0 0.0
  %2183 = vmatpush1.msra.mxu0 0.0
  %2184 = vmatprep.subr.mxu0 0.0
  %2185 = vmatpush1.msra.mxu0 0.0
  %2186 = vmatprep.subr.mxu0 0.0
  %2187 = vmatpush1.msra.mxu0 0.0
  %2188 = vmatprep.subr.mxu0 0.0
  %2189 = vmatpush1.msra.mxu0 0.0
  %2190 = vmatprep.subr.mxu0 0.0
  %2191 = vmatpush1.msra.mxu0 0.0
  %2192 = vmatprep.subr.mxu0 0.0
  %2193 = vmatpush1.msra.mxu0 0.0
  %2194 = vmatprep.subr.mxu0 0.0
  %2195 = vmatpush1.msra.mxu0 0.0
  %2196 = vmatprep.subr.mxu0 0.0
  %2197 = vmatpush1.msra.mxu0 0.0
  %2198 = vmatprep.subr.mxu0 0.0
  %2199 = vmatpush1.msra.mxu0 0.0
  %2200 = vmatprep.subr.mxu0 0.0
  %2201 = vmatpush1.msra.mxu0 0.0
  %2202 = vmatprep.subr.mxu0 0.0
  %2203 = vmatpush1.msra.mxu0 0.0
  %2204 = vmatprep.subr.mxu0 0.0
  %2205 = vmatpush1.msra.mxu0 0.0
  %2206 = vmatprep.subr.mxu0 0.0
  %2207 = vmatpush1.msra.mxu0 0.0
  %2208 = vmatprep.subr.mxu0 0.0
  %2209 = vmatpush1.msra.mxu0 0.0
  %2210 = vmatprep.subr.mxu0 0.0
  %2211 = vmatpush1.msra.mxu0 0.0
  %2212 = vmatprep.subr.mxu0 0.0
  %2213 = vmatpush1.msra.mxu0 0.0
  %2214 = vmatprep.subr.mxu0 0.0
  %2215 = vmatpush1.msra.mxu0 0.0
  %2216 = vmatprep.subr.mxu0 0.0
  %2217 = vmatpush1.msra.mxu0 0.0
  %2218 = vmatprep.subr.mxu0 0.0
  %2219 = vmatpush1.msra.mxu0 0.0
  %2220 = vmatprep.subr.mxu0 0.0
  %2221 = vmatpush1.msra.mxu0 0.0
  %2222 = vmatprep.subr.mxu0 0.0
  %2223 = vmatpush1.msra.mxu0 0.0
  %2224 = vmatprep.subr.mxu0 0.0
  %2225 = vmatpush1.msra.mxu0 0.0
  %2226 = vmatprep.subr.mxu0 0.0
  %2227 = vmatpush1.msra.mxu0 0.0
  %2228 = vmatprep.subr.mxu0 0.0
  %2229 = vmatpush1.msra.mxu0 0.0
  %2230 = vmatprep.subr.mxu0 0.0
  %2231 = vmatpush1.msra.mxu0 0.0
  %2232 = vmatprep.mubr.f32.mxu0 0.0
  %2233 = vmatmul.mubr.f32.gmra.mrb[0].mxu0 %v2164
  %v2234 = vpop.f32.mrb[0].mxu0
  %v2235 = vadd.f32 0.0, %v2234
  %v2236 = vpop.f32.mrb[0].mxu0
  %2237 = vmatprep.mubr.f32.mxu0 0.0
  %2238 = vmatmul.mubr.f32.gmra.mrb[0].mxu0 %v2166
  %v2239 = vpop.f32.mrb[0].mxu0
  %v2240 = vpop.f32.mrb[0].mxu0
  %v2241 = vadd.f32 0.0, %v2240
  %2242 = vdwg.mxu0
  %v2243 = vadd.f32 %v2235, %v1580
  %v2244 = vadd.f32 %v2241, %v1576
  %v2245 = vxor.u32 %v2243, 2147483648
  %v2246 = vxor.u32 %v2244, 2147483648
  %v2247 = vmul.f32 %v2245, 1.442695
  %v2248 = vpow.pop %v2247
  %v2249 = vmul.f32 %v2246, 1.442695
  %v2250 = vpow.pop %v2249
  %v2251 = vadd.f32 %v2248, 1.0
  %v2252 = vadd.f32 %v2250, 1.0
  %v2253 = vrcp.pop %v2251
  %v2254 = vmul.f32 1.0, %v2253
  %v2255 = vrcp.pop %v2252
  %v2256 = vmul.f32 1.0, %v2255
  %v2257 = vtanh.pop %v2243
  %v2258 = vtanh.pop %v2244
  %v2259 = vmul.f32 %v2254, %v2144
  %v2260 = vmul.f32 %v2256, %v2145
  %2263 = vrot.lane.b32.xlu0 %v2257, 64
  %v2264 = vpop.permute.xlu0 %2263
  %2265 = vrot.lane.b32.xlu0 %v2258, 64
  %v2266 = vpop.permute.xlu0 %2265
  %v2269 = vmul.f32 %v2254, %v2264
  %v2270 = vmul.f32 %v2256, %v2266
  %2273 = vrot.lane.b32.xlu0 %v2269, 32
  %v2274 = vpop.permute.xlu0 %2273
  %2275 = vrot.lane.b32.xlu0 %v2270, 32
  %v2276 = vpop.permute.xlu0 %2275
  %v2279 = vadd.f32 %v2259, %v2274
  %v2280 = vadd.f32 %v2260, %v2276
  %v2281 = vtanh.pop %v2279
  %v2282 = vtanh.pop %v2280
  %2285 = vrot.lane.b32.xlu0 %v2281, 64
  %v2286 = vpop.permute.xlu0 %2285
  %2287 = vrot.lane.b32.xlu0 %v2282, 64
  %v2288 = vpop.permute.xlu0 %2287
  %v2291 = vmul.f32 %v2254, %v2286
  %v2292 = vmul.f32 %v2256, %v2288
  %2295 = vrot.lane.b32.xlu0 %v2291, 32
  %v2296 = vpop.permute.xlu0 %2295
  %2297 = vrot.lane.b32.xlu0 %v2292, 32
  %v2298 = vpop.permute.xlu0 %2297
  %v2299 = vsel %vm203, %v2296, 0
  %v2301 = vsel %vm203, %v2298, 0
  %2303 = vmatprep.subr.mxu0 %v1599
  %2304 = vmatpush1.msra.mxu0 %v1598
  %2305 = vmatprep.subr.mxu0 %v1601
  %2306 = vmatpush1.msra.mxu0 %v1600
  %2307 = vmatprep.subr.mxu0 %v1603
  %2308 = vmatpush1.msra.mxu0 %v1602
  %2309 = vmatprep.subr.mxu0 %v1605
  %2310 = vmatpush1.msra.mxu0 %v1604
  %2311 = vmatprep.subr.mxu0 0.0
  %2312 = vmatpush1.msra.mxu0 0.0
  %2313 = vmatprep.subr.mxu0 0.0
  %2314 = vmatpush1.msra.mxu0 0.0
  %2315 = vmatprep.subr.mxu0 0.0
  %2316 = vmatpush1.msra.mxu0 0.0
  %2317 = vmatprep.subr.mxu0 0.0
  %2318 = vmatpush1.msra.mxu0 0.0
  %2319 = vmatprep.subr.mxu0 0.0
  %2320 = vmatpush1.msra.mxu0 0.0
  %2321 = vmatprep.subr.mxu0 0.0
  %2322 = vmatpush1.msra.mxu0 0.0
  %2323 = vmatprep.subr.mxu0 0.0
  %2324 = vmatpush1.msra.mxu0 0.0
  %2325 = vmatprep.subr.mxu0 0.0
  %2326 = vmatpush1.msra.mxu0 0.0
  %2327 = vmatprep.subr.mxu0 0.0
  %2328 = vmatpush1.msra.mxu0 0.0
  %2329 = vmatprep.subr.mxu0 0.0
  %2330 = vmatpush1.msra.mxu0 0.0
  %2331 = vmatprep.subr.mxu0 0.0
  %2332 = vmatpush1.msra.mxu0 0.0
  %2333 = vmatprep.subr.mxu0 0.0
  %2334 = vmatpush1.msra.mxu0 0.0
  %2335 = vmatprep.subr.mxu0 0.0
  %2336 = vmatpush1.msra.mxu0 0.0
  %2337 = vmatprep.subr.mxu0 0.0
  %2338 = vmatpush1.msra.mxu0 0.0
  %2339 = vmatprep.subr.mxu0 0.0
  %2340 = vmatpush1.msra.mxu0 0.0
  %2341 = vmatprep.subr.mxu0 0.0
  %2342 = vmatpush1.msra.mxu0 0.0
  %2343 = vmatprep.subr.mxu0 0.0
  %2344 = vmatpush1.msra.mxu0 0.0
  %2345 = vmatprep.subr.mxu0 0.0
  %2346 = vmatpush1.msra.mxu0 0.0
  %2347 = vmatprep.subr.mxu0 0.0
  %2348 = vmatpush1.msra.mxu0 0.0
  %2349 = vmatprep.subr.mxu0 0.0
  %2350 = vmatpush1.msra.mxu0 0.0
  %2351 = vmatprep.subr.mxu0 0.0
  %2352 = vmatpush1.msra.mxu0 0.0
  %2353 = vmatprep.subr.mxu0 0.0
  %2354 = vmatpush1.msra.mxu0 0.0
  %2355 = vmatprep.subr.mxu0 0.0
  %2356 = vmatpush1.msra.mxu0 0.0
  %2357 = vmatprep.subr.mxu0 0.0
  %2358 = vmatpush1.msra.mxu0 0.0
  %2359 = vmatprep.subr.mxu0 0.0
  %2360 = vmatpush1.msra.mxu0 0.0
  %2361 = vmatprep.subr.mxu0 0.0
  %2362 = vmatpush1.msra.mxu0 0.0
  %2363 = vmatprep.subr.mxu0 0.0
  %2364 = vmatpush1.msra.mxu0 0.0
  %2365 = vmatprep.subr.mxu0 0.0
  %2366 = vmatpush1.msra.mxu0 0.0
  %2367 = vmatprep.mubr.f32.mxu0 0.0
  %2368 = vmatmul.mubr.f32.gmra.mrb[0].mxu0 %v2299
  %v2369 = vpop.f32.mrb[0].mxu0
  %v2370 = vadd.f32 0.0, %v2369
  %v2371 = vpop.f32.mrb[0].mxu0
  %2372 = vmatprep.mubr.f32.mxu0 0.0
  %2373 = vmatmul.mubr.f32.gmra.mrb[0].mxu0 %v2301
  %v2374 = vpop.f32.mrb[0].mxu0
  %v2375 = vpop.f32.mrb[0].mxu0
  %v2376 = vadd.f32 0.0, %v2375
  %2377 = vdwg.mxu0
  %v2378 = vadd.f32 %v2370, %v1584
  %v2379 = vadd.f32 %v2376, %v1572
  %v2380 = vxor.u32 %v2378, 2147483648
  %v2381 = vxor.u32 %v2379, 2147483648
  %v2382 = vmul.f32 %v2380, 1.442695
  %v2383 = vpow.pop %v2382
  %v2384 = vmul.f32 %v2381, 1.442695
  %v2385 = vpow.pop %v2384
  %v2386 = vadd.f32 %v2383, 1.0
  %v2387 = vadd.f32 %v2385, 1.0
  %v2388 = vrcp.pop %v2386
  %v2389 = vmul.f32 1.0, %v2388
  %v2390 = vrcp.pop %v2387
  %v2391 = vmul.f32 1.0, %v2390
  %v2392 = vtanh.pop %v2378
  %v2393 = vtanh.pop %v2379
  %v2394 = vmul.f32 %v2389, %v2279
  %v2395 = vmul.f32 %v2391, %v2280
  %2398 = vrot.lane.b32.xlu0 %v2392, 64
  %v2399 = vpop.permute.xlu0 %2398
  %2400 = vrot.lane.b32.xlu0 %v2393, 64
  %v2401 = vpop.permute.xlu0 %2400
  %v2404 = vmul.f32 %v2389, %v2399
  %v2405 = vmul.f32 %v2391, %v2401
  %2408 = vrot.lane.b32.xlu0 %v2404, 32
  %v2409 = vpop.permute.xlu0 %2408
  %2410 = vrot.lane.b32.xlu0 %v2405, 32
  %v2411 = vpop.permute.xlu0 %2410
  %v2414 = vadd.f32 %v2394, %v2409
  %v2415 = vadd.f32 %v2395, %v2411
  %v2416 = vtanh.pop %v2414
  %v2417 = vtanh.pop %v2415
  %2420 = vrot.lane.b32.xlu0 %v2416, 64
  %v2421 = vpop.permute.xlu0 %2420
  %2422 = vrot.lane.b32.xlu0 %v2417, 64
  %v2423 = vpop.permute.xlu0 %2422
  %v2426 = vmul.f32 %v2389, %v2421
  %v2427 = vmul.f32 %v2391, %v2423
  %2430 = vrot.lane.b32.xlu0 %v2426, 32
  %v2431 = vpop.permute.xlu0 %2430
  %2432 = vrot.lane.b32.xlu0 %v2427, 32
  %v2433 = vpop.permute.xlu0 %2432
  %v2434 = vsel %vm203, %v2431, 0
  %v2436 = vsel %vm203, %v2433, 0
  %2438 = vmatprep.subr.mxu0 %v1599
  %2439 = vmatpush1.msra.mxu0 %v1598
  %2440 = vmatprep.subr.mxu0 %v1601
  %2441 = vmatpush1.msra.mxu0 %v1600
  %2442 = vmatprep.subr.mxu0 %v1603
  %2443 = vmatpush1.msra.mxu0 %v1602
  %2444 = vmatprep.subr.mxu0 %v1605
  %2445 = vmatpush1.msra.mxu0 %v1604
  %2446 = vmatprep.subr.mxu0 0.0
  %2447 = vmatpush1.msra.mxu0 0.0
  %2448 = vmatprep.subr.mxu0 0.0
  %2449 = vmatpush1.msra.mxu0 0.0
  %2450 = vmatprep.subr.mxu0 0.0
  %2451 = vmatpush1.msra.mxu0 0.0
  %2452 = vmatprep.subr.mxu0 0.0
  %2453 = vmatpush1.msra.mxu0 0.0
  %2454 = vmatprep.subr.mxu0 0.0
  %2455 = vmatpush1.msra.mxu0 0.0
  %2456 = vmatprep.subr.mxu0 0.0
  %2457 = vmatpush1.msra.mxu0 0.0
  %2458 = vmatprep.subr.mxu0 0.0
  %2459 = vmatpush1.msra.mxu0 0.0
  %2460 = vmatprep.subr.mxu0 0.0
  %2461 = vmatpush1.msra.mxu0 0.0
  %2462 = vmatprep.subr.mxu0 0.0
  %2463 = vmatpush1.msra.mxu0 0.0
  %2464 = vmatprep.subr.mxu0 0.0
  %2465 = vmatpush1.msra.mxu0 0.0
  %2466 = vmatprep.subr.mxu0 0.0
  %2467 = vmatpush1.msra.mxu0 0.0
  %2468 = vmatprep.subr.mxu0 0.0
  %2469 = vmatpush1.msra.mxu0 0.0
  %2470 = vmatprep.subr.mxu0 0.0
  %2471 = vmatpush1.msra.mxu0 0.0
  %2472 = vmatprep.subr.mxu0 0.0
  %2473 = vmatpush1.msra.mxu0 0.0
  %2474 = vmatprep.subr.mxu0 0.0
  %2475 = vmatpush1.msra.mxu0 0.0
  %2476 = vmatprep.subr.mxu0 0.0
  %2477 = vmatpush1.msra.mxu0 0.0
  %2478 = vmatprep.subr.mxu0 0.0
  %2479 = vmatpush1.msra.mxu0 0.0
  %2480 = vmatprep.subr.mxu0 0.0
  %2481 = vmatpush1.msra.mxu0 0.0
  %2482 = vmatprep.subr.mxu0 0.0
  %2483 = vmatpush1.msra.mxu0 0.0
  %2484 = vmatprep.subr.mxu0 0.0
  %2485 = vmatpush1.msra.mxu0 0.0
  %2486 = vmatprep.subr.mxu0 0.0
  %2487 = vmatpush1.msra.mxu0 0.0
  %2488 = vmatprep.subr.mxu0 0.0
  %2489 = vmatpush1.msra.mxu0 0.0
  %2490 = vmatprep.subr.mxu0 0.0
  %2491 = vmatpush1.msra.mxu0 0.0
  %2492 = vmatprep.subr.mxu0 0.0
  %2493 = vmatpush1.msra.mxu0 0.0
  %2494 = vmatprep.subr.mxu0 0.0
  %2495 = vmatpush1.msra.mxu0 0.0
  %2496 = vmatprep.subr.mxu0 0.0
  %2497 = vmatpush1.msra.mxu0 0.0
  %2498 = vmatprep.subr.mxu0 0.0
  %2499 = vmatpush1.msra.mxu0 0.0
  %2500 = vmatprep.subr.mxu0 0.0
  %2501 = vmatpush1.msra.mxu0 0.0
  %2502 = vmatprep.mubr.f32.mxu0 0.0
  %2503 = vmatmul.mubr.f32.gmra.mrb[0].mxu0 %v2434
  %v2504 = vpop.f32.mrb[0].mxu0
  %v2505 = vadd.f32 0.0, %v2504
  %v2506 = vpop.f32.mrb[0].mxu0
  %2507 = vmatprep.mubr.f32.mxu0 0.0
  %2508 = vmatmul.mubr.f32.gmra.mrb[0].mxu0 %v2436
  %v2509 = vpop.f32.mrb[0].mxu0
  %v2510 = vpop.f32.mrb[0].mxu0
  %v2511 = vadd.f32 0.0, %v2510
  %2512 = vdwg.mxu0
  %v2513 = vadd.f32 %v2505, %v1590
  %v2514 = vadd.f32 %v2511, %v1566
  %v2515 = vxor.u32 %v2513, 2147483648
  %v2516 = vxor.u32 %v2514, 2147483648
  %v2517 = vmul.f32 %v2515, 1.442695
  %v2518 = vpow.pop %v2517
  %v2519 = vmul.f32 %v2516, 1.442695
  %v2520 = vpow.pop %v2519
  %v2521 = vadd.f32 %v2518, 1.0
  %v2522 = vadd.f32 %v2520, 1.0
  %v2523 = vrcp.pop %v2521
  %v2524 = vmul.f32 1.0, %v2523
  %v2525 = vrcp.pop %v2522
  %v2526 = vmul.f32 1.0, %v2525
  %v2527 = vtanh.pop %v2513
  %v2528 = vtanh.pop %v2514
  %v2529 = vmul.f32 %v2524, %v2414
  %v2530 = vmul.f32 %v2526, %v2415
  %2533 = vrot.lane.b32.xlu0 %v2527, 64
  %v2534 = vpop.permute.xlu0 %2533
  %2535 = vrot.lane.b32.xlu0 %v2528, 64
  %v2536 = vpop.permute.xlu0 %2535
  %v2539 = vmul.f32 %v2524, %v2534
  %v2540 = vmul.f32 %v2526, %v2536
  %2543 = vrot.lane.b32.xlu0 %v2539, 32
  %v2544 = vpop.permute.xlu0 %2543
  %2545 = vrot.lane.b32.xlu0 %v2540, 32
  %v2546 = vpop.permute.xlu0 %2545
  %v2549 = vadd.f32 %v2529, %v2544
  %v2550 = vadd.f32 %v2530, %v2546
  %v2551 = vtanh.pop %v2549
  %v2552 = vtanh.pop %v2550
  %2555 = vrot.lane.b32.xlu0 %v2551, 64
  %v2556 = vpop.permute.xlu0 %2555
  %2557 = vrot.lane.b32.xlu0 %v2552, 64
  %v2558 = vpop.permute.xlu0 %2557
  %v2561 = vmul.f32 %v2524, %v2556
  %v2562 = vmul.f32 %v2526, %v2558
  %2565 = vrot.lane.b32.xlu0 %v2561, 32
  %v2566 = vpop.permute.xlu0 %2565
  %2567 = vrot.lane.b32.xlu0 %v2562, 32
  %v2568 = vpop.permute.xlu0 %2567
  %v2569 = vsel %vm203, %v2566, 0
  %v2571 = vsel %vm203, %v2568, 0
  %2573 = vmatprep.subr.mxu0 %v1599
  %2574 = vmatpush1.msra.mxu0 %v1598
  %2575 = vmatprep.subr.mxu0 %v1601
  %2576 = vmatpush1.msra.mxu0 %v1600
  %2577 = vmatprep.subr.mxu0 %v1603
  %2578 = vmatpush1.msra.mxu0 %v1602
  %2579 = vmatprep.subr.mxu0 %v1605
  %2580 = vmatpush1.msra.mxu0 %v1604
  %2581 = vmatprep.subr.mxu0 0.0
  %2582 = vmatpush1.msra.mxu0 0.0
  %2583 = vmatprep.subr.mxu0 0.0
  %2584 = vmatpush1.msra.mxu0 0.0
  %2585 = vmatprep.subr.mxu0 0.0
  %2586 = vmatpush1.msra.mxu0 0.0
  %2587 = vmatprep.subr.mxu0 0.0
  %2588 = vmatpush1.msra.mxu0 0.0
  %2589 = vmatprep.subr.mxu0 0.0
  %2590 = vmatpush1.msra.mxu0 0.0
  %2591 = vmatprep.subr.mxu0 0.0
  %2592 = vmatpush1.msra.mxu0 0.0
  %2593 = vmatprep.subr.mxu0 0.0
  %2594 = vmatpush1.msra.mxu0 0.0
  %2595 = vmatprep.subr.mxu0 0.0
  %2596 = vmatpush1.msra.mxu0 0.0
  %2597 = vmatprep.subr.mxu0 0.0
  %2598 = vmatpush1.msra.mxu0 0.0
  %2599 = vmatprep.subr.mxu0 0.0
  %2600 = vmatpush1.msra.mxu0 0.0
  %2601 = vmatprep.subr.mxu0 0.0
  %2602 = vmatpush1.msra.mxu0 0.0
  %2603 = vmatprep.subr.mxu0 0.0
  %2604 = vmatpush1.msra.mxu0 0.0
  %2605 = vmatprep.subr.mxu0 0.0
  %2606 = vmatpush1.msra.mxu0 0.0
  %2607 = vmatprep.subr.mxu0 0.0
  %2608 = vmatpush1.msra.mxu0 0.0
  %2609 = vmatprep.subr.mxu0 0.0
  %2610 = vmatpush1.msra.mxu0 0.0
  %2611 = vmatprep.subr.mxu0 0.0
  %2612 = vmatpush1.msra.mxu0 0.0
  %2613 = vmatprep.subr.mxu0 0.0
  %2614 = vmatpush1.msra.mxu0 0.0
  %2615 = vmatprep.subr.mxu0 0.0
  %2616 = vmatpush1.msra.mxu0 0.0
  %2617 = vmatprep.subr.mxu0 0.0
  %2618 = vmatpush1.msra.mxu0 0.0
  %2619 = vmatprep.subr.mxu0 0.0
  %2620 = vmatpush1.msra.mxu0 0.0
  %2621 = vmatprep.subr.mxu0 0.0
  %2622 = vmatpush1.msra.mxu0 0.0
  %2623 = vmatprep.subr.mxu0 0.0
  %2624 = vmatpush1.msra.mxu0 0.0
  %2625 = vmatprep.subr.mxu0 0.0
  %2626 = vmatpush1.msra.mxu0 0.0
  %2627 = vmatprep.subr.mxu0 0.0
  %2628 = vmatpush1.msra.mxu0 0.0
  %2629 = vmatprep.subr.mxu0 0.0
  %2630 = vmatpush1.msra.mxu0 0.0
  %2631 = vmatprep.subr.mxu0 0.0
  %2632 = vmatpush1.msra.mxu0 0.0
  %2633 = vmatprep.subr.mxu0 0.0
  %2634 = vmatpush1.msra.mxu0 0.0
  %2635 = vmatprep.subr.mxu0 0.0
  %2636 = vmatpush1.msra.mxu0 0.0
  %2637 = vmatprep.mubr.f32.mxu0 0.0
  %2638 = vmatmul.mubr.f32.gmra.mrb[0].mxu0 %v2569
  %v2639 = vpop.f32.mrb[0].mxu0
  %v2640 = vadd.f32 0.0, %v2639
  %v2641 = vpop.f32.mrb[0].mxu0
  %2642 = vmatprep.mubr.f32.mxu0 0.0
  %2643 = vmatmul.mubr.f32.gmra.mrb[0].mxu0 %v2571
  %v2644 = vpop.f32.mrb[0].mxu0
  %v2645 = vpop.f32.mrb[0].mxu0
  %v2646 = vadd.f32 0.0, %v2645
  %2647 = vdwg.mxu0
  %v2648 = vadd.f32 %v2640, %v1594
  %v2649 = vadd.f32 %v2646, %v1562
  %v2650 = vxor.u32 %v2648, 2147483648
  %v2651 = vxor.u32 %v2649, 2147483648
  %v2652 = vmul.f32 %v2650, 1.442695
  %v2653 = vpow.pop %v2652
  %v2654 = vmul.f32 %v2651, 1.442695
  %v2655 = vpow.pop %v2654
  %v2656 = vadd.f32 %v2653, 1.0
  %v2657 = vadd.f32 %v2655, 1.0
  %v2658 = vrcp.pop %v2656
  %v2659 = vmul.f32 1.0, %v2658
  %v2660 = vrcp.pop %v2657
  %v2661 = vmul.f32 1.0, %v2660
  %v2662 = vtanh.pop %v2648
  %v2663 = vtanh.pop %v2649
  %v2664 = vmul.f32 %v2659, %v2549
  %v2665 = vmul.f32 %v2661, %v2550
  %2668 = vrot.lane.b32.xlu0 %v2662, 64
  %v2669 = vpop.permute.xlu0 %2668
  %2670 = vrot.lane.b32.xlu0 %v2663, 64
  %v2671 = vpop.permute.xlu0 %2670
  %v2674 = vmul.f32 %v2659, %v2669
  %v2675 = vmul.f32 %v2661, %v2671
  %2678 = vrot.lane.b32.xlu0 %v2674, 32
  %v2679 = vpop.permute.xlu0 %2678
  %2680 = vrot.lane.b32.xlu0 %v2675, 32
  %v2681 = vpop.permute.xlu0 %2680
  %v2684 = vadd.f32 %v2664, %v2679
  %v2685 = vadd.f32 %v2665, %v2681
  %v2686 = vtanh.pop %v2684
  %v2687 = vtanh.pop %v2685
  %2690 = vrot.lane.b32.xlu0 %v2686, 64
  %v2691 = vpop.permute.xlu0 %2690
  %2692 = vrot.lane.b32.xlu0 %v2687, 64
  %v2693 = vpop.permute.xlu0 %2692
  %v2696 = vmul.f32 %v2659, %v2691
  %v2697 = vmul.f32 %v2661, %v2693
  %2699 = vrot.lane.b32.xlu0 %v2696, 32
  %v2700 = vpop.permute.xlu0 %2699
  %s2702 = scalar_lea.vmem %s12, 16
  %2703 = vst.msk [vmem:[%s2702] sm:$0xff] %vm203, %v2700
  %2705 = vrot.lane.b32.xlu0 %v2697, 32
  %v2706 = vpop.permute.xlu0 %2705
  %s2708 = scalar_lea.vmem %s12, 24
  %2709 = vst.msk [vmem:[%s2708] sm:$0xff] %vm203, %v2706
  %2711 = vrot.lane.b32.xlu0 %v2684, 96
  %v2712 = vpop.permute.xlu0 %2711
  %s2714 = scalar_lea.vmem %s13, 16
  %2715 = vst.msk [vmem:[%s2714] sm:$0xff] %vm203, %v2712
  %2717 = vrot.lane.b32.xlu0 %v2685, 96
  %v2718 = vpop.permute.xlu0 %2717
  %s2720 = scalar_lea.vmem %s13, 24
  %2721 = vst.msk [vmem:[%s2720] sm:$0xff] %vm203, %v2718
  %2729 = vrot.lane.b32.xlu0 %v2697, 64
  %v2730 = vpop.permute.xlu0 %2729
  %2731 = vrot.lane.b32.xlu0 %v2562, 64
  %v2732 = vpop.permute.xlu0 %2731
  %2733 = vrot.lane.b32.xlu0 %v2427, 64
  %v2734 = vpop.permute.xlu0 %2733
  %2735 = vrot.lane.b32.xlu0 %v2292, 64
  %v2736 = vpop.permute.xlu0 %2735
  %2737 = vrot.lane.b32.xlu0 %v2157, 64
  %v2738 = vpop.permute.xlu0 %2737
  %2739 = vrot.lane.b32.xlu0 %v2022, 64
  %v2740 = vpop.permute.xlu0 %2739
  %2741 = vrot.lane.b32.xlu0 %v1887, 64
  %v2742 = vpop.permute.xlu0 %2741
  %2743 = vrot.lane.b32.xlu0 %v1752, 64
  %v2744 = vpop.permute.xlu0 %2743
  %v2753 = vsel %vm203, %v1756, %v2730
  %v2754 = vsel %vm203, %v1891, %v2732
  %v2755 = vsel %vm203, %v2026, %v2734
  %v2756 = vsel %vm203, %v2161, %v2736
  %v2757 = vsel %vm203, %v2296, %v2738
  %v2758 = vsel %vm203, %v2431, %v2740
  %v2759 = vsel %vm203, %v2566, %v2742
  %v2760 = vsel %vm203, %v2700, %v2744
  %v2761 = vsel %vm1512, %v2753, 0.0
  %v2762 = vsel %vm1512, %v2754, 0.0
  %v2763 = vsel %vm1512, %v2755, 0.0
  %v2764 = vsel %vm1512, %v2756, 0.0
  %v2765 = vsel %vm1512, %v2757, 0.0
  %v2766 = vsel %vm1512, %v2758, 0.0
  %v2767 = vsel %vm1512, %v2759, 0.0
  %v2768 = vsel %vm1512, %v2760, 0.0
  %2769 = vst [vmem:[%s11] sm:$0xff] %v2761
  %2770 = vst [vmem:[%s11 + $0x8] sm:$0xff] %v2762
  %2771 = vst [vmem:[%s11 + $0x10] sm:$0xff] %v2763
  %2772 = vst [vmem:[%s11 + $0x18] sm:$0xff] %v2764
  %2773 = vst [vmem:[%s11 + $0x20] sm:$0xff] %v2765
  %2774 = vst [vmem:[%s11 + $0x28] sm:$0xff] %v2766
  %2775 = vst [vmem:[%s11 + $0x30] sm:$0xff] %v2767
  %2776 = vst [vmem:[%s11 + $0x38] sm:$0xff] %v2768
  // Predicated region
  $region46: #{encoder_forward.1} parent=0 // pred_check
    _
  $region47: #{encoder_forward.1} parent=0 // pred_check_branch
    %2778 = sbr.rel (0) target = $region49
  $region48: #{encoder_forward.1} parent=0 // pred_region
    _
  $region49: #{encoder_forward.1} parent=0 // pred_fallthru
    _
  // Predicated region
  $region50: #{encoder_forward.1} parent=0 // pred_check
    _
  $region51: #{encoder_forward.1} parent=0 // pred_check_branch
    %2780 = sbr.rel (0) target = $region53
  $region52: #{encoder_forward.1} parent=0 // pred_region
    _
  $region53: #{encoder_forward.1} parent=0 // pred_fallthru
    _
  // Predicated region
  $region54: #{encoder_forward.1} parent=0 // pred_check
    _
  $region55: #{encoder_forward.1} parent=0 // pred_check_branch
    %2782 = sbr.rel (0) target = $region57
  $region56: #{encoder_forward.1} parent=0 // pred_region
    _
  $region57: #{encoder_forward.1} parent=0 // pred_fallthru
    _
  // Predicated region
  $region58: #{encoder_forward.1} parent=0 // pred_check
    _
  $region59: #{encoder_forward.1} parent=0 // pred_check_branch
    %2784 = sbr.rel (0) target = $region61
  $region60: #{encoder_forward.1} parent=0 // pred_region
    _
  $region61: #{encoder_forward.1} parent=0 // pred_fallthru
    _
  // Predicated region
  $region62: #{encoder_forward.1} parent=0 // pred_check
    _
  $region63: #{encoder_forward.1} parent=0 // pred_check_branch
    %2786 = sbr.rel (0) target = $region65
  $region64: #{encoder_forward.1} parent=0 // pred_region
    _
  $region65: #{encoder_forward.1} parent=0 // pred_fallthru
    _
  // Predicated region
  $region66: #{encoder_forward.1} parent=0 // pred_check
    _
  $region67: #{encoder_forward.1} parent=0 // pred_check_branch
    %2788 = sbr.rel (0) target = $region69
  $region68: #{encoder_forward.1} parent=0 // pred_region
    _
  $region69: #{encoder_forward.1} parent=0 // pred_fallthru
    _

</llo_original>
